<compile_context>
chip_gen: v7x
topology: tpu7x:2x2x1
jax: 0.10.0
libtpu: 0.0.40
codegen_flags: <defaults>
</compile_context>

<pallas_src>
import jax
import jax.numpy as jnp
import numpy as np
from jax.experimental import pallas as pl
from jax.experimental.pallas import tpu as pltpu


def _ppo_evaluate_kernel(
    state_ref, act_ref,
    w1_ref, b1_ref,                         # fused actor|critic layer 1: [D,2H], [1,2H]
    aw2_ref, ab2_ref, aw3_ref, ab3_ref,
    cw2_ref, cb2_ref, cw3t_ref, cb3_ref,    # cw3t is [1, H] (transposed critic head)
    out_ref,                                # [TILE_B, 8]: lane0=logp, lane1=entropy, lane2=value
):
    w_dtype = w1_ref.dtype                  # bf16 (perf path) or f32 (reference path)
    hidden = aw2_ref.shape[0]               # H (static)

    # ---- fused layer 1 (shared LHS for actor & critic), f32 accumulation ----
    x = state_ref[...].astype(w_dtype)                                  # [TB, D]
    hg = jnp.tanh(jnp.dot(x, w1_ref[...],
                          preferred_element_type=jnp.float32) + b1_ref[...])  # [TB, 2H] f32

    # ---------------- actor MLP ----------------
    h = hg[:, :hidden].astype(w_dtype)
    h = jnp.tanh(jnp.dot(h, aw2_ref[...],
                         preferred_element_type=jnp.float32) + ab2_ref[...])
    logits = jnp.dot(h.astype(w_dtype), aw3_ref[...],
                     preferred_element_type=jnp.float32) + ab3_ref[...]        # [TB, A] f32

    # stable log-softmax / softmax (Categorical(probs) log_prob & entropy)
    m = jnp.max(logits, axis=-1, keepdims=True)
    z = logits - m
    e = jnp.exp(z)
    s = jnp.sum(e, axis=-1, keepdims=True)
    inv_s = pl.reciprocal(s)                                            # exact 1/s (EUP path)
    p = e * inv_s
    logp_all = z - jnp.log(s)                                           # log softmax

    # in-kernel one-hot of the taken action (no host-side one_hot, no gather)
    act_lane = jax.lax.broadcasted_iota(jnp.int32, logits.shape, 1)
    sel = (act_lane == act_ref[...]).astype(jnp.float32)                # [TB, A]
    logp = jnp.sum(sel * logp_all, axis=-1, keepdims=True)              # [TB, 1]
    ent = -jnp.sum(p * logp_all, axis=-1, keepdims=True)                # [TB, 1]

    # ---------------- critic MLP ----------------
    g = hg[:, hidden:].astype(w_dtype)
    g = jnp.tanh(jnp.dot(g, cw2_ref[...],
                         preferred_element_type=jnp.float32) + cb2_ref[...])
    # N=1 head as VPU multiply + cross-lane reduce (keeps MXU free, no 1-lane matmul)
    val = jnp.sum(g * cw3t_ref[...].astype(jnp.float32),
                  axis=-1, keepdims=True) + cb3_ref[...]                # [TB, 1]

    # ---- pack the three per-row scalars into one small (TILE_B, 8) slab ----
    lane = jax.lax.broadcasted_iota(jnp.int32, out_ref.shape, 1)        # [TB, 8]
    out_ref[...] = (jnp.where(lane == 0, logp, 0.0)
                    + jnp.where(lane == 1, ent, 0.0)
                    + jnp.where(lane == 2, val, 0.0))


def _num_tensorcores():
    """One grid step per TensorCore: 2 on v7x-style megacore chips, else 1."""
    try:
        dev = jax.devices()[0]
        nc = getattr(dev, "num_cores", None)
        if nc is None:
            kind = str(getattr(dev, "device_kind", "")).lower()
            nc = 2 if "v7" in kind else 1
        return max(1, int(nc))
    except Exception:
        return 1


def prepare_params(actor_params, critic_params, *, weight_dtype=jnp.bfloat16):
    """One-time fusion / layout / dtype prep (hoisted out of the per-call path)."""
    aw1, ab1, aw2, ab2, aw3, ab3 = actor_params
    cw1, cb1, cw2, cb2, cw3, cb3 = critic_params
    f32 = jnp.float32
    w1 = jnp.concatenate([aw1, cw1], axis=1).astype(weight_dtype)       # [D, 2H]
    b1 = jnp.concatenate([ab1, cb1], axis=1).astype(f32)                # [1, 2H]
    return (
        w1, b1,
        aw2.astype(weight_dtype), ab2.astype(f32),
        aw3.astype(weight_dtype), ab3.astype(f32),
        cw2.astype(weight_dtype), cb2.astype(f32),
        cw3.T.astype(weight_dtype), cb3.astype(f32),                    # cw3t [1, H]
    )


def ppo_evaluate(state, action, prepared_params, *, num_grid_steps=None):
    """Returns (action_logprobs [B], state_values [B,1], dist_entropy [B])."""
    B, D = state.shape
    (w1, b1, aw2, ab2, aw3, ab3, cw2, cb2, cw3t, cb3) = prepared_params
    H = aw2.shape[0]
    A = aw3.shape[1]

    if num_grid_steps is None:
        num_grid_steps = _num_tensorcores()

    # batch tiling: one block per grid step, sublane-aligned, padded if needed
    tile_b = -(-B // num_grid_steps)                 # ceil(B / steps)
    tile_b = ((tile_b + 7) // 8) * 8                 # round up to sublane multiple
    padded_b = tile_b * num_grid_steps

    act = action.astype(jnp.int32).reshape(B, 1)
    if padded_b != B:
        state = jnp.pad(state, ((0, padded_b - B), (0, 0)))
        act = jnp.pad(act, ((0, padded_b - B), (0, 0)))

    batch_map = lambda i: (i, 0)
    const_map = lambda i: (0, 0)

    weight_bytes = sum(int(np.prod(a.shape)) * a.dtype.itemsize
                       for a in (w1, b1, aw2, ab2, aw3, ab3, cw2, cb2, cw3t, cb3))
    io_bytes = padded_b * (D * 4 + 4 + 8 * 4)        # state + action + packed output
    cost = pl.CostEstimate(
        flops=int(2 * padded_b * (D * 2 * H + 2 * H * H + H * A + H)),
        transcendentals=int(padded_b * (4 * H + A + 2)),
        bytes_accessed=int(weight_bytes + io_bytes),
    )

    out = pl.pallas_call(
        _ppo_evaluate_kernel,
        out_shape=jax.ShapeDtypeStruct((padded_b, 8), jnp.float32),
        grid=(num_grid_steps,),
        in_specs=[
            pl.BlockSpec((tile_b, D), batch_map),     # state tile
            pl.BlockSpec((tile_b, 1), batch_map),     # action tile (int32)
            pl.BlockSpec(w1.shape, const_map),        # VMEM-resident weights
            pl.BlockSpec(b1.shape, const_map),
            pl.BlockSpec(aw2.shape, const_map),
            pl.BlockSpec(ab2.shape, const_map),
            pl.BlockSpec(aw3.shape, const_map),
            pl.BlockSpec(ab3.shape, const_map),
            pl.BlockSpec(cw2.shape, const_map),
            pl.BlockSpec(cb2.shape, const_map),
            pl.BlockSpec(cw3t.shape, const_map),
            pl.BlockSpec(cb3.shape, const_map),
        ],
        out_specs=pl.BlockSpec((tile_b, 8), batch_map),
        compiler_params=pltpu.CompilerParams(
            dimension_semantics=("parallel",)),       # shards steps across TCs on v7x
        cost_estimate=cost,
    )(state, act, w1, b1, aw2, ab2, aw3, ab3, cw2, cb2, cw3t, cb3)

    out = out[:B]
    logp = out[:, 0]
    ent = out[:, 1]
    val = out[:, 2:3]
    return logp, val, ent


def _linear_init(key, fan_in, fan_out):
    """Deterministic init mimicking nn.Linear default (U(-1/sqrt(fan_in), ...)).
    Weight is returned as [fan_in, fan_out] (transposed vs. PyTorch)."""
    kw, kb = jax.random.split(key)
    bound = 1.0 / np.sqrt(fan_in)
    w = jax.random.uniform(kw, (fan_in, fan_out), jnp.float32, -bound, bound)
    b = jax.random.uniform(kb, (1, fan_out), jnp.float32, -bound, bound)
    return w, b


def make_params(key, input_dim, output_dim, hidden=256):
    keys = jax.random.split(key, 6)
    aw1, ab1 = _linear_init(keys[0], input_dim, hidden)
    aw2, ab2 = _linear_init(keys[1], hidden, hidden)
    aw3, ab3 = _linear_init(keys[2], hidden, output_dim)
    cw1, cb1 = _linear_init(keys[3], input_dim, hidden)
    cw2, cb2 = _linear_init(keys[4], hidden, hidden)
    cw3, cb3 = _linear_init(keys[5], hidden, 1)
    return (aw1, ab1, aw2, ab2, aw3, ab3), (cw1, cb1, cw2, cb2, cw3, cb3)


def _reference(state, action, actor_params, critic_params):
    """Pure-JAX (f32) reference of TrainModel_PPO.evaluate."""
    aw1, ab1, aw2, ab2, aw3, ab3 = actor_params
    cw1, cb1, cw2, cb2, cw3, cb3 = critic_params
    h = jnp.tanh(state @ aw1 + ab1)
    h = jnp.tanh(h @ aw2 + ab2)
    logits = h @ aw3 + ab3
    logp_all = jax.nn.log_softmax(logits, axis=-1)
    p = jnp.exp(logp_all)
    logp = jnp.take_along_axis(logp_all, action[:, None], axis=-1)[:, 0]
    ent = -jnp.sum(p * logp_all, axis=-1)
    g = jnp.tanh(state @ cw1 + cb1)
    g = jnp.tanh(g @ cw2 + cb2)
    val = g @ cw3 + cb3
    return logp, val, ent


# TODO(synk): training-side ops (Adam optimizer, MSE loss, PPO clip backward) are
# host-level autodiff/optimizer logic, not part of this forward kernel.

if __name__ == "__main__":
    B = 256           # batch of states
    INPUT_DIM = 32    # state feature dimension
    OUTPUT_DIM = 8    # number of discrete actions

    key = jax.random.PRNGKey(0)
    k_state, k_act, k_params = jax.random.split(key, 3)

    state = jax.random.normal(k_state, (B, INPUT_DIM), dtype=jnp.float32)
    action = jax.random.randint(k_act, (B,), 0, OUTPUT_DIM, dtype=jnp.int32)
    actor_params, critic_params = make_params(k_params, INPUT_DIM, OUTPUT_DIM)

    rlogp, rval, rent = _reference(state, action, actor_params, critic_params)

    # --- f32 weight path: tight check of the fused kernel structure ---
    params_f32 = prepare_params(actor_params, critic_params, weight_dtype=jnp.float32)
    logp, val, ent = ppo_evaluate(state, action, params_f32)
    jax.block_until_ready((logp, val, ent))
    np.testing.assert_allclose(np.asarray(logp), np.asarray(rlogp), rtol=1e-5, atol=1e-5)
    np.testing.assert_allclose(np.asarray(val), np.asarray(rval), rtol=1e-5, atol=1e-5)
    np.testing.assert_allclose(np.asarray(ent), np.asarray(rent), rtol=1e-5, atol=1e-5)

    # --- bf16 weight path (perf default): halves HBM weight traffic ---
    params_bf16 = prepare_params(actor_params, critic_params, weight_dtype=jnp.bfloat16)
    logp, val, ent = ppo_evaluate(state, action, params_bf16)
    jax.block_until_ready((logp, val, ent))
    np.testing.assert_allclose(np.asarray(logp), np.asarray(rlogp), rtol=5e-2, atol=5e-2)
    np.testing.assert_allclose(np.asarray(val), np.asarray(rval), rtol=5e-2, atol=5e-2)
    np.testing.assert_allclose(np.asarray(ent), np.asarray(rent), rtol=5e-2, atol=5e-2)

    print("KERNEL_OK")
</pallas_src>

<mosaic_0001>
module attributes {stable_mosaic.version = 11 : i64} {
  func.func @_ppo_evaluate_kernel(%arg0: i32, %arg1: memref<256x32xf32, #tpu.memory_space<vmem>>, %arg2: memref<256x1xi32, #tpu.memory_space<vmem>>, %arg3: memref<32x512xf32, #tpu.memory_space<vmem>>, %arg4: memref<1x512xf32, #tpu.memory_space<vmem>>, %arg5: memref<256x256xf32, #tpu.memory_space<vmem>>, %arg6: memref<1x256xf32, #tpu.memory_space<vmem>>, %arg7: memref<256x8xf32, #tpu.memory_space<vmem>>, %arg8: memref<1x8xf32, #tpu.memory_space<vmem>>, %arg9: memref<256x256xf32, #tpu.memory_space<vmem>>, %arg10: memref<1x256xf32, #tpu.memory_space<vmem>>, %arg11: memref<1x256xf32, #tpu.memory_space<vmem>>, %arg12: memref<1x1xf32, #tpu.memory_space<vmem>>, %arg13: memref<256x8xf32, #tpu.memory_space<vmem>>) attributes {dimension_semantics = [#tpu.dimension_semantics<parallel>], iteration_bounds = array<i64: 1>, scalar_prefetch = 0 : i64, scratch_operands = 0 : i64, tpu.core_type = #tpu.core_type<tc>, window_params = [{transform_indices = @transform_0, window_bounds = array<i64: 256, 32>}, {transform_indices = @transform_1, window_bounds = array<i64: 256, 1>}, {pipeline_mode = #tpu.pipeline_mode<synchronous>, transform_indices = @transform_2, window_bounds = array<i64: 32, 512>}, {pipeline_mode = #tpu.pipeline_mode<synchronous>, transform_indices = @transform_3, window_bounds = array<i64: 1, 512>}, {pipeline_mode = #tpu.pipeline_mode<synchronous>, transform_indices = @transform_4, window_bounds = array<i64: 256, 256>}, {pipeline_mode = #tpu.pipeline_mode<synchronous>, transform_indices = @transform_5, window_bounds = array<i64: 1, 256>}, {pipeline_mode = #tpu.pipeline_mode<synchronous>, transform_indices = @transform_6, window_bounds = array<i64: 256, 8>}, {pipeline_mode = #tpu.pipeline_mode<synchronous>, transform_indices = @transform_7, window_bounds = array<i64: 1, 8>}, {pipeline_mode = #tpu.pipeline_mode<synchronous>, transform_indices = @transform_8, window_bounds = array<i64: 256, 256>}, {pipeline_mode = #tpu.pipeline_mode<synchronous>, transform_indices = @transform_9, window_bounds = array<i64: 1, 256>}, {pipeline_mode = #tpu.pipeline_mode<synchronous>, transform_indices = @transform_10, window_bounds = array<i64: 1, 256>}, {pipeline_mode = #tpu.pipeline_mode<synchronous>, transform_indices = @transform_11, window_bounds = array<i64: 1, 1>}, {transform_indices = @transform_12, window_bounds = array<i64: 256, 8>}]} {
    %c0 = arith.constant 0 : index
    %c0_0 = arith.constant 0 : index
    %0 = vector.load %arg1[%c0, %c0_0] : memref<256x32xf32, #tpu.memory_space<vmem>>, vector<256x32xf32>
    %c0_1 = arith.constant 0 : index
    %c0_2 = arith.constant 0 : index
    %1 = vector.load %arg3[%c0_1, %c0_2] : memref<32x512xf32, #tpu.memory_space<vmem>>, vector<32x512xf32>
    %cst = arith.constant dense<0.000000e+00> : vector<256x512xf32>
    %2 = tpu.matmul %0, %1, %cst {dimension_numbers = #tpu.dot_dimension_numbers<[1], [0], [0], [1], [0, 0, 1, 1], [], []>} : vector<256x32xf32>, vector<32x512xf32>, vector<256x512xf32> -> vector<256x512xf32>
    %c0_3 = arith.constant 0 : index
    %c0_4 = arith.constant 0 : index
    %3 = vector.load %arg4[%c0_3, %c0_4] : memref<1x512xf32, #tpu.memory_space<vmem>>, vector<1x512xf32>
    %4 = vector.broadcast %3 : vector<1x512xf32> to vector<256x512xf32>
    %5 = arith.addf %2, %4 : vector<256x512xf32>
    %6 = math.tanh %5 : vector<256x512xf32>
    %7 = vector.extract_strided_slice %6 {offsets = [0, 0], sizes = [256, 256], strides = [1, 1]} : vector<256x512xf32> to vector<256x256xf32>
    %c0_5 = arith.constant 0 : index
    %c0_6 = arith.constant 0 : index
    %8 = vector.load %arg5[%c0_5, %c0_6] : memref<256x256xf32, #tpu.memory_space<vmem>>, vector<256x256xf32>
    %cst_7 = arith.constant dense<0.000000e+00> : vector<256x256xf32>
    %9 = tpu.matmul %7, %8, %cst_7 {dimension_numbers = #tpu.dot_dimension_numbers<[1], [0], [0], [1], [0, 0, 1, 1], [], []>} : vector<256x256xf32>, vector<256x256xf32>, vector<256x256xf32> -> vector<256x256xf32>
    %c0_8 = arith.constant 0 : index
    %c0_9 = arith.constant 0 : index
    %10 = vector.load %arg6[%c0_8, %c0_9] : memref<1x256xf32, #tpu.memory_space<vmem>>, vector<1x256xf32>
    %11 = vector.broadcast %10 : vector<1x256xf32> to vector<256x256xf32>
    %12 = arith.addf %9, %11 : vector<256x256xf32>
    %13 = math.tanh %12 : vector<256x256xf32>
    %c0_10 = arith.constant 0 : index
    %c0_11 = arith.constant 0 : index
    %14 = vector.load %arg7[%c0_10, %c0_11] : memref<256x8xf32, #tpu.memory_space<vmem>>, vector<256x8xf32>
    %cst_12 = arith.constant dense<0.000000e+00> : vector<256x8xf32>
    %15 = tpu.matmul %13, %14, %cst_12 {dimension_numbers = #tpu.dot_dimension_numbers<[1], [0], [0], [1], [0, 0, 1, 1], [], []>} : vector<256x256xf32>, vector<256x8xf32>, vector<256x8xf32> -> vector<256x8xf32>
    %c0_13 = arith.constant 0 : index
    %c0_14 = arith.constant 0 : index
    %16 = vector.load %arg8[%c0_13, %c0_14] : memref<1x8xf32, #tpu.memory_space<vmem>>, vector<1x8xf32>
    %17 = vector.broadcast %16 : vector<1x8xf32> to vector<256x8xf32>
    %18 = arith.addf %15, %17 : vector<256x8xf32>
    %cst_15 = arith.constant dense<0xFF800000> : vector<256xf32>
    %19 = vector.multi_reduction <maximumf>, %18, %cst_15 [1] : vector<256x8xf32> to vector<256xf32>
    %20 = vector.shape_cast %19 : vector<256xf32> to vector<256x1xf32>
    %21 = vector.broadcast %20 : vector<256x1xf32> to vector<256x8xf32>
    %22 = arith.subf %18, %21 : vector<256x8xf32>
    %23 = math.exp %22 : vector<256x8xf32>
    %cst_16 = arith.constant dense<0.000000e+00> : vector<256xf32>
    %24 = vector.multi_reduction <add>, %23, %cst_16 [1] : vector<256x8xf32> to vector<256xf32>
    %25 = vector.shape_cast %24 : vector<256xf32> to vector<256x1xf32>
    %26 = tpu.reciprocal %25 : vector<256x1xf32> -> vector<256x1xf32>
    %27 = vector.broadcast %26 : vector<256x1xf32> to vector<256x8xf32>
    %28 = arith.mulf %23, %27 : vector<256x8xf32>
    %29 = math.log %25 : vector<256x1xf32>
    %30 = vector.broadcast %29 : vector<256x1xf32> to vector<256x8xf32>
    %31 = arith.subf %22, %30 : vector<256x8xf32>
    %32 = tpu.iota {dimensions = array<i32: 1>} : vector<256x8xi32>
    %c0_17 = arith.constant 0 : index
    %c0_18 = arith.constant 0 : index
    %33 = vector.load %arg2[%c0_17, %c0_18] : memref<256x1xi32, #tpu.memory_space<vmem>>, vector<256x1xi32>
    %34 = vector.broadcast %33 : vector<256x1xi32> to vector<256x8xi32>
    %35 = arith.cmpi eq, %32, %34 : vector<256x8xi32>
    %36 = arith.extui %35 : vector<256x8xi1> to vector<256x8xi32>
    %37 = arith.sitofp %36 : vector<256x8xi32> to vector<256x8xf32>
    %38 = arith.mulf %37, %31 : vector<256x8xf32>
    %cst_19 = arith.constant dense<0.000000e+00> : vector<256xf32>
    %39 = vector.multi_reduction <add>, %38, %cst_19 [1] : vector<256x8xf32> to vector<256xf32>
    %40 = vector.shape_cast %39 : vector<256xf32> to vector<256x1xf32>
    %41 = arith.mulf %28, %31 : vector<256x8xf32>
    %cst_20 = arith.constant dense<0.000000e+00> : vector<256xf32>
    %42 = vector.multi_reduction <add>, %41, %cst_20 [1] : vector<256x8xf32> to vector<256xf32>
    %43 = vector.shape_cast %42 : vector<256xf32> to vector<256x1xf32>
    %cst_21 = arith.constant 0.000000e+00 : f32
    %44 = vector.broadcast %cst_21 : f32 to vector<256x1xf32>
    %45 = arith.subf %44, %43 : vector<256x1xf32>
    %46 = vector.extract_strided_slice %6 {offsets = [0, 256], sizes = [256, 256], strides = [1, 1]} : vector<256x512xf32> to vector<256x256xf32>
    %c0_22 = arith.constant 0 : index
    %c0_23 = arith.constant 0 : index
    %47 = vector.load %arg9[%c0_22, %c0_23] : memref<256x256xf32, #tpu.memory_space<vmem>>, vector<256x256xf32>
    %cst_24 = arith.constant dense<0.000000e+00> : vector<256x256xf32>
    %48 = tpu.matmul %46, %47, %cst_24 {dimension_numbers = #tpu.dot_dimension_numbers<[1], [0], [0], [1], [0, 0, 1, 1], [], []>} : vector<256x256xf32>, vector<256x256xf32>, vector<256x256xf32> -> vector<256x256xf32>
    %c0_25 = arith.constant 0 : index
    %c0_26 = arith.constant 0 : index
    %49 = vector.load %arg10[%c0_25, %c0_26] : memref<1x256xf32, #tpu.memory_space<vmem>>, vector<1x256xf32>
    %50 = vector.broadcast %49 : vector<1x256xf32> to vector<256x256xf32>
    %51 = arith.addf %48, %50 : vector<256x256xf32>
    %52 = math.tanh %51 : vector<256x256xf32>
    %c0_27 = arith.constant 0 : index
    %c0_28 = arith.constant 0 : index
    %53 = vector.load %arg11[%c0_27, %c0_28] : memref<1x256xf32, #tpu.memory_space<vmem>>, vector<1x256xf32>
    %54 = vector.broadcast %53 : vector<1x256xf32> to vector<256x256xf32>
    %55 = arith.mulf %52, %54 : vector<256x256xf32>
    %cst_29 = arith.constant dense<0.000000e+00> : vector<256xf32>
    %56 = vector.multi_reduction <add>, %55, %cst_29 [1] : vector<256x256xf32> to vector<256xf32>
    %57 = vector.shape_cast %56 : vector<256xf32> to vector<256x1xf32>
    %c0_30 = arith.constant 0 : index
    %c0_31 = arith.constant 0 : index
    %58 = vector.load %arg12[%c0_30, %c0_31] : memref<1x1xf32, #tpu.memory_space<vmem>>, vector<1x1xf32>
    %59 = vector.broadcast %58 : vector<1x1xf32> to vector<256x1xf32>
    %60 = arith.addf %57, %59 : vector<256x1xf32>
    %61 = tpu.iota {dimensions = array<i32: 1>} : vector<256x8xi32>
    %c0_i32 = arith.constant 0 : i32
    %62 = vector.broadcast %c0_i32 : i32 to vector<256x8xi32>
    %63 = arith.cmpi eq, %61, %62 : vector<256x8xi32>
    %cst_32 = arith.constant 0.000000e+00 : f32
    %64 = vector.shape_cast %40 : vector<256x1xf32> to vector<256x1xf32>
    %65 = vector.broadcast %64 : vector<256x1xf32> to vector<256x8xf32>
    %66 = vector.broadcast %cst_32 : f32 to vector<256x8xf32>
    %67 = arith.select %63, %65, %66 : vector<256x8xi1>, vector<256x8xf32>
    %c1_i32 = arith.constant 1 : i32
    %68 = vector.broadcast %c1_i32 : i32 to vector<256x8xi32>
    %69 = arith.cmpi eq, %61, %68 : vector<256x8xi32>
    %cst_33 = arith.constant 0.000000e+00 : f32
    %70 = vector.shape_cast %45 : vector<256x1xf32> to vector<256x1xf32>
    %71 = vector.broadcast %70 : vector<256x1xf32> to vector<256x8xf32>
    %72 = vector.broadcast %cst_33 : f32 to vector<256x8xf32>
    %73 = arith.select %69, %71, %72 : vector<256x8xi1>, vector<256x8xf32>
    %74 = arith.addf %67, %73 : vector<256x8xf32>
    %c2_i32 = arith.constant 2 : i32
    %75 = vector.broadcast %c2_i32 : i32 to vector<256x8xi32>
    %76 = arith.cmpi eq, %61, %75 : vector<256x8xi32>
    %cst_34 = arith.constant 0.000000e+00 : f32
    %77 = vector.shape_cast %60 : vector<256x1xf32> to vector<256x1xf32>
    %78 = vector.broadcast %77 : vector<256x1xf32> to vector<256x8xf32>
    %79 = vector.broadcast %cst_34 : f32 to vector<256x8xf32>
    %80 = arith.select %76, %78, %79 : vector<256x8xi1>, vector<256x8xf32>
    %81 = arith.addf %74, %80 : vector<256x8xf32>
    %c0_35 = arith.constant 0 : index
    %c0_36 = arith.constant 0 : index
    %82 = vector.load %arg13[%c0_35, %c0_36] : memref<256x8xf32, #tpu.memory_space<vmem>>, vector<256x8xf32>
    tpu.vector_store %arg13[%c0_35, %c0_36], %81 {strides = array<i32>} : memref<256x8xf32, #tpu.memory_space<vmem>>, vector<256x8xf32>,
    return
  }
  func.func @transform_0(%arg0: i32) -> (i32, i32) {
    %c0_i32 = arith.constant 0 : i32
    %c0_i32_0 = arith.constant 0 : i32
    return %arg0, %c0_i32 : i32, i32
  }
  func.func @transform_1(%arg0: i32) -> (i32, i32) {
    %c0_i32 = arith.constant 0 : i32
    %c0_i32_0 = arith.constant 0 : i32
    return %arg0, %c0_i32 : i32, i32
  }
  func.func @transform_2(%arg0: i32) -> (i32, i32) {
    %c0_i32 = arith.constant 0 : i32
    %c0_i32_0 = arith.constant 0 : i32
    %c0_i32_1 = arith.constant 0 : i32
    return %c0_i32, %c0_i32_0 : i32, i32
  }
  func.func @transform_3(%arg0: i32) -> (i32, i32) {
    %c0_i32 = arith.constant 0 : i32
    %c0_i32_0 = arith.constant 0 : i32
    %c0_i32_1 = arith.constant 0 : i32
    return %c0_i32, %c0_i32_0 : i32, i32
  }
  func.func @transform_4(%arg0: i32) -> (i32, i32) {
    %c0_i32 = arith.constant 0 : i32
    %c0_i32_0 = arith.constant 0 : i32
    %c0_i32_1 = arith.constant 0 : i32
    return %c0_i32, %c0_i32_0 : i32, i32
  }
  func.func @transform_5(%arg0: i32) -> (i32, i32) {
    %c0_i32 = arith.constant 0 : i32
    %c0_i32_0 = arith.constant 0 : i32
    %c0_i32_1 = arith.constant 0 : i32
    return %c0_i32, %c0_i32_0 : i32, i32
  }
  func.func @transform_6(%arg0: i32) -> (i32, i32) {
    %c0_i32 = arith.constant 0 : i32
    %c0_i32_0 = arith.constant 0 : i32
    %c0_i32_1 = arith.constant 0 : i32
    return %c0_i32, %c0_i32_0 : i32, i32
  }
  func.func @transform_7(%arg0: i32) -> (i32, i32) {
    %c0_i32 = arith.constant 0 : i32
    %c0_i32_0 = arith.constant 0 : i32
    %c0_i32_1 = arith.constant 0 : i32
    return %c0_i32, %c0_i32_0 : i32, i32
  }
  func.func @transform_8(%arg0: i32) -> (i32, i32) {
    %c0_i32 = arith.constant 0 : i32
    %c0_i32_0 = arith.constant 0 : i32
    %c0_i32_1 = arith.constant 0 : i32
    return %c0_i32, %c0_i32_0 : i32, i32
  }
  func.func @transform_9(%arg0: i32) -> (i32, i32) {
    %c0_i32 = arith.constant 0 : i32
    %c0_i32_0 = arith.constant 0 : i32
    %c0_i32_1 = arith.constant 0 : i32
    return %c0_i32, %c0_i32_0 : i32, i32
  }
  func.func @transform_10(%arg0: i32) -> (i32, i32) {
    %c0_i32 = arith.constant 0 : i32
    %c0_i32_0 = arith.constant 0 : i32
    %c0_i32_1 = arith.constant 0 : i32
    return %c0_i32, %c0_i32_0 : i32, i32
  }
  func.func @transform_11(%arg0: i32) -> (i32, i32) {
    %c0_i32 = arith.constant 0 : i32
    %c0_i32_0 = arith.constant 0 : i32
    %c0_i32_1 = arith.constant 0 : i32
    return %c0_i32, %c0_i32_0 : i32, i32
  }
  func.func @transform_12(%arg0: i32) -> (i32, i32) {
    %c0_i32 = arith.constant 0 : i32
    %c0_i32_0 = arith.constant 0 : i32
    return %arg0, %c0_i32 : i32, i32
  }
}

</mosaic_0001>

<llo_original>
// kernel: tpu_custom_call.1
$region0: #{tpu_custom_call.1}
  #allocation0 [shape = 'u32[]', space=smem, size = 0x4, offset = 0x4, fixed_abs, tag = 'smem constant byte address 0x4 - core index']
  #allocation1 [shape = 'u32[144,128]{1,0:T(1,128)}', space=vmem, size = 0x12000, scoped, tag = 'internal scratch']
  #allocation2 [shape = 'f32[1,1]{1,0:T(1,128)S(1)}', space=vmem, size = 0x200, scoped, tag = 'scoped memory for tpu_custom_call.1']
  %s0 = inlined_call_operand.vmem [shape: f32[256,32], index: 0, kind: input, shape index: {}]
  %s1 = inlined_call_operand.vmem [shape: s32[256,1], index: 1, kind: input, shape index: {}]
  %s2 = inlined_call_operand.vmem [shape: f32[32,512], index: 2, kind: input, shape index: {}]
  %s3 = inlined_call_operand.vmem [shape: f32[1,512], index: 3, kind: input, shape index: {}]
  %s4 = inlined_call_operand.vmem [shape: f32[256,256], index: 4, kind: input, shape index: {}]
  %s5 = inlined_call_operand.vmem [shape: f32[1,256], index: 5, kind: input, shape index: {}]
  %s6 = inlined_call_operand.vmem [shape: f32[256,8], index: 6, kind: input, shape index: {}]
  %s7 = inlined_call_operand.vmem [shape: f32[1,8], index: 7, kind: input, shape index: {}]
  %s8 = inlined_call_operand.hbm [shape: f32[256,256], index: 8, kind: input, shape index: {}]
  %s9 = inlined_call_operand.vmem [shape: f32[1,256], index: 9, kind: input, shape index: {}]
  %s10 = inlined_call_operand.vmem [shape: f32[1,256], index: 10, kind: input, shape index: {}]
  %s11 = inlined_call_operand.<no memory space> [shape: f32[1,1], index: 11, kind: input, shape index: {}]
  %s12 = inlined_call_operand.vmem [shape: f32[256,8], index: 12, kind: output, shape index: {}]
  %s13 = sld [smem:[#allocation0]]
  $region62: #{tpu_custom_call.1} parent=0
    _
  %s15 = ssub.s32 1, %s13
  %s16 = scalar_select 0, %s15, %s13
  %v17 = vstv %s11
  %18 = vst [vmem:[#allocation2] sm:$0x1] %v17
  $region1: #{tpu_custom_call.1} parent=0
    #allocation3 [shape = 'u8[262144]{0}', space=vmem, size = 0x40000, scoped, tag = 'input window, operand 8, single buffered']
    #allocation4 [shape = 's32[1]{0}', space=sflag, size = 0x4, scoped, tag = 'scoped memory for tpu_custom_call.1']
    %19 = vsyncpa [#allocation4], 0
    // Predicated region
    $region2: #{tpu_custom_call.1} parent=1 // pred_check
      _
    $region3: #{tpu_custom_call.1} parent=1 // pred_check_branch
      %21 = sbr.rel (0) target = $region5
    $region4: #{tpu_custom_call.1} parent=1 // pred_region
      _
    $region5: #{tpu_custom_call.1} parent=1 // pred_fallthru
      _
    // Predicated region
    $region6: #{tpu_custom_call.1} parent=1 // pred_check
      _
    $region7: #{tpu_custom_call.1} parent=1 // pred_check_branch
      %23 = sbr.rel (0) target = $region9
    $region8: #{tpu_custom_call.1} parent=1 // pred_region
      _
    $region9: #{tpu_custom_call.1} parent=1 // pred_fallthru
      _
    // Predicated region
    $region10: #{tpu_custom_call.1} parent=1 // pred_check
      _
    $region11: #{tpu_custom_call.1} parent=1 // pred_check_branch
      %25 = sbr.rel (0) target = $region13
    $region12: #{tpu_custom_call.1} parent=1 // pred_region
      _
    $region13: #{tpu_custom_call.1} parent=1 // pred_fallthru
      _
    // Predicated region
    $region14: #{tpu_custom_call.1} parent=1 // pred_check
      _
    $region15: #{tpu_custom_call.1} parent=1 // pred_check_branch
      %27 = sbr.rel (0) target = $region17
    $region16: #{tpu_custom_call.1} parent=1 // pred_region
      _
    $region17: #{tpu_custom_call.1} parent=1 // pred_fallthru
      _
    // Predicated region
    $region18: #{tpu_custom_call.1} parent=1 // pred_check
      _
    $region19: #{tpu_custom_call.1} parent=1 // pred_check_branch
      %29 = sbr.rel (0) target = $region21
    $region20: #{tpu_custom_call.1} parent=1 // pred_region
      _
    $region21: #{tpu_custom_call.1} parent=1 // pred_fallthru
      _
    // Predicated region
    $region22: #{tpu_custom_call.1} parent=1 // pred_check
      _
    $region23: #{tpu_custom_call.1} parent=1 // pred_check_branch
      %31 = sbr.rel (0) target = $region25
    $region24: #{tpu_custom_call.1} parent=1 // pred_region
      _
    $region25: #{tpu_custom_call.1} parent=1 // pred_fallthru
      _
    // Predicated region
    $region26: #{tpu_custom_call.1} parent=1 // pred_check
      _
    $region27: #{tpu_custom_call.1} parent=1 // pred_check_branch
      %33 = sbr.rel (0) target = $region29
    $region28: #{tpu_custom_call.1} parent=1 // pred_region
      _
    $region29: #{tpu_custom_call.1} parent=1 // pred_fallthru
      _
    // Predicated region
    $region30: #{tpu_custom_call.1} parent=1 // pred_check
      _
    $region31: #{tpu_custom_call.1} parent=1 // pred_check_branch
      %35 = sbr.rel (0) target = $region33
    $region32: #{tpu_custom_call.1} parent=1 // pred_region
      _
    $region33: #{tpu_custom_call.1} parent=1 // pred_fallthru
      _
    // Predicated region
    $region34: #{tpu_custom_call.1} parent=1 // pred_check
      _
    $region35: #{tpu_custom_call.1} parent=1 // pred_check_branch
      %37 = sbr.rel (0) target = $region37
    $region36: #{tpu_custom_call.1} parent=1 // pred_region
      %s39 = ssub.s32 8192, 8192
      %40 = vsyncadd [#allocation4], %s39
      %s41 = sshll.u32 [#allocation3], 4
      %s42 = int_to_ptr.vmem [resolvable:$true] %s41
      %47 = dma.hbm_to_vmem [thread:$0]  %s8, 8192, %s42, [#allocation4], 256, 256, 16
    $region37: #{tpu_custom_call.1} parent=1 // pred_fallthru
      _
    // Predicated region
    $region38: #{tpu_custom_call.1} parent=1 // pred_check
      _
    $region39: #{tpu_custom_call.1} parent=1 // pred_check_branch
      %49 = sbr.rel (0) target = $region41
    $region40: #{tpu_custom_call.1} parent=1 // pred_region
      _
    $region41: #{tpu_custom_call.1} parent=1 // pred_fallthru
      _
    // Predicated region
    $region42: #{tpu_custom_call.1} parent=1 // pred_check
      _
    $region43: #{tpu_custom_call.1} parent=1 // pred_check_branch
      %51 = sbr.rel (0) target = $region45
    $region44: #{tpu_custom_call.1} parent=1 // pred_region
      _
    $region45: #{tpu_custom_call.1} parent=1 // pred_fallthru
      _
    // Predicated region
    $region46: #{tpu_custom_call.1} parent=1 // pred_check
      _
    $region47: #{tpu_custom_call.1} parent=1 // pred_check_branch
      %53 = sbr.rel (0) target = $region49
    $region48: #{tpu_custom_call.1} parent=1 // pred_region
      _
    $region49: #{tpu_custom_call.1} parent=1 // pred_fallthru
      _
    // Predicated region
    $region50: #{tpu_custom_call.1} parent=1 // pred_check
      _
    $region51: #{tpu_custom_call.1} parent=1 // pred_check_branch
      %55 = sbr.rel (0) target = $region53
    $region52: #{tpu_custom_call.1} parent=1 // pred_region
      %56 = dma.done [#allocation4], 8192
    $region53: #{tpu_custom_call.1} parent=1 // pred_fallthru
      _
    %v57 = vld [vmem:[%s0] sm:$0xff]
    %v58 = vld [vmem:[%s0 + $0x8] sm:$0xff]
    %v59 = vld [vmem:[%s0 + $0x10] sm:$0xff]
    %v60 = vld [vmem:[%s0 + $0x18] sm:$0xff]
    %v61 = vld [vmem:[%s0 + $0x20] sm:$0xff]
    %v62 = vld [vmem:[%s0 + $0x28] sm:$0xff]
    %v63 = vld [vmem:[%s0 + $0x30] sm:$0xff]
    %v64 = vld [vmem:[%s0 + $0x38] sm:$0xff]
    %v65 = vld [vmem:[%s0 + $0x40] sm:$0xff]
    %v66 = vld [vmem:[%s0 + $0x48] sm:$0xff]
    %v67 = vld [vmem:[%s0 + $0x50] sm:$0xff]
    %v68 = vld [vmem:[%s0 + $0x58] sm:$0xff]
    %v69 = vld [vmem:[%s0 + $0x60] sm:$0xff]
    %v70 = vld [vmem:[%s0 + $0x68] sm:$0xff]
    %v71 = vld [vmem:[%s0 + $0x70] sm:$0xff]
    %v72 = vld [vmem:[%s0 + $0x78] sm:$0xff]
    %v73 = vld [vmem:[%s0 + $0x80] sm:$0xff]
    %v74 = vld [vmem:[%s0 + $0x88] sm:$0xff]
    %v75 = vld [vmem:[%s0 + $0x90] sm:$0xff]
    %v76 = vld [vmem:[%s0 + $0x98] sm:$0xff]
    %v77 = vld [vmem:[%s0 + $0xa0] sm:$0xff]
    %v78 = vld [vmem:[%s0 + $0xa8] sm:$0xff]
    %v79 = vld [vmem:[%s0 + $0xb0] sm:$0xff]
    %v80 = vld [vmem:[%s0 + $0xb8] sm:$0xff]
    %v81 = vld [vmem:[%s0 + $0xc0] sm:$0xff]
    %v82 = vld [vmem:[%s0 + $0xc8] sm:$0xff]
    %v83 = vld [vmem:[%s0 + $0xd0] sm:$0xff]
    %v84 = vld [vmem:[%s0 + $0xd8] sm:$0xff]
    %v85 = vld [vmem:[%s0 + $0xe0] sm:$0xff]
    %v86 = vld [vmem:[%s0 + $0xe8] sm:$0xff]
    %v87 = vld [vmem:[%s0 + $0xf0] sm:$0xff]
    %v88 = vld [vmem:[%s0 + $0xf8] sm:$0xff]
    %v89 = vld [vmem:[%s2] sm:$0xff]
    %v90 = vld [vmem:[%s2 + $0x8] sm:$0xff]
    %v91 = vld [vmem:[%s2 + $0x10] sm:$0xff]
    %v92 = vld [vmem:[%s2 + $0x18] sm:$0xff]
    %v93 = vld [vmem:[%s2 + $0x20] sm:$0xff]
    %v94 = vld [vmem:[%s2 + $0x28] sm:$0xff]
    %v95 = vld [vmem:[%s2 + $0x30] sm:$0xff]
    %v96 = vld [vmem:[%s2 + $0x38] sm:$0xff]
    %v97 = vld [vmem:[%s2 + $0x40] sm:$0xff]
    %v98 = vld [vmem:[%s2 + $0x48] sm:$0xff]
    %v99 = vld [vmem:[%s2 + $0x50] sm:$0xff]
    %v100 = vld [vmem:[%s2 + $0x58] sm:$0xff]
    %v101 = vld [vmem:[%s2 + $0x60] sm:$0xff]
    %v102 = vld [vmem:[%s2 + $0x68] sm:$0xff]
    %v103 = vld [vmem:[%s2 + $0x70] sm:$0xff]
    %v104 = vld [vmem:[%s2 + $0x78] sm:$0xff]
    %v105 = vld [vmem:[%s3] sm:$0xf]
    %v107 = vlaneseq
    %v108 = vshrl.u32 %v107, 7
    %v109 = vsub.s32 0, %v108
    %v110 = vrot.slane %v105, %v109
    %v111 = vlaneseq
    %v112 = vshrl.u32 %v111, 7
    %v113 = vsub.s32 1, %v112
    %v114 = vrot.slane %v105, %v113
    %v115 = vlaneseq
    %v116 = vshrl.u32 %v115, 7
    %v117 = vsub.s32 2, %v116
    %v118 = vrot.slane %v105, %v117
    %v119 = vlaneseq
    %v120 = vshrl.u32 %v119, 7
    %v121 = vsub.s32 3, %v120
    %v122 = vrot.slane %v105, %v121
    %vm127 = vcmask 261120
    %v129 = vsel %vm127, %v57, 0
    %v132 = vsel %vm127, %v58, 0
    %v135 = vsel %vm127, %v59, 0
    %v138 = vsel %vm127, %v60, 0
    %v141 = vsel %vm127, %v61, 0
    %v144 = vsel %vm127, %v62, 0
    %v147 = vsel %vm127, %v63, 0
    %v150 = vsel %vm127, %v64, 0
    %v153 = vsel %vm127, %v65, 0
    %v156 = vsel %vm127, %v66, 0
    %v159 = vsel %vm127, %v67, 0
    %v162 = vsel %vm127, %v68, 0
    %v165 = vsel %vm127, %v69, 0
    %v168 = vsel %vm127, %v70, 0
    %v171 = vsel %vm127, %v71, 0
    %v174 = vsel %vm127, %v72, 0
    %v177 = vsel %vm127, %v73, 0
    %v180 = vsel %vm127, %v74, 0
    %v183 = vsel %vm127, %v75, 0
    %v186 = vsel %vm127, %v76, 0
    %v189 = vsel %vm127, %v77, 0
    %v192 = vsel %vm127, %v78, 0
    %v195 = vsel %vm127, %v79, 0
    %v198 = vsel %vm127, %v80, 0
    %v201 = vsel %vm127, %v81, 0
    %v204 = vsel %vm127, %v82, 0
    %v207 = vsel %vm127, %v83, 0
    %v210 = vsel %vm127, %v84, 0
    %v213 = vsel %vm127, %v85, 0
    %v216 = vsel %vm127, %v86, 0
    %v219 = vsel %vm127, %v87, 0
    %v222 = vsel %vm127, %v88, 0
    %224 = vmatprep.subr.mxu0 %v90
    %225 = vmatpush1.msra.mxu0 %v89
    %226 = vmatprep.subr.mxu0 %v94
    %227 = vmatpush1.msra.mxu0 %v93
    %228 = vmatprep.subr.mxu0 %v98
    %229 = vmatpush1.msra.mxu0 %v97
    %230 = vmatprep.subr.mxu0 %v102
    %231 = vmatpush1.msra.mxu0 %v101
    %232 = vmatprep.subr.mxu0 0.0
    %233 = vmatpush1.msra.mxu0 0.0
    %234 = vmatprep.subr.mxu0 0.0
    %235 = vmatpush1.msra.mxu0 0.0
    %236 = vmatprep.subr.mxu0 0.0
    %237 = vmatpush1.msra.mxu0 0.0
    %238 = vmatprep.subr.mxu0 0.0
    %239 = vmatpush1.msra.mxu0 0.0
    %240 = vmatprep.subr.mxu0 0.0
    %241 = vmatpush1.msra.mxu0 0.0
    %242 = vmatprep.subr.mxu0 0.0
    %243 = vmatpush1.msra.mxu0 0.0
    %244 = vmatprep.subr.mxu0 0.0
    %245 = vmatpush1.msra.mxu0 0.0
    %246 = vmatprep.subr.mxu0 0.0
    %247 = vmatpush1.msra.mxu0 0.0
    %248 = vmatprep.subr.mxu0 0.0
    %249 = vmatpush1.msra.mxu0 0.0
    %250 = vmatprep.subr.mxu0 0.0
    %251 = vmatpush1.msra.mxu0 0.0
    %252 = vmatprep.subr.mxu0 0.0
    %253 = vmatpush1.msra.mxu0 0.0
    %254 = vmatprep.subr.mxu0 0.0
    %255 = vmatpush1.msra.mxu0 0.0
    %256 = vmatprep.subr.mxu0 0.0
    %257 = vmatpush1.msra.mxu0 0.0
    %258 = vmatprep.subr.mxu0 0.0
    %259 = vmatpush1.msra.mxu0 0.0
    %260 = vmatprep.subr.mxu0 0.0
    %261 = vmatpush1.msra.mxu0 0.0
    %262 = vmatprep.subr.mxu0 0.0
    %263 = vmatpush1.msra.mxu0 0.0
    %264 = vmatprep.subr.mxu0 0.0
    %265 = vmatpush1.msra.mxu0 0.0
    %266 = vmatprep.subr.mxu0 0.0
    %267 = vmatpush1.msra.mxu0 0.0
    %268 = vmatprep.subr.mxu0 0.0
    %269 = vmatpush1.msra.mxu0 0.0
    %270 = vmatprep.subr.mxu0 0.0
    %271 = vmatpush1.msra.mxu0 0.0
    %272 = vmatprep.subr.mxu0 0.0
    %273 = vmatpush1.msra.mxu0 0.0
    %274 = vmatprep.subr.mxu0 0.0
    %275 = vmatpush1.msra.mxu0 0.0
    %276 = vmatprep.subr.mxu0 0.0
    %277 = vmatpush1.msra.mxu0 0.0
    %278 = vmatprep.subr.mxu0 0.0
    %279 = vmatpush1.msra.mxu0 0.0
    %280 = vmatprep.subr.mxu0 0.0
    %281 = vmatpush1.msra.mxu0 0.0
    %282 = vmatprep.subr.mxu0 0.0
    %283 = vmatpush1.msra.mxu0 0.0
    %284 = vmatprep.subr.mxu0 0.0
    %285 = vmatpush1.msra.mxu0 0.0
    %286 = vmatprep.subr.mxu0 0.0
    %287 = vmatpush1.msra.mxu0 0.0
    %288 = vmatprep.mubr.f32.mxu0 0.0
    %289 = vmatmul.mubr.f32.gmra.mrb[0].mxu0 %v129
    %v290 = vpop.f32.mrb[0].mxu0
    %v291 = vadd.f32 %v110, %v290
    %v292 = vpop.f32.mrb[0].mxu0
    %v293 = vadd.f32 %v114, %v292
    %294 = vmatprep.mubr.f32.mxu0 0.0
    %295 = vmatmul.mubr.f32.gmra.mrb[0].mxu0 %v132
    %v296 = vpop.f32.mrb[0].mxu0
    %v297 = vadd.f32 %v110, %v296
    %v298 = vpop.f32.mrb[0].mxu0
    %v299 = vadd.f32 %v114, %v298
    %300 = vmatprep.mubr.f32.mxu0 0.0
    %301 = vmatmul.mubr.f32.gmra.mrb[0].mxu0 %v135
    %v302 = vpop.f32.mrb[0].mxu0
    %v303 = vadd.f32 %v110, %v302
    %v304 = vpop.f32.mrb[0].mxu0
    %v305 = vadd.f32 %v114, %v304
    %306 = vmatprep.mubr.f32.mxu0 0.0
    %307 = vmatmul.mubr.f32.gmra.mrb[0].mxu0 %v138
    %v308 = vpop.f32.mrb[0].mxu0
    %v309 = vadd.f32 %v110, %v308
    %v310 = vpop.f32.mrb[0].mxu0
    %v311 = vadd.f32 %v114, %v310
    %312 = vmatprep.mubr.f32.mxu0 0.0
    %313 = vmatmul.mubr.f32.gmra.mrb[0].mxu0 %v141
    %v314 = vpop.f32.mrb[0].mxu0
    %v315 = vadd.f32 %v110, %v314
    %v316 = vpop.f32.mrb[0].mxu0
    %v317 = vadd.f32 %v114, %v316
    %318 = vmatprep.mubr.f32.mxu0 0.0
    %319 = vmatmul.mubr.f32.gmra.mrb[0].mxu0 %v144
    %v320 = vpop.f32.mrb[0].mxu0
    %v321 = vadd.f32 %v110, %v320
    %v322 = vpop.f32.mrb[0].mxu0
    %v323 = vadd.f32 %v114, %v322
    %324 = vmatprep.mubr.f32.mxu0 0.0
    %325 = vmatmul.mubr.f32.gmra.mrb[0].mxu0 %v147
    %v326 = vpop.f32.mrb[0].mxu0
    %v327 = vadd.f32 %v110, %v326
    %v328 = vpop.f32.mrb[0].mxu0
    %v329 = vadd.f32 %v114, %v328
    %330 = vmatprep.mubr.f32.mxu0 0.0
    %331 = vmatmul.mubr.f32.gmra.mrb[0].mxu0 %v150
    %v332 = vpop.f32.mrb[0].mxu0
    %v333 = vadd.f32 %v110, %v332
    %v334 = vpop.f32.mrb[0].mxu0
    %v335 = vadd.f32 %v114, %v334
    %336 = vmatprep.mubr.f32.mxu0 0.0
    %337 = vmatmul.mubr.f32.gmra.mrb[0].mxu0 %v153
    %v338 = vpop.f32.mrb[0].mxu0
    %v339 = vadd.f32 %v110, %v338
    %v340 = vpop.f32.mrb[0].mxu0
    %v341 = vadd.f32 %v114, %v340
    %342 = vmatprep.mubr.f32.mxu0 0.0
    %343 = vmatmul.mubr.f32.gmra.mrb[0].mxu0 %v156
    %v344 = vpop.f32.mrb[0].mxu0
    %v345 = vadd.f32 %v110, %v344
    %v346 = vpop.f32.mrb[0].mxu0
    %v347 = vadd.f32 %v114, %v346
    %348 = vmatprep.mubr.f32.mxu0 0.0
    %349 = vmatmul.mubr.f32.gmra.mrb[0].mxu0 %v159
    %v350 = vpop.f32.mrb[0].mxu0
    %v351 = vadd.f32 %v110, %v350
    %v352 = vpop.f32.mrb[0].mxu0
    %v353 = vadd.f32 %v114, %v352
    %354 = vmatprep.mubr.f32.mxu0 0.0
    %355 = vmatmul.mubr.f32.gmra.mrb[0].mxu0 %v162
    %v356 = vpop.f32.mrb[0].mxu0
    %v357 = vadd.f32 %v110, %v356
    %v358 = vpop.f32.mrb[0].mxu0
    %v359 = vadd.f32 %v114, %v358
    %360 = vmatprep.mubr.f32.mxu0 0.0
    %361 = vmatmul.mubr.f32.gmra.mrb[0].mxu0 %v165
    %v362 = vpop.f32.mrb[0].mxu0
    %v363 = vadd.f32 %v110, %v362
    %v364 = vpop.f32.mrb[0].mxu0
    %v365 = vadd.f32 %v114, %v364
    %366 = vmatprep.mubr.f32.mxu0 0.0
    %367 = vmatmul.mubr.f32.gmra.mrb[0].mxu0 %v168
    %v368 = vpop.f32.mrb[0].mxu0
    %v369 = vadd.f32 %v110, %v368
    %v370 = vpop.f32.mrb[0].mxu0
    %v371 = vadd.f32 %v114, %v370
    %372 = vmatprep.mubr.f32.mxu0 0.0
    %373 = vmatmul.mubr.f32.gmra.mrb[0].mxu0 %v171
    %v374 = vpop.f32.mrb[0].mxu0
    %v375 = vadd.f32 %v110, %v374
    %v376 = vpop.f32.mrb[0].mxu0
    %v377 = vadd.f32 %v114, %v376
    %378 = vmatprep.mubr.f32.mxu0 0.0
    %379 = vmatmul.mubr.f32.gmra.mrb[0].mxu0 %v174
    %v380 = vpop.f32.mrb[0].mxu0
    %v381 = vadd.f32 %v110, %v380
    %v382 = vpop.f32.mrb[0].mxu0
    %v383 = vadd.f32 %v114, %v382
    %384 = vmatprep.mubr.f32.mxu0 0.0
    %385 = vmatmul.mubr.f32.gmra.mrb[0].mxu0 %v177
    %v386 = vpop.f32.mrb[0].mxu0
    %v387 = vadd.f32 %v110, %v386
    %v388 = vpop.f32.mrb[0].mxu0
    %v389 = vadd.f32 %v114, %v388
    %390 = vmatprep.mubr.f32.mxu0 0.0
    %391 = vmatmul.mubr.f32.gmra.mrb[0].mxu0 %v180
    %v392 = vpop.f32.mrb[0].mxu0
    %v393 = vadd.f32 %v110, %v392
    %v394 = vpop.f32.mrb[0].mxu0
    %v395 = vadd.f32 %v114, %v394
    %396 = vmatprep.mubr.f32.mxu0 0.0
    %397 = vmatmul.mubr.f32.gmra.mrb[0].mxu0 %v183
    %v398 = vpop.f32.mrb[0].mxu0
    %v399 = vadd.f32 %v110, %v398
    %v400 = vpop.f32.mrb[0].mxu0
    %v401 = vadd.f32 %v114, %v400
    %402 = vmatprep.mubr.f32.mxu0 0.0
    %403 = vmatmul.mubr.f32.gmra.mrb[0].mxu0 %v186
    %v404 = vpop.f32.mrb[0].mxu0
    %v405 = vadd.f32 %v110, %v404
    %v406 = vpop.f32.mrb[0].mxu0
    %v407 = vadd.f32 %v114, %v406
    %408 = vmatprep.mubr.f32.mxu0 0.0
    %409 = vmatmul.mubr.f32.gmra.mrb[0].mxu0 %v189
    %v410 = vpop.f32.mrb[0].mxu0
    %v411 = vadd.f32 %v110, %v410
    %v412 = vpop.f32.mrb[0].mxu0
    %v413 = vadd.f32 %v114, %v412
    %414 = vmatprep.mubr.f32.mxu0 0.0
    %415 = vmatmul.mubr.f32.gmra.mrb[0].mxu0 %v192
    %v416 = vpop.f32.mrb[0].mxu0
    %v417 = vadd.f32 %v110, %v416
    %v418 = vpop.f32.mrb[0].mxu0
    %v419 = vadd.f32 %v114, %v418
    %420 = vmatprep.mubr.f32.mxu0 0.0
    %421 = vmatmul.mubr.f32.gmra.mrb[0].mxu0 %v195
    %v422 = vpop.f32.mrb[0].mxu0
    %v423 = vadd.f32 %v110, %v422
    %v424 = vpop.f32.mrb[0].mxu0
    %v425 = vadd.f32 %v114, %v424
    %426 = vmatprep.mubr.f32.mxu0 0.0
    %427 = vmatmul.mubr.f32.gmra.mrb[0].mxu0 %v198
    %v428 = vpop.f32.mrb[0].mxu0
    %v429 = vadd.f32 %v110, %v428
    %v430 = vpop.f32.mrb[0].mxu0
    %v431 = vadd.f32 %v114, %v430
    %432 = vmatprep.mubr.f32.mxu0 0.0
    %433 = vmatmul.mubr.f32.gmra.mrb[0].mxu0 %v201
    %v434 = vpop.f32.mrb[0].mxu0
    %v435 = vadd.f32 %v110, %v434
    %v436 = vpop.f32.mrb[0].mxu0
    %v437 = vadd.f32 %v114, %v436
    %438 = vmatprep.mubr.f32.mxu0 0.0
    %439 = vmatmul.mubr.f32.gmra.mrb[0].mxu0 %v204
    %v440 = vpop.f32.mrb[0].mxu0
    %v441 = vadd.f32 %v110, %v440
    %v442 = vpop.f32.mrb[0].mxu0
    %v443 = vadd.f32 %v114, %v442
    %444 = vmatprep.mubr.f32.mxu0 0.0
    %445 = vmatmul.mubr.f32.gmra.mrb[0].mxu0 %v207
    %v446 = vpop.f32.mrb[0].mxu0
    %v447 = vadd.f32 %v110, %v446
    %v448 = vpop.f32.mrb[0].mxu0
    %v449 = vadd.f32 %v114, %v448
    %450 = vmatprep.mubr.f32.mxu0 0.0
    %451 = vmatmul.mubr.f32.gmra.mrb[0].mxu0 %v210
    %v452 = vpop.f32.mrb[0].mxu0
    %v453 = vadd.f32 %v110, %v452
    %v454 = vpop.f32.mrb[0].mxu0
    %v455 = vadd.f32 %v114, %v454
    %456 = vmatprep.mubr.f32.mxu0 0.0
    %457 = vmatmul.mubr.f32.gmra.mrb[0].mxu0 %v213
    %v458 = vpop.f32.mrb[0].mxu0
    %v459 = vadd.f32 %v110, %v458
    %v460 = vpop.f32.mrb[0].mxu0
    %v461 = vadd.f32 %v114, %v460
    %462 = vmatprep.mubr.f32.mxu0 0.0
    %463 = vmatmul.mubr.f32.gmra.mrb[0].mxu0 %v216
    %v464 = vpop.f32.mrb[0].mxu0
    %v465 = vadd.f32 %v110, %v464
    %v466 = vpop.f32.mrb[0].mxu0
    %v467 = vadd.f32 %v114, %v466
    %468 = vmatprep.mubr.f32.mxu0 0.0
    %469 = vmatmul.mubr.f32.gmra.mrb[0].mxu0 %v219
    %v470 = vpop.f32.mrb[0].mxu0
    %v471 = vadd.f32 %v110, %v470
    %v472 = vpop.f32.mrb[0].mxu0
    %v473 = vadd.f32 %v114, %v472
    %474 = vmatprep.mubr.f32.mxu0 0.0
    %475 = vmatmul.mubr.f32.gmra.mrb[0].mxu0 %v222
    %v476 = vpop.f32.mrb[0].mxu0
    %v477 = vadd.f32 %v110, %v476
    %v478 = vpop.f32.mrb[0].mxu0
    %v479 = vadd.f32 %v114, %v478
    %480 = vdwg.mxu0
    %481 = vmatprep.subr.mxu0 %v92
    %482 = vmatpush1.msra.mxu0 %v91
    %483 = vmatprep.subr.mxu0 %v96
    %484 = vmatpush1.msra.mxu0 %v95
    %485 = vmatprep.subr.mxu0 %v100
    %486 = vmatpush1.msra.mxu0 %v99
    %487 = vmatprep.subr.mxu0 %v104
    %488 = vmatpush1.msra.mxu0 %v103
    %489 = vmatprep.subr.mxu0 0.0
    %490 = vmatpush1.msra.mxu0 0.0
    %491 = vmatprep.subr.mxu0 0.0
    %492 = vmatpush1.msra.mxu0 0.0
    %493 = vmatprep.subr.mxu0 0.0
    %494 = vmatpush1.msra.mxu0 0.0
    %495 = vmatprep.subr.mxu0 0.0
    %496 = vmatpush1.msra.mxu0 0.0
    %497 = vmatprep.subr.mxu0 0.0
    %498 = vmatpush1.msra.mxu0 0.0
    %499 = vmatprep.subr.mxu0 0.0
    %500 = vmatpush1.msra.mxu0 0.0
    %501 = vmatprep.subr.mxu0 0.0
    %502 = vmatpush1.msra.mxu0 0.0
    %503 = vmatprep.subr.mxu0 0.0
    %504 = vmatpush1.msra.mxu0 0.0
    %505 = vmatprep.subr.mxu0 0.0
    %506 = vmatpush1.msra.mxu0 0.0
    %507 = vmatprep.subr.mxu0 0.0
    %508 = vmatpush1.msra.mxu0 0.0
    %509 = vmatprep.subr.mxu0 0.0
    %510 = vmatpush1.msra.mxu0 0.0
    %511 = vmatprep.subr.mxu0 0.0
    %512 = vmatpush1.msra.mxu0 0.0
    %513 = vmatprep.subr.mxu0 0.0
    %514 = vmatpush1.msra.mxu0 0.0
    %515 = vmatprep.subr.mxu0 0.0
    %516 = vmatpush1.msra.mxu0 0.0
    %517 = vmatprep.subr.mxu0 0.0
    %518 = vmatpush1.msra.mxu0 0.0
    %519 = vmatprep.subr.mxu0 0.0
    %520 = vmatpush1.msra.mxu0 0.0
    %521 = vmatprep.subr.mxu0 0.0
    %522 = vmatpush1.msra.mxu0 0.0
    %523 = vmatprep.subr.mxu0 0.0
    %524 = vmatpush1.msra.mxu0 0.0
    %525 = vmatprep.subr.mxu0 0.0
    %526 = vmatpush1.msra.mxu0 0.0
    %527 = vmatprep.subr.mxu0 0.0
    %528 = vmatpush1.msra.mxu0 0.0
    %529 = vmatprep.subr.mxu0 0.0
    %530 = vmatpush1.msra.mxu0 0.0
    %531 = vmatprep.subr.mxu0 0.0
    %532 = vmatpush1.msra.mxu0 0.0
    %533 = vmatprep.subr.mxu0 0.0
    %534 = vmatpush1.msra.mxu0 0.0
    %535 = vmatprep.subr.mxu0 0.0
    %536 = vmatpush1.msra.mxu0 0.0
    %537 = vmatprep.subr.mxu0 0.0
    %538 = vmatpush1.msra.mxu0 0.0
    %539 = vmatprep.subr.mxu0 0.0
    %540 = vmatpush1.msra.mxu0 0.0
    %541 = vmatprep.subr.mxu0 0.0
    %542 = vmatpush1.msra.mxu0 0.0
    %543 = vmatprep.subr.mxu0 0.0
    %544 = vmatpush1.msra.mxu0 0.0
    %545 = vmatprep.mubr.f32.mxu0 0.0
    %546 = vmatmul.mubr.f32.gmra.mrb[0].mxu0 %v129
    %v547 = vpop.f32.mrb[0].mxu0
    %v548 = vadd.f32 %v118, %v547
    %v549 = vpop.f32.mrb[0].mxu0
    %v550 = vadd.f32 %v122, %v549
    %551 = vmatprep.mubr.f32.mxu0 0.0
    %552 = vmatmul.mubr.f32.gmra.mrb[0].mxu0 %v132
    %v553 = vpop.f32.mrb[0].mxu0
    %v554 = vadd.f32 %v118, %v553
    %v555 = vpop.f32.mrb[0].mxu0
    %v556 = vadd.f32 %v122, %v555
    %557 = vmatprep.mubr.f32.mxu0 0.0
    %558 = vmatmul.mubr.f32.gmra.mrb[0].mxu0 %v135
    %v559 = vpop.f32.mrb[0].mxu0
    %v560 = vadd.f32 %v118, %v559
    %v561 = vpop.f32.mrb[0].mxu0
    %v562 = vadd.f32 %v122, %v561
    %563 = vmatprep.mubr.f32.mxu0 0.0
    %564 = vmatmul.mubr.f32.gmra.mrb[0].mxu0 %v138
    %v565 = vpop.f32.mrb[0].mxu0
    %v566 = vadd.f32 %v118, %v565
    %v567 = vpop.f32.mrb[0].mxu0
    %v568 = vadd.f32 %v122, %v567
    %569 = vmatprep.mubr.f32.mxu0 0.0
    %570 = vmatmul.mubr.f32.gmra.mrb[0].mxu0 %v141
    %v571 = vpop.f32.mrb[0].mxu0
    %v572 = vadd.f32 %v118, %v571
    %v573 = vpop.f32.mrb[0].mxu0
    %v574 = vadd.f32 %v122, %v573
    %575 = vmatprep.mubr.f32.mxu0 0.0
    %576 = vmatmul.mubr.f32.gmra.mrb[0].mxu0 %v144
    %v577 = vpop.f32.mrb[0].mxu0
    %v578 = vadd.f32 %v118, %v577
    %v579 = vpop.f32.mrb[0].mxu0
    %v580 = vadd.f32 %v122, %v579
    %581 = vmatprep.mubr.f32.mxu0 0.0
    %582 = vmatmul.mubr.f32.gmra.mrb[0].mxu0 %v147
    %v583 = vpop.f32.mrb[0].mxu0
    %v584 = vadd.f32 %v118, %v583
    %v585 = vpop.f32.mrb[0].mxu0
    %v586 = vadd.f32 %v122, %v585
    %587 = vmatprep.mubr.f32.mxu0 0.0
    %588 = vmatmul.mubr.f32.gmra.mrb[0].mxu0 %v150
    %v589 = vpop.f32.mrb[0].mxu0
    %v590 = vadd.f32 %v118, %v589
    %v591 = vpop.f32.mrb[0].mxu0
    %v592 = vadd.f32 %v122, %v591
    %593 = vmatprep.mubr.f32.mxu0 0.0
    %594 = vmatmul.mubr.f32.gmra.mrb[0].mxu0 %v153
    %v595 = vpop.f32.mrb[0].mxu0
    %v596 = vadd.f32 %v118, %v595
    %v597 = vpop.f32.mrb[0].mxu0
    %v598 = vadd.f32 %v122, %v597
    %599 = vmatprep.mubr.f32.mxu0 0.0
    %600 = vmatmul.mubr.f32.gmra.mrb[0].mxu0 %v156
    %v601 = vpop.f32.mrb[0].mxu0
    %v602 = vadd.f32 %v118, %v601
    %v603 = vpop.f32.mrb[0].mxu0
    %v604 = vadd.f32 %v122, %v603
    %605 = vmatprep.mubr.f32.mxu0 0.0
    %606 = vmatmul.mubr.f32.gmra.mrb[0].mxu0 %v159
    %v607 = vpop.f32.mrb[0].mxu0
    %v608 = vadd.f32 %v118, %v607
    %v609 = vpop.f32.mrb[0].mxu0
    %v610 = vadd.f32 %v122, %v609
    %611 = vmatprep.mubr.f32.mxu0 0.0
    %612 = vmatmul.mubr.f32.gmra.mrb[0].mxu0 %v162
    %v613 = vpop.f32.mrb[0].mxu0
    %v614 = vadd.f32 %v118, %v613
    %v615 = vpop.f32.mrb[0].mxu0
    %v616 = vadd.f32 %v122, %v615
    %617 = vmatprep.mubr.f32.mxu0 0.0
    %618 = vmatmul.mubr.f32.gmra.mrb[0].mxu0 %v165
    %v619 = vpop.f32.mrb[0].mxu0
    %v620 = vadd.f32 %v118, %v619
    %v621 = vpop.f32.mrb[0].mxu0
    %v622 = vadd.f32 %v122, %v621
    %623 = vmatprep.mubr.f32.mxu0 0.0
    %624 = vmatmul.mubr.f32.gmra.mrb[0].mxu0 %v168
    %v625 = vpop.f32.mrb[0].mxu0
    %v626 = vadd.f32 %v118, %v625
    %v627 = vpop.f32.mrb[0].mxu0
    %v628 = vadd.f32 %v122, %v627
    %629 = vmatprep.mubr.f32.mxu0 0.0
    %630 = vmatmul.mubr.f32.gmra.mrb[0].mxu0 %v171
    %v631 = vpop.f32.mrb[0].mxu0
    %v632 = vadd.f32 %v118, %v631
    %v633 = vpop.f32.mrb[0].mxu0
    %v634 = vadd.f32 %v122, %v633
    %635 = vmatprep.mubr.f32.mxu0 0.0
    %636 = vmatmul.mubr.f32.gmra.mrb[0].mxu0 %v174
    %v637 = vpop.f32.mrb[0].mxu0
    %v638 = vadd.f32 %v118, %v637
    %v639 = vpop.f32.mrb[0].mxu0
    %v640 = vadd.f32 %v122, %v639
    %641 = vmatprep.mubr.f32.mxu0 0.0
    %642 = vmatmul.mubr.f32.gmra.mrb[0].mxu0 %v177
    %v643 = vpop.f32.mrb[0].mxu0
    %v644 = vadd.f32 %v118, %v643
    %v645 = vpop.f32.mrb[0].mxu0
    %v646 = vadd.f32 %v122, %v645
    %647 = vmatprep.mubr.f32.mxu0 0.0
    %648 = vmatmul.mubr.f32.gmra.mrb[0].mxu0 %v180
    %v649 = vpop.f32.mrb[0].mxu0
    %v650 = vadd.f32 %v118, %v649
    %v651 = vpop.f32.mrb[0].mxu0
    %v652 = vadd.f32 %v122, %v651
    %653 = vmatprep.mubr.f32.mxu0 0.0
    %654 = vmatmul.mubr.f32.gmra.mrb[0].mxu0 %v183
    %v655 = vpop.f32.mrb[0].mxu0
    %v656 = vadd.f32 %v118, %v655
    %v657 = vpop.f32.mrb[0].mxu0
    %v658 = vadd.f32 %v122, %v657
    %659 = vmatprep.mubr.f32.mxu0 0.0
    %660 = vmatmul.mubr.f32.gmra.mrb[0].mxu0 %v186
    %v661 = vpop.f32.mrb[0].mxu0
    %v662 = vadd.f32 %v118, %v661
    %v663 = vpop.f32.mrb[0].mxu0
    %v664 = vadd.f32 %v122, %v663
    %665 = vmatprep.mubr.f32.mxu0 0.0
    %666 = vmatmul.mubr.f32.gmra.mrb[0].mxu0 %v189
    %v667 = vpop.f32.mrb[0].mxu0
    %v668 = vadd.f32 %v118, %v667
    %v669 = vpop.f32.mrb[0].mxu0
    %v670 = vadd.f32 %v122, %v669
    %671 = vmatprep.mubr.f32.mxu0 0.0
    %672 = vmatmul.mubr.f32.gmra.mrb[0].mxu0 %v192
    %v673 = vpop.f32.mrb[0].mxu0
    %v674 = vadd.f32 %v118, %v673
    %v675 = vpop.f32.mrb[0].mxu0
    %v676 = vadd.f32 %v122, %v675
    %677 = vmatprep.mubr.f32.mxu0 0.0
    %678 = vmatmul.mubr.f32.gmra.mrb[0].mxu0 %v195
    %v679 = vpop.f32.mrb[0].mxu0
    %v680 = vadd.f32 %v118, %v679
    %v681 = vpop.f32.mrb[0].mxu0
    %v682 = vadd.f32 %v122, %v681
    %683 = vmatprep.mubr.f32.mxu0 0.0
    %684 = vmatmul.mubr.f32.gmra.mrb[0].mxu0 %v198
    %v685 = vpop.f32.mrb[0].mxu0
    %v686 = vadd.f32 %v118, %v685
    %v687 = vpop.f32.mrb[0].mxu0
    %v688 = vadd.f32 %v122, %v687
    %689 = vmatprep.mubr.f32.mxu0 0.0
    %690 = vmatmul.mubr.f32.gmra.mrb[0].mxu0 %v201
    %v691 = vpop.f32.mrb[0].mxu0
    %v692 = vadd.f32 %v118, %v691
    %v693 = vpop.f32.mrb[0].mxu0
    %v694 = vadd.f32 %v122, %v693
    %695 = vmatprep.mubr.f32.mxu0 0.0
    %696 = vmatmul.mubr.f32.gmra.mrb[0].mxu0 %v204
    %v697 = vpop.f32.mrb[0].mxu0
    %v698 = vadd.f32 %v118, %v697
    %v699 = vpop.f32.mrb[0].mxu0
    %v700 = vadd.f32 %v122, %v699
    %701 = vmatprep.mubr.f32.mxu0 0.0
    %702 = vmatmul.mubr.f32.gmra.mrb[0].mxu0 %v207
    %v703 = vpop.f32.mrb[0].mxu0
    %v704 = vadd.f32 %v118, %v703
    %v705 = vpop.f32.mrb[0].mxu0
    %v706 = vadd.f32 %v122, %v705
    %707 = vmatprep.mubr.f32.mxu0 0.0
    %708 = vmatmul.mubr.f32.gmra.mrb[0].mxu0 %v210
    %v709 = vpop.f32.mrb[0].mxu0
    %v710 = vadd.f32 %v118, %v709
    %v711 = vpop.f32.mrb[0].mxu0
    %v712 = vadd.f32 %v122, %v711
    %713 = vmatprep.mubr.f32.mxu0 0.0
    %714 = vmatmul.mubr.f32.gmra.mrb[0].mxu0 %v213
    %v715 = vpop.f32.mrb[0].mxu0
    %v716 = vadd.f32 %v118, %v715
    %v717 = vpop.f32.mrb[0].mxu0
    %v718 = vadd.f32 %v122, %v717
    %719 = vmatprep.mubr.f32.mxu0 0.0
    %720 = vmatmul.mubr.f32.gmra.mrb[0].mxu0 %v216
    %v721 = vpop.f32.mrb[0].mxu0
    %v722 = vadd.f32 %v118, %v721
    %v723 = vpop.f32.mrb[0].mxu0
    %v724 = vadd.f32 %v122, %v723
    %725 = vmatprep.mubr.f32.mxu0 0.0
    %726 = vmatmul.mubr.f32.gmra.mrb[0].mxu0 %v219
    %v727 = vpop.f32.mrb[0].mxu0
    %v728 = vadd.f32 %v118, %v727
    %v729 = vpop.f32.mrb[0].mxu0
    %v730 = vadd.f32 %v122, %v729
    %731 = vmatprep.mubr.f32.mxu0 0.0
    %732 = vmatmul.mubr.f32.gmra.mrb[0].mxu0 %v222
    %v733 = vpop.f32.mrb[0].mxu0
    %v734 = vadd.f32 %v118, %v733
    %v735 = vpop.f32.mrb[0].mxu0
    %v736 = vadd.f32 %v122, %v735
    %737 = vdwg.mxu0
    %v738 = vtanh.pop %v291
    %v739 = vtanh.pop %v293
    %v740 = vtanh.pop %v548
    %v741 = vtanh.pop %v550
    %v742 = vtanh.pop %v297
    %v743 = vtanh.pop %v299
    %v744 = vtanh.pop %v554
    %v745 = vtanh.pop %v556
    %v746 = vtanh.pop %v303
    %v747 = vtanh.pop %v305
    %v748 = vtanh.pop %v560
    %v749 = vtanh.pop %v562
    %v750 = vtanh.pop %v309
    %v751 = vtanh.pop %v311
    %v752 = vtanh.pop %v566
    %v753 = vtanh.pop %v568
    %v754 = vtanh.pop %v315
    %v755 = vtanh.pop %v317
    %v756 = vtanh.pop %v572
    %v757 = vtanh.pop %v574
    %v758 = vtanh.pop %v321
    %v759 = vtanh.pop %v323
    %v760 = vtanh.pop %v578
    %v761 = vtanh.pop %v580
    %v762 = vtanh.pop %v327
    %v763 = vtanh.pop %v329
    %v764 = vtanh.pop %v584
    %v765 = vtanh.pop %v586
    %v766 = vtanh.pop %v333
    %v767 = vtanh.pop %v335
    %v768 = vtanh.pop %v590
    %v769 = vtanh.pop %v592
    %v770 = vtanh.pop %v339
    %v771 = vtanh.pop %v341
    %v772 = vtanh.pop %v596
    %v773 = vtanh.pop %v598
    %v774 = vtanh.pop %v345
    %v775 = vtanh.pop %v347
    %v776 = vtanh.pop %v602
    %v777 = vtanh.pop %v604
    %v778 = vtanh.pop %v351
    %v779 = vtanh.pop %v353
    %v780 = vtanh.pop %v608
    %v781 = vtanh.pop %v610
    %v782 = vtanh.pop %v357
    %v783 = vtanh.pop %v359
    %v784 = vtanh.pop %v614
    %v785 = vtanh.pop %v616
    %v786 = vtanh.pop %v363
    %v787 = vtanh.pop %v365
    %v788 = vtanh.pop %v620
    %v789 = vtanh.pop %v622
    %v790 = vtanh.pop %v369
    %v791 = vtanh.pop %v371
    %v792 = vtanh.pop %v626
    %v793 = vtanh.pop %v628
    %v794 = vtanh.pop %v375
    %v795 = vtanh.pop %v377
    %v796 = vtanh.pop %v632
    %v797 = vtanh.pop %v634
    %v798 = vtanh.pop %v381
    %v799 = vtanh.pop %v383
    %v800 = vtanh.pop %v638
    %v801 = vtanh.pop %v640
    %v802 = vtanh.pop %v387
    %v803 = vtanh.pop %v389
    %v804 = vtanh.pop %v644
    %v805 = vtanh.pop %v646
    %v806 = vtanh.pop %v393
    %v807 = vtanh.pop %v395
    %v808 = vtanh.pop %v650
    %v809 = vtanh.pop %v652
    %v810 = vtanh.pop %v399
    %v811 = vtanh.pop %v401
    %v812 = vtanh.pop %v656
    %v813 = vtanh.pop %v658
    %v814 = vtanh.pop %v405
    %v815 = vtanh.pop %v407
    %v816 = vtanh.pop %v662
    %v817 = vtanh.pop %v664
    %v818 = vtanh.pop %v411
    %v819 = vtanh.pop %v413
    %v820 = vtanh.pop %v668
    %v821 = vtanh.pop %v670
    %v822 = vtanh.pop %v417
    %v823 = vtanh.pop %v419
    %v824 = vtanh.pop %v674
    %v825 = vtanh.pop %v676
    %v826 = vtanh.pop %v423
    %v827 = vtanh.pop %v425
    %v828 = vtanh.pop %v680
    %v829 = vtanh.pop %v682
    %v830 = vtanh.pop %v429
    %v831 = vtanh.pop %v431
    %v832 = vtanh.pop %v686
    %v833 = vtanh.pop %v688
    %v834 = vtanh.pop %v435
    %v835 = vtanh.pop %v437
    %v836 = vtanh.pop %v692
    %v837 = vtanh.pop %v694
    %v838 = vtanh.pop %v441
    %v839 = vtanh.pop %v443
    %v840 = vtanh.pop %v698
    %v841 = vtanh.pop %v700
    %v842 = vtanh.pop %v447
    %v843 = vtanh.pop %v449
    %v844 = vtanh.pop %v704
    %v845 = vtanh.pop %v706
    %v846 = vtanh.pop %v453
    %v847 = vtanh.pop %v455
    %v848 = vtanh.pop %v710
    %v849 = vtanh.pop %v712
    %v850 = vtanh.pop %v459
    %v851 = vtanh.pop %v461
    %v852 = vtanh.pop %v716
    %v853 = vtanh.pop %v718
    %v854 = vtanh.pop %v465
    %v855 = vtanh.pop %v467
    %v856 = vtanh.pop %v722
    %v857 = vtanh.pop %v724
    %v858 = vtanh.pop %v471
    %v859 = vtanh.pop %v473
    %v860 = vtanh.pop %v728
    %v861 = vtanh.pop %v730
    %v862 = vtanh.pop %v477
    %v863 = vtanh.pop %v479
    %v864 = vtanh.pop %v734
    %v865 = vtanh.pop %v736
    %v866 = vld [vmem:[%s4] sm:$0xff]
    %v867 = vld [vmem:[%s4 + $0x8] sm:$0xff]
    %v868 = vld [vmem:[%s4 + $0x10] sm:$0xff]
    %v869 = vld [vmem:[%s4 + $0x18] sm:$0xff]
    %v870 = vld [vmem:[%s4 + $0x20] sm:$0xff]
    %v871 = vld [vmem:[%s4 + $0x28] sm:$0xff]
    %v872 = vld [vmem:[%s4 + $0x30] sm:$0xff]
    %v873 = vld [vmem:[%s4 + $0x38] sm:$0xff]
    %v874 = vld [vmem:[%s4 + $0x40] sm:$0xff]
    %v875 = vld [vmem:[%s4 + $0x48] sm:$0xff]
    %v876 = vld [vmem:[%s4 + $0x50] sm:$0xff]
    %v877 = vld [vmem:[%s4 + $0x58] sm:$0xff]
    %v878 = vld [vmem:[%s4 + $0x60] sm:$0xff]
    %v879 = vld [vmem:[%s4 + $0x68] sm:$0xff]
    %v880 = vld [vmem:[%s4 + $0x70] sm:$0xff]
    %v881 = vld [vmem:[%s4 + $0x78] sm:$0xff]
    %v882 = vld [vmem:[%s4 + $0x80] sm:$0xff]
    %v883 = vld [vmem:[%s4 + $0x88] sm:$0xff]
    %v884 = vld [vmem:[%s4 + $0x90] sm:$0xff]
    %v885 = vld [vmem:[%s4 + $0x98] sm:$0xff]
    %v886 = vld [vmem:[%s4 + $0xa0] sm:$0xff]
    %v887 = vld [vmem:[%s4 + $0xa8] sm:$0xff]
    %v888 = vld [vmem:[%s4 + $0xb0] sm:$0xff]
    %v889 = vld [vmem:[%s4 + $0xb8] sm:$0xff]
    %v890 = vld [vmem:[%s4 + $0xc0] sm:$0xff]
    %v891 = vld [vmem:[%s4 + $0xc8] sm:$0xff]
    %v892 = vld [vmem:[%s4 + $0xd0] sm:$0xff]
    %v893 = vld [vmem:[%s4 + $0xd8] sm:$0xff]
    %v894 = vld [vmem:[%s4 + $0xe0] sm:$0xff]
    %v895 = vld [vmem:[%s4 + $0xe8] sm:$0xff]
    %v896 = vld [vmem:[%s4 + $0xf0] sm:$0xff]
    %v897 = vld [vmem:[%s4 + $0xf8] sm:$0xff]
    %v898 = vld [vmem:[%s4 + $0x100] sm:$0xff]
    %v899 = vld [vmem:[%s4 + $0x108] sm:$0xff]
    %v900 = vld [vmem:[%s4 + $0x110] sm:$0xff]
    %v901 = vld [vmem:[%s4 + $0x118] sm:$0xff]
    %v902 = vld [vmem:[%s4 + $0x120] sm:$0xff]
    %v903 = vld [vmem:[%s4 + $0x128] sm:$0xff]
    %v904 = vld [vmem:[%s4 + $0x130] sm:$0xff]
    %v905 = vld [vmem:[%s4 + $0x138] sm:$0xff]
    %v906 = vld [vmem:[%s4 + $0x140] sm:$0xff]
    %v907 = vld [vmem:[%s4 + $0x148] sm:$0xff]
    %v908 = vld [vmem:[%s4 + $0x150] sm:$0xff]
    %v909 = vld [vmem:[%s4 + $0x158] sm:$0xff]
    %v910 = vld [vmem:[%s4 + $0x160] sm:$0xff]
    %v911 = vld [vmem:[%s4 + $0x168] sm:$0xff]
    %v912 = vld [vmem:[%s4 + $0x170] sm:$0xff]
    %v913 = vld [vmem:[%s4 + $0x178] sm:$0xff]
    %v914 = vld [vmem:[%s4 + $0x180] sm:$0xff]
    %v915 = vld [vmem:[%s4 + $0x188] sm:$0xff]
    %v916 = vld [vmem:[%s4 + $0x190] sm:$0xff]
    %v917 = vld [vmem:[%s4 + $0x198] sm:$0xff]
    %v918 = vld [vmem:[%s4 + $0x1a0] sm:$0xff]
    %v919 = vld [vmem:[%s4 + $0x1a8] sm:$0xff]
    %v920 = vld [vmem:[%s4 + $0x1b0] sm:$0xff]
    %v921 = vld [vmem:[%s4 + $0x1b8] sm:$0xff]
    %v922 = vld [vmem:[%s4 + $0x1c0] sm:$0xff]
    %v923 = vld [vmem:[%s4 + $0x1c8] sm:$0xff]
    %v924 = vld [vmem:[%s4 + $0x1d0] sm:$0xff]
    %v925 = vld [vmem:[%s4 + $0x1d8] sm:$0xff]
    %v926 = vld [vmem:[%s4 + $0x1e0] sm:$0xff]
    %v927 = vld [vmem:[%s4 + $0x1e8] sm:$0xff]
    %v928 = vld [vmem:[%s4 + $0x1f0] sm:$0xff]
    %v929 = vld [vmem:[%s4 + $0x1f8] sm:$0xff]
    %v930 = vld [vmem:[%s5] sm:$0x3]
    %v932 = vlaneseq
    %v933 = vshrl.u32 %v932, 7
    %v934 = vsub.s32 0, %v933
    %v935 = vrot.slane %v930, %v934
    %v936 = vlaneseq
    %v937 = vshrl.u32 %v936, 7
    %v938 = vsub.s32 1, %v937
    %v939 = vrot.slane %v930, %v938
    %942 = vmatprep.subr.mxu0 %v867
    %943 = vmatpush1.msra.mxu0 %v866
    %944 = vmatprep.subr.mxu0 %v869
    %945 = vmatpush1.msra.mxu0 %v868
    %946 = vmatprep.subr.mxu0 %v871
    %947 = vmatpush1.msra.mxu0 %v870
    %948 = vmatprep.subr.mxu0 %v873
    %949 = vmatpush1.msra.mxu0 %v872
    %950 = vmatprep.subr.mxu0 %v875
    %951 = vmatpush1.msra.mxu0 %v874
    %952 = vmatprep.subr.mxu0 %v877
    %953 = vmatpush1.msra.mxu0 %v876
    %954 = vmatprep.subr.mxu0 %v879
    %955 = vmatpush1.msra.mxu0 %v878
    %956 = vmatprep.subr.mxu0 %v881
    %957 = vmatpush1.msra.mxu0 %v880
    %958 = vmatprep.subr.mxu0 %v883
    %959 = vmatpush1.msra.mxu0 %v882
    %960 = vmatprep.subr.mxu0 %v885
    %961 = vmatpush1.msra.mxu0 %v884
    %962 = vmatprep.subr.mxu0 %v887
    %963 = vmatpush1.msra.mxu0 %v886
    %964 = vmatprep.subr.mxu0 %v889
    %965 = vmatpush1.msra.mxu0 %v888
    %966 = vmatprep.subr.mxu0 %v891
    %967 = vmatpush1.msra.mxu0 %v890
    %968 = vmatprep.subr.mxu0 %v893
    %969 = vmatpush1.msra.mxu0 %v892
    %970 = vmatprep.subr.mxu0 %v895
    %971 = vmatpush1.msra.mxu0 %v894
    %972 = vmatprep.subr.mxu0 %v897
    %973 = vmatpush1.msra.mxu0 %v896
    %974 = vmatprep.subr.mxu0 %v899
    %975 = vmatpush1.msra.mxu0 %v898
    %976 = vmatprep.subr.mxu0 %v901
    %977 = vmatpush1.msra.mxu0 %v900
    %978 = vmatprep.subr.mxu0 %v903
    %979 = vmatpush1.msra.mxu0 %v902
    %980 = vmatprep.subr.mxu0 %v905
    %981 = vmatpush1.msra.mxu0 %v904
    %982 = vmatprep.subr.mxu0 %v907
    %983 = vmatpush1.msra.mxu0 %v906
    %984 = vmatprep.subr.mxu0 %v909
    %985 = vmatpush1.msra.mxu0 %v908
    %986 = vmatprep.subr.mxu0 %v911
    %987 = vmatpush1.msra.mxu0 %v910
    %988 = vmatprep.subr.mxu0 %v913
    %989 = vmatpush1.msra.mxu0 %v912
    %990 = vmatprep.subr.mxu0 %v915
    %991 = vmatpush1.msra.mxu0 %v914
    %992 = vmatprep.subr.mxu0 %v917
    %993 = vmatpush1.msra.mxu0 %v916
    %994 = vmatprep.subr.mxu0 %v919
    %995 = vmatpush1.msra.mxu0 %v918
    %996 = vmatprep.subr.mxu0 %v921
    %997 = vmatpush1.msra.mxu0 %v920
    %998 = vmatprep.subr.mxu0 %v923
    %999 = vmatpush1.msra.mxu0 %v922
    %1000 = vmatprep.subr.mxu0 %v925
    %1001 = vmatpush1.msra.mxu0 %v924
    %1002 = vmatprep.subr.mxu0 %v927
    %1003 = vmatpush1.msra.mxu0 %v926
    %1004 = vmatprep.subr.mxu0 %v929
    %1005 = vmatpush1.msra.mxu0 %v928
    %1006 = vmatprep.mubr.f32.mxu0 %v739
    %1007 = vmatmul.mubr.f32.gmra.mrb[0].mxu0 %v738
    %v1008 = vpop.f32.mrb[0].mxu0
    %v1009 = vadd.f32 %v935, %v1008
    %v1010 = vpop.f32.mrb[0].mxu0
    %v1011 = vadd.f32 %v939, %v1010
    %1012 = vmatprep.mubr.f32.mxu0 %v743
    %1013 = vmatmul.mubr.f32.gmra.mrb[0].mxu0 %v742
    %v1014 = vpop.f32.mrb[0].mxu0
    %v1015 = vadd.f32 %v935, %v1014
    %v1016 = vpop.f32.mrb[0].mxu0
    %v1017 = vadd.f32 %v939, %v1016
    %1018 = vmatprep.mubr.f32.mxu0 %v747
    %1019 = vmatmul.mubr.f32.gmra.mrb[0].mxu0 %v746
    %v1020 = vpop.f32.mrb[0].mxu0
    %v1021 = vadd.f32 %v935, %v1020
    %v1022 = vpop.f32.mrb[0].mxu0
    %v1023 = vadd.f32 %v939, %v1022
    %1024 = vmatprep.mubr.f32.mxu0 %v751
    %1025 = vmatmul.mubr.f32.gmra.mrb[0].mxu0 %v750
    %v1026 = vpop.f32.mrb[0].mxu0
    %v1027 = vadd.f32 %v935, %v1026
    %v1028 = vpop.f32.mrb[0].mxu0
    %v1029 = vadd.f32 %v939, %v1028
    %1030 = vmatprep.mubr.f32.mxu0 %v755
    %1031 = vmatmul.mubr.f32.gmra.mrb[0].mxu0 %v754
    %v1032 = vpop.f32.mrb[0].mxu0
    %v1033 = vadd.f32 %v935, %v1032
    %v1034 = vpop.f32.mrb[0].mxu0
    %v1035 = vadd.f32 %v939, %v1034
    %1036 = vmatprep.mubr.f32.mxu0 %v759
    %1037 = vmatmul.mubr.f32.gmra.mrb[0].mxu0 %v758
    %v1038 = vpop.f32.mrb[0].mxu0
    %v1039 = vadd.f32 %v935, %v1038
    %v1040 = vpop.f32.mrb[0].mxu0
    %v1041 = vadd.f32 %v939, %v1040
    %1042 = vmatprep.mubr.f32.mxu0 %v763
    %1043 = vmatmul.mubr.f32.gmra.mrb[0].mxu0 %v762
    %v1044 = vpop.f32.mrb[0].mxu0
    %v1045 = vadd.f32 %v935, %v1044
    %v1046 = vpop.f32.mrb[0].mxu0
    %v1047 = vadd.f32 %v939, %v1046
    %1048 = vmatprep.mubr.f32.mxu0 %v767
    %1049 = vmatmul.mubr.f32.gmra.mrb[0].mxu0 %v766
    %v1050 = vpop.f32.mrb[0].mxu0
    %v1051 = vadd.f32 %v935, %v1050
    %v1052 = vpop.f32.mrb[0].mxu0
    %v1053 = vadd.f32 %v939, %v1052
    %1054 = vmatprep.mubr.f32.mxu0 %v771
    %1055 = vmatmul.mubr.f32.gmra.mrb[0].mxu0 %v770
    %v1056 = vpop.f32.mrb[0].mxu0
    %v1057 = vadd.f32 %v935, %v1056
    %v1058 = vpop.f32.mrb[0].mxu0
    %v1059 = vadd.f32 %v939, %v1058
    %1060 = vmatprep.mubr.f32.mxu0 %v775
    %1061 = vmatmul.mubr.f32.gmra.mrb[0].mxu0 %v774
    %v1062 = vpop.f32.mrb[0].mxu0
    %v1063 = vadd.f32 %v935, %v1062
    %v1064 = vpop.f32.mrb[0].mxu0
    %v1065 = vadd.f32 %v939, %v1064
    %1066 = vmatprep.mubr.f32.mxu0 %v779
    %1067 = vmatmul.mubr.f32.gmra.mrb[0].mxu0 %v778
    %v1068 = vpop.f32.mrb[0].mxu0
    %v1069 = vadd.f32 %v935, %v1068
    %v1070 = vpop.f32.mrb[0].mxu0
    %v1071 = vadd.f32 %v939, %v1070
    %1072 = vmatprep.mubr.f32.mxu0 %v783
    %1073 = vmatmul.mubr.f32.gmra.mrb[0].mxu0 %v782
    %v1074 = vpop.f32.mrb[0].mxu0
    %v1075 = vadd.f32 %v935, %v1074
    %v1076 = vpop.f32.mrb[0].mxu0
    %v1077 = vadd.f32 %v939, %v1076
    %1078 = vmatprep.mubr.f32.mxu0 %v787
    %1079 = vmatmul.mubr.f32.gmra.mrb[0].mxu0 %v786
    %v1080 = vpop.f32.mrb[0].mxu0
    %v1081 = vadd.f32 %v935, %v1080
    %v1082 = vpop.f32.mrb[0].mxu0
    %v1083 = vadd.f32 %v939, %v1082
    %1084 = vmatprep.mubr.f32.mxu0 %v791
    %1085 = vmatmul.mubr.f32.gmra.mrb[0].mxu0 %v790
    %v1086 = vpop.f32.mrb[0].mxu0
    %v1087 = vadd.f32 %v935, %v1086
    %v1088 = vpop.f32.mrb[0].mxu0
    %v1089 = vadd.f32 %v939, %v1088
    %1090 = vmatprep.mubr.f32.mxu0 %v795
    %1091 = vmatmul.mubr.f32.gmra.mrb[0].mxu0 %v794
    %v1092 = vpop.f32.mrb[0].mxu0
    %v1093 = vadd.f32 %v935, %v1092
    %v1094 = vpop.f32.mrb[0].mxu0
    %v1095 = vadd.f32 %v939, %v1094
    %1096 = vmatprep.mubr.f32.mxu0 %v799
    %1097 = vmatmul.mubr.f32.gmra.mrb[0].mxu0 %v798
    %v1098 = vpop.f32.mrb[0].mxu0
    %v1099 = vadd.f32 %v935, %v1098
    %v1100 = vpop.f32.mrb[0].mxu0
    %v1101 = vadd.f32 %v939, %v1100
    %1102 = vmatprep.mubr.f32.mxu0 %v803
    %1103 = vmatmul.mubr.f32.gmra.mrb[0].mxu0 %v802
    %v1104 = vpop.f32.mrb[0].mxu0
    %v1105 = vadd.f32 %v935, %v1104
    %v1106 = vpop.f32.mrb[0].mxu0
    %v1107 = vadd.f32 %v939, %v1106
    %1108 = vmatprep.mubr.f32.mxu0 %v807
    %1109 = vmatmul.mubr.f32.gmra.mrb[0].mxu0 %v806
    %v1110 = vpop.f32.mrb[0].mxu0
    %v1111 = vadd.f32 %v935, %v1110
    %v1112 = vpop.f32.mrb[0].mxu0
    %v1113 = vadd.f32 %v939, %v1112
    %1114 = vmatprep.mubr.f32.mxu0 %v811
    %1115 = vmatmul.mubr.f32.gmra.mrb[0].mxu0 %v810
    %v1116 = vpop.f32.mrb[0].mxu0
    %v1117 = vadd.f32 %v935, %v1116
    %v1118 = vpop.f32.mrb[0].mxu0
    %v1119 = vadd.f32 %v939, %v1118
    %1120 = vmatprep.mubr.f32.mxu0 %v815
    %1121 = vmatmul.mubr.f32.gmra.mrb[0].mxu0 %v814
    %v1122 = vpop.f32.mrb[0].mxu0
    %v1123 = vadd.f32 %v935, %v1122
    %v1124 = vpop.f32.mrb[0].mxu0
    %v1125 = vadd.f32 %v939, %v1124
    %1126 = vmatprep.mubr.f32.mxu0 %v819
    %1127 = vmatmul.mubr.f32.gmra.mrb[0].mxu0 %v818
    %v1128 = vpop.f32.mrb[0].mxu0
    %v1129 = vadd.f32 %v935, %v1128
    %v1130 = vpop.f32.mrb[0].mxu0
    %v1131 = vadd.f32 %v939, %v1130
    %1132 = vmatprep.mubr.f32.mxu0 %v823
    %1133 = vmatmul.mubr.f32.gmra.mrb[0].mxu0 %v822
    %v1134 = vpop.f32.mrb[0].mxu0
    %v1135 = vadd.f32 %v935, %v1134
    %v1136 = vpop.f32.mrb[0].mxu0
    %v1137 = vadd.f32 %v939, %v1136
    %1138 = vmatprep.mubr.f32.mxu0 %v827
    %1139 = vmatmul.mubr.f32.gmra.mrb[0].mxu0 %v826
    %v1140 = vpop.f32.mrb[0].mxu0
    %v1141 = vadd.f32 %v935, %v1140
    %v1142 = vpop.f32.mrb[0].mxu0
    %v1143 = vadd.f32 %v939, %v1142
    %1144 = vmatprep.mubr.f32.mxu0 %v831
    %1145 = vmatmul.mubr.f32.gmra.mrb[0].mxu0 %v830
    %v1146 = vpop.f32.mrb[0].mxu0
    %v1147 = vadd.f32 %v935, %v1146
    %v1148 = vpop.f32.mrb[0].mxu0
    %v1149 = vadd.f32 %v939, %v1148
    %1150 = vmatprep.mubr.f32.mxu0 %v835
    %1151 = vmatmul.mubr.f32.gmra.mrb[0].mxu0 %v834
    %v1152 = vpop.f32.mrb[0].mxu0
    %v1153 = vadd.f32 %v935, %v1152
    %v1154 = vpop.f32.mrb[0].mxu0
    %v1155 = vadd.f32 %v939, %v1154
    %1156 = vmatprep.mubr.f32.mxu0 %v839
    %1157 = vmatmul.mubr.f32.gmra.mrb[0].mxu0 %v838
    %v1158 = vpop.f32.mrb[0].mxu0
    %v1159 = vadd.f32 %v935, %v1158
    %v1160 = vpop.f32.mrb[0].mxu0
    %v1161 = vadd.f32 %v939, %v1160
    %1162 = vmatprep.mubr.f32.mxu0 %v843
    %1163 = vmatmul.mubr.f32.gmra.mrb[0].mxu0 %v842
    %v1164 = vpop.f32.mrb[0].mxu0
    %v1165 = vadd.f32 %v935, %v1164
    %v1166 = vpop.f32.mrb[0].mxu0
    %v1167 = vadd.f32 %v939, %v1166
    %1168 = vmatprep.mubr.f32.mxu0 %v847
    %1169 = vmatmul.mubr.f32.gmra.mrb[0].mxu0 %v846
    %v1170 = vpop.f32.mrb[0].mxu0
    %v1171 = vadd.f32 %v935, %v1170
    %v1172 = vpop.f32.mrb[0].mxu0
    %v1173 = vadd.f32 %v939, %v1172
    %1174 = vmatprep.mubr.f32.mxu0 %v851
    %1175 = vmatmul.mubr.f32.gmra.mrb[0].mxu0 %v850
    %v1176 = vpop.f32.mrb[0].mxu0
    %v1177 = vadd.f32 %v935, %v1176
    %v1178 = vpop.f32.mrb[0].mxu0
    %v1179 = vadd.f32 %v939, %v1178
    %1180 = vmatprep.mubr.f32.mxu0 %v855
    %1181 = vmatmul.mubr.f32.gmra.mrb[0].mxu0 %v854
    %v1182 = vpop.f32.mrb[0].mxu0
    %v1183 = vadd.f32 %v935, %v1182
    %v1184 = vpop.f32.mrb[0].mxu0
    %v1185 = vadd.f32 %v939, %v1184
    %1186 = vmatprep.mubr.f32.mxu0 %v859
    %1187 = vmatmul.mubr.f32.gmra.mrb[0].mxu0 %v858
    %v1188 = vpop.f32.mrb[0].mxu0
    %v1189 = vadd.f32 %v935, %v1188
    %v1190 = vpop.f32.mrb[0].mxu0
    %v1191 = vadd.f32 %v939, %v1190
    %1192 = vmatprep.mubr.f32.mxu0 %v863
    %1193 = vmatmul.mubr.f32.gmra.mrb[0].mxu0 %v862
    %v1194 = vpop.f32.mrb[0].mxu0
    %v1195 = vadd.f32 %v935, %v1194
    %v1196 = vpop.f32.mrb[0].mxu0
    %v1197 = vadd.f32 %v939, %v1196
    %1198 = vdwg.mxu0
    %v1199 = vtanh.pop %v1009
    %v1200 = vtanh.pop %v1011
    %v1201 = vtanh.pop %v1015
    %v1202 = vtanh.pop %v1017
    %v1203 = vtanh.pop %v1021
    %v1204 = vtanh.pop %v1023
    %v1205 = vtanh.pop %v1027
    %v1206 = vtanh.pop %v1029
    %v1207 = vtanh.pop %v1033
    %v1208 = vtanh.pop %v1035
    %v1209 = vtanh.pop %v1039
    %v1210 = vtanh.pop %v1041
    %v1211 = vtanh.pop %v1045
    %v1212 = vtanh.pop %v1047
    %v1213 = vtanh.pop %v1051
    %v1214 = vtanh.pop %v1053
    %v1215 = vtanh.pop %v1057
    %v1216 = vtanh.pop %v1059
    %v1217 = vtanh.pop %v1063
    %v1218 = vtanh.pop %v1065
    %v1219 = vtanh.pop %v1069
    %v1220 = vtanh.pop %v1071
    %v1221 = vtanh.pop %v1075
    %v1222 = vtanh.pop %v1077
    %v1223 = vtanh.pop %v1081
    %v1224 = vtanh.pop %v1083
    %v1225 = vtanh.pop %v1087
    %v1226 = vtanh.pop %v1089
    %v1227 = vtanh.pop %v1093
    %v1228 = vtanh.pop %v1095
    %v1229 = vtanh.pop %v1099
    %v1230 = vtanh.pop %v1101
    %v1231 = vtanh.pop %v1105
    %v1232 = vtanh.pop %v1107
    %v1233 = vtanh.pop %v1111
    %v1234 = vtanh.pop %v1113
    %v1235 = vtanh.pop %v1117
    %v1236 = vtanh.pop %v1119
    %v1237 = vtanh.pop %v1123
    %v1238 = vtanh.pop %v1125
    %v1239 = vtanh.pop %v1129
    %v1240 = vtanh.pop %v1131
    %v1241 = vtanh.pop %v1135
    %v1242 = vtanh.pop %v1137
    %v1243 = vtanh.pop %v1141
    %v1244 = vtanh.pop %v1143
    %v1245 = vtanh.pop %v1147
    %v1246 = vtanh.pop %v1149
    %v1247 = vtanh.pop %v1153
    %v1248 = vtanh.pop %v1155
    %v1249 = vtanh.pop %v1159
    %v1250 = vtanh.pop %v1161
    %v1251 = vtanh.pop %v1165
    %v1252 = vtanh.pop %v1167
    %v1253 = vtanh.pop %v1171
    %v1254 = vtanh.pop %v1173
    %v1255 = vtanh.pop %v1177
    %v1256 = vtanh.pop %v1179
    %v1257 = vtanh.pop %v1183
    %v1258 = vtanh.pop %v1185
    %v1259 = vtanh.pop %v1189
    %v1260 = vtanh.pop %v1191
    %v1261 = vtanh.pop %v1195
    %v1262 = vtanh.pop %v1197
    %v1263 = vld [vmem:[%s6] sm:$0xff]
    %v1264 = vld [vmem:[%s6 + $0x8] sm:$0xff]
    %v1265 = vld [vmem:[%s6 + $0x10] sm:$0xff]
    %v1266 = vld [vmem:[%s6 + $0x18] sm:$0xff]
    %v1267 = vld [vmem:[%s6 + $0x20] sm:$0xff]
    %v1268 = vld [vmem:[%s6 + $0x28] sm:$0xff]
    %v1269 = vld [vmem:[%s6 + $0x30] sm:$0xff]
    %v1270 = vld [vmem:[%s6 + $0x38] sm:$0xff]
    %v1271 = vld [vmem:[%s6 + $0x40] sm:$0xff]
    %v1272 = vld [vmem:[%s6 + $0x48] sm:$0xff]
    %v1273 = vld [vmem:[%s6 + $0x50] sm:$0xff]
    %v1274 = vld [vmem:[%s6 + $0x58] sm:$0xff]
    %v1275 = vld [vmem:[%s6 + $0x60] sm:$0xff]
    %v1276 = vld [vmem:[%s6 + $0x68] sm:$0xff]
    %v1277 = vld [vmem:[%s6 + $0x70] sm:$0xff]
    %v1278 = vld [vmem:[%s6 + $0x78] sm:$0xff]
    %v1279 = vld [vmem:[%s6 + $0x80] sm:$0xff]
    %v1280 = vld [vmem:[%s6 + $0x88] sm:$0xff]
    %v1281 = vld [vmem:[%s6 + $0x90] sm:$0xff]
    %v1282 = vld [vmem:[%s6 + $0x98] sm:$0xff]
    %v1283 = vld [vmem:[%s6 + $0xa0] sm:$0xff]
    %v1284 = vld [vmem:[%s6 + $0xa8] sm:$0xff]
    %v1285 = vld [vmem:[%s6 + $0xb0] sm:$0xff]
    %v1286 = vld [vmem:[%s6 + $0xb8] sm:$0xff]
    %v1287 = vld [vmem:[%s6 + $0xc0] sm:$0xff]
    %v1288 = vld [vmem:[%s6 + $0xc8] sm:$0xff]
    %v1289 = vld [vmem:[%s6 + $0xd0] sm:$0xff]
    %v1290 = vld [vmem:[%s6 + $0xd8] sm:$0xff]
    %v1291 = vld [vmem:[%s6 + $0xe0] sm:$0xff]
    %v1292 = vld [vmem:[%s6 + $0xe8] sm:$0xff]
    %v1293 = vld [vmem:[%s6 + $0xf0] sm:$0xff]
    %v1294 = vld [vmem:[%s6 + $0xf8] sm:$0xff]
    %v1295 = vld [vmem:[%s7] sm:$0x1]
    %v1297 = vlaneseq
    %v1298 = vshrl.u32 %v1297, 7
    %v1299 = vsub.s32 0, %v1298
    %v1300 = vrot.slane %v1295, %v1299
    %1302 = vmatprep.subr.mxu0 0.0
    %1303 = vmatpush1.msra.mxu0 %v1263
    %1304 = vmatprep.subr.mxu0 0.0
    %1305 = vmatpush1.msra.mxu0 %v1264
    %1306 = vmatprep.subr.mxu0 0.0
    %1307 = vmatpush1.msra.mxu0 %v1265
    %1308 = vmatprep.subr.mxu0 0.0
    %1309 = vmatpush1.msra.mxu0 %v1266
    %1310 = vmatprep.subr.mxu0 0.0
    %1311 = vmatpush1.msra.mxu0 %v1267
    %1312 = vmatprep.subr.mxu0 0.0
    %1313 = vmatpush1.msra.mxu0 %v1268
    %1314 = vmatprep.subr.mxu0 0.0
    %1315 = vmatpush1.msra.mxu0 %v1269
    %1316 = vmatprep.subr.mxu0 0.0
    %1317 = vmatpush1.msra.mxu0 %v1270
    %1318 = vmatprep.subr.mxu0 0.0
    %1319 = vmatpush1.msra.mxu0 %v1271
    %1320 = vmatprep.subr.mxu0 0.0
    %1321 = vmatpush1.msra.mxu0 %v1272
    %1322 = vmatprep.subr.mxu0 0.0
    %1323 = vmatpush1.msra.mxu0 %v1273
    %1324 = vmatprep.subr.mxu0 0.0
    %1325 = vmatpush1.msra.mxu0 %v1274
    %1326 = vmatprep.subr.mxu0 0.0
    %1327 = vmatpush1.msra.mxu0 %v1275
    %1328 = vmatprep.subr.mxu0 0.0
    %1329 = vmatpush1.msra.mxu0 %v1276
    %1330 = vmatprep.subr.mxu0 0.0
    %1331 = vmatpush1.msra.mxu0 %v1277
    %1332 = vmatprep.subr.mxu0 0.0
    %1333 = vmatpush1.msra.mxu0 %v1278
    %1334 = vmatprep.subr.mxu0 0.0
    %1335 = vmatpush1.msra.mxu0 %v1279
    %1336 = vmatprep.subr.mxu0 0.0
    %1337 = vmatpush1.msra.mxu0 %v1280
    %1338 = vmatprep.subr.mxu0 0.0
    %1339 = vmatpush1.msra.mxu0 %v1281
    %1340 = vmatprep.subr.mxu0 0.0
    %1341 = vmatpush1.msra.mxu0 %v1282
    %1342 = vmatprep.subr.mxu0 0.0
    %1343 = vmatpush1.msra.mxu0 %v1283
    %1344 = vmatprep.subr.mxu0 0.0
    %1345 = vmatpush1.msra.mxu0 %v1284
    %1346 = vmatprep.subr.mxu0 0.0
    %1347 = vmatpush1.msra.mxu0 %v1285
    %1348 = vmatprep.subr.mxu0 0.0
    %1349 = vmatpush1.msra.mxu0 %v1286
    %1350 = vmatprep.subr.mxu0 0.0
    %1351 = vmatpush1.msra.mxu0 %v1287
    %1352 = vmatprep.subr.mxu0 0.0
    %1353 = vmatpush1.msra.mxu0 %v1288
    %1354 = vmatprep.subr.mxu0 0.0
    %1355 = vmatpush1.msra.mxu0 %v1289
    %1356 = vmatprep.subr.mxu0 0.0
    %1357 = vmatpush1.msra.mxu0 %v1290
    %1358 = vmatprep.subr.mxu0 0.0
    %1359 = vmatpush1.msra.mxu0 %v1291
    %1360 = vmatprep.subr.mxu0 0.0
    %1361 = vmatpush1.msra.mxu0 %v1292
    %1362 = vmatprep.subr.mxu0 0.0
    %1363 = vmatpush1.msra.mxu0 %v1293
    %1364 = vmatprep.subr.mxu0 0.0
    %1365 = vmatpush1.msra.mxu0 %v1294
    %1366 = vmatprep.mubr.f32.mxu0 %v1200
    %1367 = vmatmul.mubr.f32.gmra.mrb[0].mxu0 %v1199
    %v1368 = vpop.f32.mrb[0].mxu0
    %v1369 = vadd.f32 %v1300, %v1368
    %v1370 = vpop.f32.mrb[0].mxu0
    %1371 = vmatprep.mubr.f32.mxu0 %v1202
    %1372 = vmatmul.mubr.f32.gmra.mrb[0].mxu0 %v1201
    %v1373 = vpop.f32.mrb[0].mxu0
    %v1374 = vadd.f32 %v1300, %v1373
    %v1375 = vpop.f32.mrb[0].mxu0
    %1376 = vmatprep.mubr.f32.mxu0 %v1204
    %1377 = vmatmul.mubr.f32.gmra.mrb[0].mxu0 %v1203
    %v1378 = vpop.f32.mrb[0].mxu0
    %v1379 = vadd.f32 %v1300, %v1378
    %v1380 = vpop.f32.mrb[0].mxu0
    %1381 = vmatprep.mubr.f32.mxu0 %v1206
    %1382 = vmatmul.mubr.f32.gmra.mrb[0].mxu0 %v1205
    %v1383 = vpop.f32.mrb[0].mxu0
    %v1384 = vadd.f32 %v1300, %v1383
    %v1385 = vpop.f32.mrb[0].mxu0
    %1386 = vmatprep.mubr.f32.mxu0 %v1208
    %1387 = vmatmul.mubr.f32.gmra.mrb[0].mxu0 %v1207
    %v1388 = vpop.f32.mrb[0].mxu0
    %v1389 = vadd.f32 %v1300, %v1388
    %v1390 = vpop.f32.mrb[0].mxu0
    %1391 = vmatprep.mubr.f32.mxu0 %v1210
    %1392 = vmatmul.mubr.f32.gmra.mrb[0].mxu0 %v1209
    %v1393 = vpop.f32.mrb[0].mxu0
    %v1394 = vadd.f32 %v1300, %v1393
    %v1395 = vpop.f32.mrb[0].mxu0
    %1396 = vmatprep.mubr.f32.mxu0 %v1212
    %1397 = vmatmul.mubr.f32.gmra.mrb[0].mxu0 %v1211
    %v1398 = vpop.f32.mrb[0].mxu0
    %v1399 = vadd.f32 %v1300, %v1398
    %v1400 = vpop.f32.mrb[0].mxu0
    %1401 = vmatprep.mubr.f32.mxu0 %v1214
    %1402 = vmatmul.mubr.f32.gmra.mrb[0].mxu0 %v1213
    %v1403 = vpop.f32.mrb[0].mxu0
    %v1404 = vadd.f32 %v1300, %v1403
    %v1405 = vpop.f32.mrb[0].mxu0
    %1406 = vmatprep.mubr.f32.mxu0 %v1216
    %1407 = vmatmul.mubr.f32.gmra.mrb[0].mxu0 %v1215
    %v1408 = vpop.f32.mrb[0].mxu0
    %v1409 = vadd.f32 %v1300, %v1408
    %v1410 = vpop.f32.mrb[0].mxu0
    %1411 = vmatprep.mubr.f32.mxu0 %v1218
    %1412 = vmatmul.mubr.f32.gmra.mrb[0].mxu0 %v1217
    %v1413 = vpop.f32.mrb[0].mxu0
    %v1414 = vadd.f32 %v1300, %v1413
    %v1415 = vpop.f32.mrb[0].mxu0
    %1416 = vmatprep.mubr.f32.mxu0 %v1220
    %1417 = vmatmul.mubr.f32.gmra.mrb[0].mxu0 %v1219
    %v1418 = vpop.f32.mrb[0].mxu0
    %v1419 = vadd.f32 %v1300, %v1418
    %v1420 = vpop.f32.mrb[0].mxu0
    %1421 = vmatprep.mubr.f32.mxu0 %v1222
    %1422 = vmatmul.mubr.f32.gmra.mrb[0].mxu0 %v1221
    %v1423 = vpop.f32.mrb[0].mxu0
    %v1424 = vadd.f32 %v1300, %v1423
    %v1425 = vpop.f32.mrb[0].mxu0
    %1426 = vmatprep.mubr.f32.mxu0 %v1224
    %1427 = vmatmul.mubr.f32.gmra.mrb[0].mxu0 %v1223
    %v1428 = vpop.f32.mrb[0].mxu0
    %v1429 = vadd.f32 %v1300, %v1428
    %v1430 = vpop.f32.mrb[0].mxu0
    %1431 = vmatprep.mubr.f32.mxu0 %v1226
    %1432 = vmatmul.mubr.f32.gmra.mrb[0].mxu0 %v1225
    %v1433 = vpop.f32.mrb[0].mxu0
    %v1434 = vadd.f32 %v1300, %v1433
    %v1435 = vpop.f32.mrb[0].mxu0
    %1436 = vmatprep.mubr.f32.mxu0 %v1228
    %1437 = vmatmul.mubr.f32.gmra.mrb[0].mxu0 %v1227
    %v1438 = vpop.f32.mrb[0].mxu0
    %v1439 = vadd.f32 %v1300, %v1438
    %v1440 = vpop.f32.mrb[0].mxu0
    %1441 = vmatprep.mubr.f32.mxu0 %v1230
    %1442 = vmatmul.mubr.f32.gmra.mrb[0].mxu0 %v1229
    %v1443 = vpop.f32.mrb[0].mxu0
    %v1444 = vadd.f32 %v1300, %v1443
    %v1445 = vpop.f32.mrb[0].mxu0
    %1446 = vmatprep.mubr.f32.mxu0 %v1232
    %1447 = vmatmul.mubr.f32.gmra.mrb[0].mxu0 %v1231
    %v1448 = vpop.f32.mrb[0].mxu0
    %v1449 = vadd.f32 %v1300, %v1448
    %v1450 = vpop.f32.mrb[0].mxu0
    %1451 = vmatprep.mubr.f32.mxu0 %v1234
    %1452 = vmatmul.mubr.f32.gmra.mrb[0].mxu0 %v1233
    %v1453 = vpop.f32.mrb[0].mxu0
    %v1454 = vadd.f32 %v1300, %v1453
    %v1455 = vpop.f32.mrb[0].mxu0
    %1456 = vmatprep.mubr.f32.mxu0 %v1236
    %1457 = vmatmul.mubr.f32.gmra.mrb[0].mxu0 %v1235
    %v1458 = vpop.f32.mrb[0].mxu0
    %v1459 = vadd.f32 %v1300, %v1458
    %v1460 = vpop.f32.mrb[0].mxu0
    %1461 = vmatprep.mubr.f32.mxu0 %v1238
    %1462 = vmatmul.mubr.f32.gmra.mrb[0].mxu0 %v1237
    %v1463 = vpop.f32.mrb[0].mxu0
    %v1464 = vadd.f32 %v1300, %v1463
    %v1465 = vpop.f32.mrb[0].mxu0
    %1466 = vmatprep.mubr.f32.mxu0 %v1240
    %1467 = vmatmul.mubr.f32.gmra.mrb[0].mxu0 %v1239
    %v1468 = vpop.f32.mrb[0].mxu0
    %v1469 = vadd.f32 %v1300, %v1468
    %v1470 = vpop.f32.mrb[0].mxu0
    %1471 = vmatprep.mubr.f32.mxu0 %v1242
    %1472 = vmatmul.mubr.f32.gmra.mrb[0].mxu0 %v1241
    %v1473 = vpop.f32.mrb[0].mxu0
    %v1474 = vadd.f32 %v1300, %v1473
    %v1475 = vpop.f32.mrb[0].mxu0
    %1476 = vmatprep.mubr.f32.mxu0 %v1244
    %1477 = vmatmul.mubr.f32.gmra.mrb[0].mxu0 %v1243
    %v1478 = vpop.f32.mrb[0].mxu0
    %v1479 = vadd.f32 %v1300, %v1478
    %v1480 = vpop.f32.mrb[0].mxu0
    %1481 = vmatprep.mubr.f32.mxu0 %v1246
    %1482 = vmatmul.mubr.f32.gmra.mrb[0].mxu0 %v1245
    %v1483 = vpop.f32.mrb[0].mxu0
    %v1484 = vadd.f32 %v1300, %v1483
    %v1485 = vpop.f32.mrb[0].mxu0
    %1486 = vmatprep.mubr.f32.mxu0 %v1248
    %1487 = vmatmul.mubr.f32.gmra.mrb[0].mxu0 %v1247
    %v1488 = vpop.f32.mrb[0].mxu0
    %v1489 = vadd.f32 %v1300, %v1488
    %v1490 = vpop.f32.mrb[0].mxu0
    %1491 = vmatprep.mubr.f32.mxu0 %v1250
    %1492 = vmatmul.mubr.f32.gmra.mrb[0].mxu0 %v1249
    %v1493 = vpop.f32.mrb[0].mxu0
    %v1494 = vadd.f32 %v1300, %v1493
    %v1495 = vpop.f32.mrb[0].mxu0
    %1496 = vmatprep.mubr.f32.mxu0 %v1252
    %1497 = vmatmul.mubr.f32.gmra.mrb[0].mxu0 %v1251
    %v1498 = vpop.f32.mrb[0].mxu0
    %v1499 = vadd.f32 %v1300, %v1498
    %v1500 = vpop.f32.mrb[0].mxu0
    %1501 = vmatprep.mubr.f32.mxu0 %v1254
    %1502 = vmatmul.mubr.f32.gmra.mrb[0].mxu0 %v1253
    %v1503 = vpop.f32.mrb[0].mxu0
    %v1504 = vadd.f32 %v1300, %v1503
    %v1505 = vpop.f32.mrb[0].mxu0
    %1506 = vmatprep.mubr.f32.mxu0 %v1256
    %1507 = vmatmul.mubr.f32.gmra.mrb[0].mxu0 %v1255
    %v1508 = vpop.f32.mrb[0].mxu0
    %v1509 = vadd.f32 %v1300, %v1508
    %v1510 = vpop.f32.mrb[0].mxu0
    %1511 = vmatprep.mubr.f32.mxu0 %v1258
    %1512 = vmatmul.mubr.f32.gmra.mrb[0].mxu0 %v1257
    %v1513 = vpop.f32.mrb[0].mxu0
    %v1514 = vadd.f32 %v1300, %v1513
    %v1515 = vpop.f32.mrb[0].mxu0
    %1516 = vmatprep.mubr.f32.mxu0 %v1260
    %1517 = vmatmul.mubr.f32.gmra.mrb[0].mxu0 %v1259
    %v1518 = vpop.f32.mrb[0].mxu0
    %v1519 = vadd.f32 %v1300, %v1518
    %v1520 = vpop.f32.mrb[0].mxu0
    %1521 = vmatprep.mubr.f32.mxu0 %v1262
    %1522 = vmatmul.mubr.f32.gmra.mrb[0].mxu0 %v1261
    %v1523 = vpop.f32.mrb[0].mxu0
    %v1524 = vadd.f32 %v1300, %v1523
    %v1525 = vpop.f32.mrb[0].mxu0
    %1526 = vdwg.mxu0
    %vm1527 = vcmask 64512
    %v1528 = vsel %vm1527, %v1369, -inf
    %1529 = vmax.xlane.f32.xlu0 %v1528
    %v1530 = vpop.xlane.xlu0 %1529
    %v1531 = vsel %vm1527, %v1374, -inf
    %1532 = vmax.xlane.f32.xlu0 %v1531
    %v1533 = vpop.xlane.xlu0 %1532
    %v1534 = vsel %vm1527, %v1379, -inf
    %1535 = vmax.xlane.f32.xlu0 %v1534
    %v1536 = vpop.xlane.xlu0 %1535
    %v1537 = vsel %vm1527, %v1384, -inf
    %1538 = vmax.xlane.f32.xlu0 %v1537
    %v1539 = vpop.xlane.xlu0 %1538
    %v1540 = vsel %vm1527, %v1389, -inf
    %1541 = vmax.xlane.f32.xlu0 %v1540
    %v1542 = vpop.xlane.xlu0 %1541
    %v1543 = vsel %vm1527, %v1394, -inf
    %1544 = vmax.xlane.f32.xlu0 %v1543
    %v1545 = vpop.xlane.xlu0 %1544
    %v1546 = vsel %vm1527, %v1399, -inf
    %1547 = vmax.xlane.f32.xlu0 %v1546
    %v1548 = vpop.xlane.xlu0 %1547
    %v1549 = vsel %vm1527, %v1404, -inf
    %1550 = vmax.xlane.f32.xlu0 %v1549
    %v1551 = vpop.xlane.xlu0 %1550
    %v1552 = vsel %vm1527, %v1409, -inf
    %1553 = vmax.xlane.f32.xlu0 %v1552
    %v1554 = vpop.xlane.xlu0 %1553
    %v1555 = vsel %vm1527, %v1414, -inf
    %1556 = vmax.xlane.f32.xlu0 %v1555
    %v1557 = vpop.xlane.xlu0 %1556
    %v1558 = vsel %vm1527, %v1419, -inf
    %1559 = vmax.xlane.f32.xlu0 %v1558
    %v1560 = vpop.xlane.xlu0 %1559
    %v1561 = vsel %vm1527, %v1424, -inf
    %1562 = vmax.xlane.f32.xlu0 %v1561
    %v1563 = vpop.xlane.xlu0 %1562
    %v1564 = vsel %vm1527, %v1429, -inf
    %1565 = vmax.xlane.f32.xlu0 %v1564
    %v1566 = vpop.xlane.xlu0 %1565
    %v1567 = vsel %vm1527, %v1434, -inf
    %1568 = vmax.xlane.f32.xlu0 %v1567
    %v1569 = vpop.xlane.xlu0 %1568
    %v1570 = vsel %vm1527, %v1439, -inf
    %1571 = vmax.xlane.f32.xlu0 %v1570
    %v1572 = vpop.xlane.xlu0 %1571
    %v1573 = vsel %vm1527, %v1444, -inf
    %1574 = vmax.xlane.f32.xlu0 %v1573
    %v1575 = vpop.xlane.xlu0 %1574
    %v1576 = vsel %vm1527, %v1449, -inf
    %1577 = vmax.xlane.f32.xlu0 %v1576
    %v1578 = vpop.xlane.xlu0 %1577
    %v1579 = vsel %vm1527, %v1454, -inf
    %1580 = vmax.xlane.f32.xlu0 %v1579
    %v1581 = vpop.xlane.xlu0 %1580
    %v1582 = vsel %vm1527, %v1459, -inf
    %1583 = vmax.xlane.f32.xlu0 %v1582
    %v1584 = vpop.xlane.xlu0 %1583
    %v1585 = vsel %vm1527, %v1464, -inf
    %1586 = vmax.xlane.f32.xlu0 %v1585
    %v1587 = vpop.xlane.xlu0 %1586
    %v1588 = vsel %vm1527, %v1469, -inf
    %1589 = vmax.xlane.f32.xlu0 %v1588
    %v1590 = vpop.xlane.xlu0 %1589
    %v1591 = vsel %vm1527, %v1474, -inf
    %1592 = vmax.xlane.f32.xlu0 %v1591
    %v1593 = vpop.xlane.xlu0 %1592
    %v1594 = vsel %vm1527, %v1479, -inf
    %1595 = vmax.xlane.f32.xlu0 %v1594
    %v1596 = vpop.xlane.xlu0 %1595
    %v1597 = vsel %vm1527, %v1484, -inf
    %1598 = vmax.xlane.f32.xlu0 %v1597
    %v1599 = vpop.xlane.xlu0 %1598
    %v1600 = vsel %vm1527, %v1489, -inf
    %1601 = vmax.xlane.f32.xlu0 %v1600
    %v1602 = vpop.xlane.xlu0 %1601
    %v1603 = vsel %vm1527, %v1494, -inf
    %1604 = vmax.xlane.f32.xlu0 %v1603
    %v1605 = vpop.xlane.xlu0 %1604
    %v1606 = vsel %vm1527, %v1499, -inf
    %1607 = vmax.xlane.f32.xlu0 %v1606
    %v1608 = vpop.xlane.xlu0 %1607
    %v1609 = vsel %vm1527, %v1504, -inf
    %1610 = vmax.xlane.f32.xlu0 %v1609
    %v1611 = vpop.xlane.xlu0 %1610
    %v1612 = vsel %vm1527, %v1509, -inf
    %1613 = vmax.xlane.f32.xlu0 %v1612
    %v1614 = vpop.xlane.xlu0 %1613
    %v1615 = vsel %vm1527, %v1514, -inf
    %1616 = vmax.xlane.f32.xlu0 %v1615
    %v1617 = vpop.xlane.xlu0 %1616
    %v1618 = vsel %vm1527, %v1519, -inf
    %1619 = vmax.xlane.f32.xlu0 %v1618
    %v1620 = vpop.xlane.xlu0 %1619
    %v1621 = vsel %vm1527, %v1524, -inf
    %1622 = vmax.xlane.f32.xlu0 %v1621
    %v1623 = vpop.xlane.xlu0 %1622
    %v1624 = vsub.f32 %v1369, %v1530
    %v1625 = vsub.f32 %v1374, %v1533
    %v1626 = vsub.f32 %v1379, %v1536
    %v1627 = vsub.f32 %v1384, %v1539
    %v1628 = vsub.f32 %v1389, %v1542
    %v1629 = vsub.f32 %v1394, %v1545
    %v1630 = vsub.f32 %v1399, %v1548
    %v1631 = vsub.f32 %v1404, %v1551
    %v1632 = vsub.f32 %v1409, %v1554
    %v1633 = vsub.f32 %v1414, %v1557
    %v1634 = vsub.f32 %v1419, %v1560
    %v1635 = vsub.f32 %v1424, %v1563
    %v1636 = vsub.f32 %v1429, %v1566
    %v1637 = vsub.f32 %v1434, %v1569
    %v1638 = vsub.f32 %v1439, %v1572
    %v1639 = vsub.f32 %v1444, %v1575
    %v1640 = vsub.f32 %v1449, %v1578
    %v1641 = vsub.f32 %v1454, %v1581
    %v1642 = vsub.f32 %v1459, %v1584
    %v1643 = vsub.f32 %v1464, %v1587
    %v1644 = vsub.f32 %v1469, %v1590
    %v1645 = vsub.f32 %v1474, %v1593
    %v1646 = vsub.f32 %v1479, %v1596
    %v1647 = vsub.f32 %v1484, %v1599
    %v1648 = vsub.f32 %v1489, %v1602
    %v1649 = vsub.f32 %v1494, %v1605
    %v1650 = vsub.f32 %v1499, %v1608
    %v1651 = vsub.f32 %v1504, %v1611
    %v1652 = vsub.f32 %v1509, %v1614
    %v1653 = vsub.f32 %v1514, %v1617
    %v1654 = vsub.f32 %v1519, %v1620
    %v1655 = vsub.f32 %v1524, %v1623
    %v1656 = vmul.f32 %v1624, 1.442695
    %v1657 = vpow.pop %v1656
    %v1658 = vmul.f32 %v1625, 1.442695
    %v1659 = vpow.pop %v1658
    %v1660 = vmul.f32 %v1626, 1.442695
    %v1661 = vpow.pop %v1660
    %v1662 = vmul.f32 %v1627, 1.442695
    %v1663 = vpow.pop %v1662
    %v1664 = vmul.f32 %v1628, 1.442695
    %v1665 = vpow.pop %v1664
    %v1666 = vmul.f32 %v1629, 1.442695
    %v1667 = vpow.pop %v1666
    %v1668 = vmul.f32 %v1630, 1.442695
    %v1669 = vpow.pop %v1668
    %v1670 = vmul.f32 %v1631, 1.442695
    %v1671 = vpow.pop %v1670
    %v1672 = vmul.f32 %v1632, 1.442695
    %v1673 = vpow.pop %v1672
    %v1674 = vmul.f32 %v1633, 1.442695
    %v1675 = vpow.pop %v1674
    %v1676 = vmul.f32 %v1634, 1.442695
    %v1677 = vpow.pop %v1676
    %v1678 = vmul.f32 %v1635, 1.442695
    %v1679 = vpow.pop %v1678
    %v1680 = vmul.f32 %v1636, 1.442695
    %v1681 = vpow.pop %v1680
    %v1682 = vmul.f32 %v1637, 1.442695
    %v1683 = vpow.pop %v1682
    %v1684 = vmul.f32 %v1638, 1.442695
    %v1685 = vpow.pop %v1684
    %v1686 = vmul.f32 %v1639, 1.442695
    %v1687 = vpow.pop %v1686
    %v1688 = vmul.f32 %v1640, 1.442695
    %v1689 = vpow.pop %v1688
    %v1690 = vmul.f32 %v1641, 1.442695
    %v1691 = vpow.pop %v1690
    %v1692 = vmul.f32 %v1642, 1.442695
    %v1693 = vpow.pop %v1692
    %v1694 = vmul.f32 %v1643, 1.442695
    %v1695 = vpow.pop %v1694
    %v1696 = vmul.f32 %v1644, 1.442695
    %v1697 = vpow.pop %v1696
    %v1698 = vmul.f32 %v1645, 1.442695
    %v1699 = vpow.pop %v1698
    %v1700 = vmul.f32 %v1646, 1.442695
    %v1701 = vpow.pop %v1700
    %v1702 = vmul.f32 %v1647, 1.442695
    %v1703 = vpow.pop %v1702
    %v1704 = vmul.f32 %v1648, 1.442695
    %v1705 = vpow.pop %v1704
    %v1706 = vmul.f32 %v1649, 1.442695
    %v1707 = vpow.pop %v1706
    %v1708 = vmul.f32 %v1650, 1.442695
    %v1709 = vpow.pop %v1708
    %v1710 = vmul.f32 %v1651, 1.442695
    %v1711 = vpow.pop %v1710
    %v1712 = vmul.f32 %v1652, 1.442695
    %v1713 = vpow.pop %v1712
    %v1714 = vmul.f32 %v1653, 1.442695
    %v1715 = vpow.pop %v1714
    %v1716 = vmul.f32 %v1654, 1.442695
    %v1717 = vpow.pop %v1716
    %v1718 = vmul.f32 %v1655, 1.442695
    %v1719 = vpow.pop %v1718
    %v1720 = vsel %vm1527, %v1657, 0.0
    %1721 = vadd.xlane.f32.xlu0 %v1720
    %v1722 = vpop.xlane.xlu0 %1721
    %v1723 = vsel %vm1527, %v1659, 0.0
    %1724 = vadd.xlane.f32.xlu0 %v1723
    %v1725 = vpop.xlane.xlu0 %1724
    %v1726 = vsel %vm1527, %v1661, 0.0
    %1727 = vadd.xlane.f32.xlu0 %v1726
    %v1728 = vpop.xlane.xlu0 %1727
    %v1729 = vsel %vm1527, %v1663, 0.0
    %1730 = vadd.xlane.f32.xlu0 %v1729
    %v1731 = vpop.xlane.xlu0 %1730
    %v1732 = vsel %vm1527, %v1665, 0.0
    %1733 = vadd.xlane.f32.xlu0 %v1732
    %v1734 = vpop.xlane.xlu0 %1733
    %v1735 = vsel %vm1527, %v1667, 0.0
    %1736 = vadd.xlane.f32.xlu0 %v1735
    %v1737 = vpop.xlane.xlu0 %1736
    %v1738 = vsel %vm1527, %v1669, 0.0
    %1739 = vadd.xlane.f32.xlu0 %v1738
    %v1740 = vpop.xlane.xlu0 %1739
    %v1741 = vsel %vm1527, %v1671, 0.0
    %1742 = vadd.xlane.f32.xlu0 %v1741
    %v1743 = vpop.xlane.xlu0 %1742
    %v1744 = vsel %vm1527, %v1673, 0.0
    %1745 = vadd.xlane.f32.xlu0 %v1744
    %v1746 = vpop.xlane.xlu0 %1745
    %v1747 = vsel %vm1527, %v1675, 0.0
    %1748 = vadd.xlane.f32.xlu0 %v1747
    %v1749 = vpop.xlane.xlu0 %1748
    %v1750 = vsel %vm1527, %v1677, 0.0
    %1751 = vadd.xlane.f32.xlu0 %v1750
    %v1752 = vpop.xlane.xlu0 %1751
    %v1753 = vsel %vm1527, %v1679, 0.0
    %1754 = vadd.xlane.f32.xlu0 %v1753
    %v1755 = vpop.xlane.xlu0 %1754
    %v1756 = vsel %vm1527, %v1681, 0.0
    %1757 = vadd.xlane.f32.xlu0 %v1756
    %v1758 = vpop.xlane.xlu0 %1757
    %v1759 = vsel %vm1527, %v1683, 0.0
    %1760 = vadd.xlane.f32.xlu0 %v1759
    %v1761 = vpop.xlane.xlu0 %1760
    %v1762 = vsel %vm1527, %v1685, 0.0
    %1763 = vadd.xlane.f32.xlu0 %v1762
    %v1764 = vpop.xlane.xlu0 %1763
    %v1765 = vsel %vm1527, %v1687, 0.0
    %1766 = vadd.xlane.f32.xlu0 %v1765
    %v1767 = vpop.xlane.xlu0 %1766
    %v1768 = vsel %vm1527, %v1689, 0.0
    %1769 = vadd.xlane.f32.xlu0 %v1768
    %v1770 = vpop.xlane.xlu0 %1769
    %v1771 = vsel %vm1527, %v1691, 0.0
    %1772 = vadd.xlane.f32.xlu0 %v1771
    %v1773 = vpop.xlane.xlu0 %1772
    %v1774 = vsel %vm1527, %v1693, 0.0
    %1775 = vadd.xlane.f32.xlu0 %v1774
    %v1776 = vpop.xlane.xlu0 %1775
    %v1777 = vsel %vm1527, %v1695, 0.0
    %1778 = vadd.xlane.f32.xlu0 %v1777
    %v1779 = vpop.xlane.xlu0 %1778
    %v1780 = vsel %vm1527, %v1697, 0.0
    %1781 = vadd.xlane.f32.xlu0 %v1780
    %v1782 = vpop.xlane.xlu0 %1781
    %v1783 = vsel %vm1527, %v1699, 0.0
    %1784 = vadd.xlane.f32.xlu0 %v1783
    %v1785 = vpop.xlane.xlu0 %1784
    %v1786 = vsel %vm1527, %v1701, 0.0
    %1787 = vadd.xlane.f32.xlu0 %v1786
    %v1788 = vpop.xlane.xlu0 %1787
    %v1789 = vsel %vm1527, %v1703, 0.0
    %1790 = vadd.xlane.f32.xlu0 %v1789
    %v1791 = vpop.xlane.xlu0 %1790
    %v1792 = vsel %vm1527, %v1705, 0.0
    %1793 = vadd.xlane.f32.xlu0 %v1792
    %v1794 = vpop.xlane.xlu0 %1793
    %v1795 = vsel %vm1527, %v1707, 0.0
    %1796 = vadd.xlane.f32.xlu0 %v1795
    %v1797 = vpop.xlane.xlu0 %1796
    %v1798 = vsel %vm1527, %v1709, 0.0
    %1799 = vadd.xlane.f32.xlu0 %v1798
    %v1800 = vpop.xlane.xlu0 %1799
    %v1801 = vsel %vm1527, %v1711, 0.0
    %1802 = vadd.xlane.f32.xlu0 %v1801
    %v1803 = vpop.xlane.xlu0 %1802
    %v1804 = vsel %vm1527, %v1713, 0.0
    %1805 = vadd.xlane.f32.xlu0 %v1804
    %v1806 = vpop.xlane.xlu0 %1805
    %v1807 = vsel %vm1527, %v1715, 0.0
    %1808 = vadd.xlane.f32.xlu0 %v1807
    %v1809 = vpop.xlane.xlu0 %1808
    %v1810 = vsel %vm1527, %v1717, 0.0
    %1811 = vadd.xlane.f32.xlu0 %v1810
    %v1812 = vpop.xlane.xlu0 %1811
    %v1813 = vsel %vm1527, %v1719, 0.0
    %1814 = vadd.xlane.f32.xlu0 %v1813
    %v1815 = vpop.xlane.xlu0 %1814
    %v1816 = vrcp.pop %v1722
    %v1817 = vrcp.pop %v1725
    %v1818 = vrcp.pop %v1728
    %v1819 = vrcp.pop %v1731
    %v1820 = vrcp.pop %v1734
    %v1821 = vrcp.pop %v1737
    %v1822 = vrcp.pop %v1740
    %v1823 = vrcp.pop %v1743
    %v1824 = vrcp.pop %v1746
    %v1825 = vrcp.pop %v1749
    %v1826 = vrcp.pop %v1752
    %v1827 = vrcp.pop %v1755
    %v1828 = vrcp.pop %v1758
    %v1829 = vrcp.pop %v1761
    %v1830 = vrcp.pop %v1764
    %v1831 = vrcp.pop %v1767
    %v1832 = vrcp.pop %v1770
    %v1833 = vrcp.pop %v1773
    %v1834 = vrcp.pop %v1776
    %v1835 = vrcp.pop %v1779
    %v1836 = vrcp.pop %v1782
    %v1837 = vrcp.pop %v1785
    %v1838 = vrcp.pop %v1788
    %v1839 = vrcp.pop %v1791
    %v1840 = vrcp.pop %v1794
    %v1841 = vrcp.pop %v1797
    %v1842 = vrcp.pop %v1800
    %v1843 = vrcp.pop %v1803
    %v1844 = vrcp.pop %v1806
    %v1845 = vrcp.pop %v1809
    %v1846 = vrcp.pop %v1812
    %v1847 = vrcp.pop %v1815
    %v1848 = vmul.f32 %v1657, %v1816
    %v1849 = vmul.f32 %v1659, %v1817
    %v1850 = vmul.f32 %v1661, %v1818
    %v1851 = vmul.f32 %v1663, %v1819
    %v1852 = vmul.f32 %v1665, %v1820
    %v1853 = vmul.f32 %v1667, %v1821
    %v1854 = vmul.f32 %v1669, %v1822
    %v1855 = vmul.f32 %v1671, %v1823
    %v1856 = vmul.f32 %v1673, %v1824
    %v1857 = vmul.f32 %v1675, %v1825
    %v1858 = vmul.f32 %v1677, %v1826
    %v1859 = vmul.f32 %v1679, %v1827
    %v1860 = vmul.f32 %v1681, %v1828
    %v1861 = vmul.f32 %v1683, %v1829
    %v1862 = vmul.f32 %v1685, %v1830
    %v1863 = vmul.f32 %v1687, %v1831
    %v1864 = vmul.f32 %v1689, %v1832
    %v1865 = vmul.f32 %v1691, %v1833
    %v1866 = vmul.f32 %v1693, %v1834
    %v1867 = vmul.f32 %v1695, %v1835
    %v1868 = vmul.f32 %v1697, %v1836
    %v1869 = vmul.f32 %v1699, %v1837
    %v1870 = vmul.f32 %v1701, %v1838
    %v1871 = vmul.f32 %v1703, %v1839
    %v1872 = vmul.f32 %v1705, %v1840
    %v1873 = vmul.f32 %v1707, %v1841
    %v1874 = vmul.f32 %v1709, %v1842
    %v1875 = vmul.f32 %v1711, %v1843
    %v1876 = vmul.f32 %v1713, %v1844
    %v1877 = vmul.f32 %v1715, %v1845
    %v1878 = vmul.f32 %v1717, %v1846
    %v1879 = vmul.f32 %v1719, %v1847
    %v1880 = vlog2.pop %v1722
    %v1881 = vmul.f32 %v1880, 0.6931472
    %v1882 = vlog2.pop %v1725
    %v1883 = vmul.f32 %v1882, 0.6931472
    %v1884 = vlog2.pop %v1728
    %v1885 = vmul.f32 %v1884, 0.6931472
    %v1886 = vlog2.pop %v1731
    %v1887 = vmul.f32 %v1886, 0.6931472
    %v1888 = vlog2.pop %v1734
    %v1889 = vmul.f32 %v1888, 0.6931472
    %v1890 = vlog2.pop %v1737
    %v1891 = vmul.f32 %v1890, 0.6931472
    %v1892 = vlog2.pop %v1740
    %v1893 = vmul.f32 %v1892, 0.6931472
    %v1894 = vlog2.pop %v1743
    %v1895 = vmul.f32 %v1894, 0.6931472
    %v1896 = vlog2.pop %v1746
    %v1897 = vmul.f32 %v1896, 0.6931472
    %v1898 = vlog2.pop %v1749
    %v1899 = vmul.f32 %v1898, 0.6931472
    %v1900 = vlog2.pop %v1752
    %v1901 = vmul.f32 %v1900, 0.6931472
    %v1902 = vlog2.pop %v1755
    %v1903 = vmul.f32 %v1902, 0.6931472
    %v1904 = vlog2.pop %v1758
    %v1905 = vmul.f32 %v1904, 0.6931472
    %v1906 = vlog2.pop %v1761
    %v1907 = vmul.f32 %v1906, 0.6931472
    %v1908 = vlog2.pop %v1764
    %v1909 = vmul.f32 %v1908, 0.6931472
    %v1910 = vlog2.pop %v1767
    %v1911 = vmul.f32 %v1910, 0.6931472
    %v1912 = vlog2.pop %v1770
    %v1913 = vmul.f32 %v1912, 0.6931472
    %v1914 = vlog2.pop %v1773
    %v1915 = vmul.f32 %v1914, 0.6931472
    %v1916 = vlog2.pop %v1776
    %v1917 = vmul.f32 %v1916, 0.6931472
    %v1918 = vlog2.pop %v1779
    %v1919 = vmul.f32 %v1918, 0.6931472
    %v1920 = vlog2.pop %v1782
    %v1921 = vmul.f32 %v1920, 0.6931472
    %v1922 = vlog2.pop %v1785
    %v1923 = vmul.f32 %v1922, 0.6931472
    %v1924 = vlog2.pop %v1788
    %v1925 = vmul.f32 %v1924, 0.6931472
    %v1926 = vlog2.pop %v1791
    %v1927 = vmul.f32 %v1926, 0.6931472
    %v1928 = vlog2.pop %v1794
    %v1929 = vmul.f32 %v1928, 0.6931472
    %v1930 = vlog2.pop %v1797
    %v1931 = vmul.f32 %v1930, 0.6931472
    %v1932 = vlog2.pop %v1800
    %v1933 = vmul.f32 %v1932, 0.6931472
    %v1934 = vlog2.pop %v1803
    %v1935 = vmul.f32 %v1934, 0.6931472
    %v1936 = vlog2.pop %v1806
    %v1937 = vmul.f32 %v1936, 0.6931472
    %v1938 = vlog2.pop %v1809
    %v1939 = vmul.f32 %v1938, 0.6931472
    %v1940 = vlog2.pop %v1812
    %v1941 = vmul.f32 %v1940, 0.6931472
    %v1942 = vlog2.pop %v1815
    %v1943 = vmul.f32 %v1942, 0.6931472
    %v1944 = vsub.f32 %v1624, %v1881
    %v1945 = vsub.f32 %v1625, %v1883
    %v1946 = vsub.f32 %v1626, %v1885
    %v1947 = vsub.f32 %v1627, %v1887
    %v1948 = vsub.f32 %v1628, %v1889
    %v1949 = vsub.f32 %v1629, %v1891
    %v1950 = vsub.f32 %v1630, %v1893
    %v1951 = vsub.f32 %v1631, %v1895
    %v1952 = vsub.f32 %v1632, %v1897
    %v1953 = vsub.f32 %v1633, %v1899
    %v1954 = vsub.f32 %v1634, %v1901
    %v1955 = vsub.f32 %v1635, %v1903
    %v1956 = vsub.f32 %v1636, %v1905
    %v1957 = vsub.f32 %v1637, %v1907
    %v1958 = vsub.f32 %v1638, %v1909
    %v1959 = vsub.f32 %v1639, %v1911
    %v1960 = vsub.f32 %v1640, %v1913
    %v1961 = vsub.f32 %v1641, %v1915
    %v1962 = vsub.f32 %v1642, %v1917
    %v1963 = vsub.f32 %v1643, %v1919
    %v1964 = vsub.f32 %v1644, %v1921
    %v1965 = vsub.f32 %v1645, %v1923
    %v1966 = vsub.f32 %v1646, %v1925
    %v1967 = vsub.f32 %v1647, %v1927
    %v1968 = vsub.f32 %v1648, %v1929
    %v1969 = vsub.f32 %v1649, %v1931
    %v1970 = vsub.f32 %v1650, %v1933
    %v1971 = vsub.f32 %v1651, %v1935
    %v1972 = vsub.f32 %v1652, %v1937
    %v1973 = vsub.f32 %v1653, %v1939
    %v1974 = vsub.f32 %v1654, %v1941
    %v1975 = vsub.f32 %v1655, %v1943
    %v1976 = vlaneseq
    %v1977 = vand.u32 %v1976, 127
    %v1978 = vld [vmem:[%s1] sm:$0xff]
    %v1979 = vld [vmem:[%s1 + $0x8] sm:$0xff]
    %v1980 = vld [vmem:[%s1 + $0x10] sm:$0xff]
    %v1981 = vld [vmem:[%s1 + $0x18] sm:$0xff]
    %v1982 = vld [vmem:[%s1 + $0x20] sm:$0xff]
    %v1983 = vld [vmem:[%s1 + $0x28] sm:$0xff]
    %v1984 = vld [vmem:[%s1 + $0x30] sm:$0xff]
    %v1985 = vld [vmem:[%s1 + $0x38] sm:$0xff]
    %v1986 = vld [vmem:[%s1 + $0x40] sm:$0xff]
    %v1987 = vld [vmem:[%s1 + $0x48] sm:$0xff]
    %v1988 = vld [vmem:[%s1 + $0x50] sm:$0xff]
    %v1989 = vld [vmem:[%s1 + $0x58] sm:$0xff]
    %v1990 = vld [vmem:[%s1 + $0x60] sm:$0xff]
    %v1991 = vld [vmem:[%s1 + $0x68] sm:$0xff]
    %v1992 = vld [vmem:[%s1 + $0x70] sm:$0xff]
    %v1993 = vld [vmem:[%s1 + $0x78] sm:$0xff]
    %v1994 = vld [vmem:[%s1 + $0x80] sm:$0xff]
    %v1995 = vld [vmem:[%s1 + $0x88] sm:$0xff]
    %v1996 = vld [vmem:[%s1 + $0x90] sm:$0xff]
    %v1997 = vld [vmem:[%s1 + $0x98] sm:$0xff]
    %v1998 = vld [vmem:[%s1 + $0xa0] sm:$0xff]
    %v1999 = vld [vmem:[%s1 + $0xa8] sm:$0xff]
    %v2000 = vld [vmem:[%s1 + $0xb0] sm:$0xff]
    %v2001 = vld [vmem:[%s1 + $0xb8] sm:$0xff]
    %v2002 = vld [vmem:[%s1 + $0xc0] sm:$0xff]
    %v2003 = vld [vmem:[%s1 + $0xc8] sm:$0xff]
    %v2004 = vld [vmem:[%s1 + $0xd0] sm:$0xff]
    %v2005 = vld [vmem:[%s1 + $0xd8] sm:$0xff]
    %v2006 = vld [vmem:[%s1 + $0xe0] sm:$0xff]
    %v2007 = vld [vmem:[%s1 + $0xe8] sm:$0xff]
    %v2008 = vld [vmem:[%s1 + $0xf0] sm:$0xff]
    %v2009 = vld [vmem:[%s1 + $0xf8] sm:$0xff]
    %2010 = vset.pattern.permute.xlu0 0
    %2011 = vperm.xlu0 %2010, %v1978
    %v2012 = vpop.permute.xlu0 %2011
    %2013 = vset.pattern.permute.xlu0 0
    %2014 = vperm.xlu0 %2013, %v1979
    %v2015 = vpop.permute.xlu0 %2014
    %2016 = vset.pattern.permute.xlu0 0
    %2017 = vperm.xlu0 %2016, %v1980
    %v2018 = vpop.permute.xlu0 %2017
    %2019 = vset.pattern.permute.xlu0 0
    %2020 = vperm.xlu0 %2019, %v1981
    %v2021 = vpop.permute.xlu0 %2020
    %2022 = vset.pattern.permute.xlu0 0
    %2023 = vperm.xlu0 %2022, %v1982
    %v2024 = vpop.permute.xlu0 %2023
    %2025 = vset.pattern.permute.xlu0 0
    %2026 = vperm.xlu0 %2025, %v1983
    %v2027 = vpop.permute.xlu0 %2026
    %2028 = vset.pattern.permute.xlu0 0
    %2029 = vperm.xlu0 %2028, %v1984
    %v2030 = vpop.permute.xlu0 %2029
    %2031 = vset.pattern.permute.xlu0 0
    %2032 = vperm.xlu0 %2031, %v1985
    %v2033 = vpop.permute.xlu0 %2032
    %2034 = vset.pattern.permute.xlu0 0
    %2035 = vperm.xlu0 %2034, %v1986
    %v2036 = vpop.permute.xlu0 %2035
    %2037 = vset.pattern.permute.xlu0 0
    %2038 = vperm.xlu0 %2037, %v1987
    %v2039 = vpop.permute.xlu0 %2038
    %2040 = vset.pattern.permute.xlu0 0
    %2041 = vperm.xlu0 %2040, %v1988
    %v2042 = vpop.permute.xlu0 %2041
    %2043 = vset.pattern.permute.xlu0 0
    %2044 = vperm.xlu0 %2043, %v1989
    %v2045 = vpop.permute.xlu0 %2044
    %2046 = vset.pattern.permute.xlu0 0
    %2047 = vperm.xlu0 %2046, %v1990
    %v2048 = vpop.permute.xlu0 %2047
    %2049 = vset.pattern.permute.xlu0 0
    %2050 = vperm.xlu0 %2049, %v1991
    %v2051 = vpop.permute.xlu0 %2050
    %2052 = vset.pattern.permute.xlu0 0
    %2053 = vperm.xlu0 %2052, %v1992
    %v2054 = vpop.permute.xlu0 %2053
    %2055 = vset.pattern.permute.xlu0 0
    %2056 = vperm.xlu0 %2055, %v1993
    %v2057 = vpop.permute.xlu0 %2056
    %2058 = vset.pattern.permute.xlu0 0
    %2059 = vperm.xlu0 %2058, %v1994
    %v2060 = vpop.permute.xlu0 %2059
    %2061 = vset.pattern.permute.xlu0 0
    %2062 = vperm.xlu0 %2061, %v1995
    %v2063 = vpop.permute.xlu0 %2062
    %2064 = vset.pattern.permute.xlu0 0
    %2065 = vperm.xlu0 %2064, %v1996
    %v2066 = vpop.permute.xlu0 %2065
    %2067 = vset.pattern.permute.xlu0 0
    %2068 = vperm.xlu0 %2067, %v1997
    %v2069 = vpop.permute.xlu0 %2068
    %2070 = vset.pattern.permute.xlu0 0
    %2071 = vperm.xlu0 %2070, %v1998
    %v2072 = vpop.permute.xlu0 %2071
    %2073 = vset.pattern.permute.xlu0 0
    %2074 = vperm.xlu0 %2073, %v1999
    %v2075 = vpop.permute.xlu0 %2074
    %2076 = vset.pattern.permute.xlu0 0
    %2077 = vperm.xlu0 %2076, %v2000
    %v2078 = vpop.permute.xlu0 %2077
    %2079 = vset.pattern.permute.xlu0 0
    %2080 = vperm.xlu0 %2079, %v2001
    %v2081 = vpop.permute.xlu0 %2080
    %2082 = vset.pattern.permute.xlu0 0
    %2083 = vperm.xlu0 %2082, %v2002
    %v2084 = vpop.permute.xlu0 %2083
    %2085 = vset.pattern.permute.xlu0 0
    %2086 = vperm.xlu0 %2085, %v2003
    %v2087 = vpop.permute.xlu0 %2086
    %2088 = vset.pattern.permute.xlu0 0
    %2089 = vperm.xlu0 %2088, %v2004
    %v2090 = vpop.permute.xlu0 %2089
    %2091 = vset.pattern.permute.xlu0 0
    %2092 = vperm.xlu0 %2091, %v2005
    %v2093 = vpop.permute.xlu0 %2092
    %2094 = vset.pattern.permute.xlu0 0
    %2095 = vperm.xlu0 %2094, %v2006
    %v2096 = vpop.permute.xlu0 %2095
    %2097 = vset.pattern.permute.xlu0 0
    %2098 = vperm.xlu0 %2097, %v2007
    %v2099 = vpop.permute.xlu0 %2098
    %2100 = vset.pattern.permute.xlu0 0
    %2101 = vperm.xlu0 %2100, %v2008
    %v2102 = vpop.permute.xlu0 %2101
    %2103 = vset.pattern.permute.xlu0 0
    %2104 = vperm.xlu0 %2103, %v2009
    %v2105 = vpop.permute.xlu0 %2104
    %vm2106 = vcmp.eq.s32.totalorder %v1977, %v2012
    %vm2107 = vcmp.eq.s32.totalorder %v1977, %v2015
    %vm2108 = vcmp.eq.s32.totalorder %v1977, %v2018
    %vm2109 = vcmp.eq.s32.totalorder %v1977, %v2021
    %vm2110 = vcmp.eq.s32.totalorder %v1977, %v2024
    %vm2111 = vcmp.eq.s32.totalorder %v1977, %v2027
    %vm2112 = vcmp.eq.s32.totalorder %v1977, %v2030
    %vm2113 = vcmp.eq.s32.totalorder %v1977, %v2033
    %vm2114 = vcmp.eq.s32.totalorder %v1977, %v2036
    %vm2115 = vcmp.eq.s32.totalorder %v1977, %v2039
    %vm2116 = vcmp.eq.s32.totalorder %v1977, %v2042
    %vm2117 = vcmp.eq.s32.totalorder %v1977, %v2045
    %vm2118 = vcmp.eq.s32.totalorder %v1977, %v2048
    %vm2119 = vcmp.eq.s32.totalorder %v1977, %v2051
    %vm2120 = vcmp.eq.s32.totalorder %v1977, %v2054
    %vm2121 = vcmp.eq.s32.totalorder %v1977, %v2057
    %vm2122 = vcmp.eq.s32.totalorder %v1977, %v2060
    %vm2123 = vcmp.eq.s32.totalorder %v1977, %v2063
    %vm2124 = vcmp.eq.s32.totalorder %v1977, %v2066
    %vm2125 = vcmp.eq.s32.totalorder %v1977, %v2069
    %vm2126 = vcmp.eq.s32.totalorder %v1977, %v2072
    %vm2127 = vcmp.eq.s32.totalorder %v1977, %v2075
    %vm2128 = vcmp.eq.s32.totalorder %v1977, %v2078
    %vm2129 = vcmp.eq.s32.totalorder %v1977, %v2081
    %vm2130 = vcmp.eq.s32.totalorder %v1977, %v2084
    %vm2131 = vcmp.eq.s32.totalorder %v1977, %v2087
    %vm2132 = vcmp.eq.s32.totalorder %v1977, %v2090
    %vm2133 = vcmp.eq.s32.totalorder %v1977, %v2093
    %vm2134 = vcmp.eq.s32.totalorder %v1977, %v2096
    %vm2135 = vcmp.eq.s32.totalorder %v1977, %v2099
    %vm2136 = vcmp.eq.s32.totalorder %v1977, %v2102
    %vm2137 = vcmp.eq.s32.totalorder %v1977, %v2105
    %v2138 = vsel %vm2106, 1, 0
    %v2139 = vsel %vm2107, 1, 0
    %v2140 = vsel %vm2108, 1, 0
    %v2141 = vsel %vm2109, 1, 0
    %v2142 = vsel %vm2110, 1, 0
    %v2143 = vsel %vm2111, 1, 0
    %v2144 = vsel %vm2112, 1, 0
    %v2145 = vsel %vm2113, 1, 0
    %v2146 = vsel %vm2114, 1, 0
    %v2147 = vsel %vm2115, 1, 0
    %v2148 = vsel %vm2116, 1, 0
    %v2149 = vsel %vm2117, 1, 0
    %v2150 = vsel %vm2118, 1, 0
    %v2151 = vsel %vm2119, 1, 0
    %v2152 = vsel %vm2120, 1, 0
    %v2153 = vsel %vm2121, 1, 0
    %v2154 = vsel %vm2122, 1, 0
    %v2155 = vsel %vm2123, 1, 0
    %v2156 = vsel %vm2124, 1, 0
    %v2157 = vsel %vm2125, 1, 0
    %v2158 = vsel %vm2126, 1, 0
    %v2159 = vsel %vm2127, 1, 0
    %v2160 = vsel %vm2128, 1, 0
    %v2161 = vsel %vm2129, 1, 0
    %v2162 = vsel %vm2130, 1, 0
    %v2163 = vsel %vm2131, 1, 0
    %v2164 = vsel %vm2132, 1, 0
    %v2165 = vsel %vm2133, 1, 0
    %v2166 = vsel %vm2134, 1, 0
    %v2167 = vsel %vm2135, 1, 0
    %v2168 = vsel %vm2136, 1, 0
    %v2169 = vsel %vm2137, 1, 0
    %v2170 = vcvt.s32.f32 %v2138
    %v2171 = vcvt.s32.f32 %v2139
    %v2172 = vcvt.s32.f32 %v2140
    %v2173 = vcvt.s32.f32 %v2141
    %v2174 = vcvt.s32.f32 %v2142
    %v2175 = vcvt.s32.f32 %v2143
    %v2176 = vcvt.s32.f32 %v2144
    %v2177 = vcvt.s32.f32 %v2145
    %v2178 = vcvt.s32.f32 %v2146
    %v2179 = vcvt.s32.f32 %v2147
    %v2180 = vcvt.s32.f32 %v2148
    %v2181 = vcvt.s32.f32 %v2149
    %v2182 = vcvt.s32.f32 %v2150
    %v2183 = vcvt.s32.f32 %v2151
    %v2184 = vcvt.s32.f32 %v2152
    %v2185 = vcvt.s32.f32 %v2153
    %v2186 = vcvt.s32.f32 %v2154
    %v2187 = vcvt.s32.f32 %v2155
    %v2188 = vcvt.s32.f32 %v2156
    %v2189 = vcvt.s32.f32 %v2157
    %v2190 = vcvt.s32.f32 %v2158
    %v2191 = vcvt.s32.f32 %v2159
    %v2192 = vcvt.s32.f32 %v2160
    %v2193 = vcvt.s32.f32 %v2161
    %v2194 = vcvt.s32.f32 %v2162
    %v2195 = vcvt.s32.f32 %v2163
    %v2196 = vcvt.s32.f32 %v2164
    %v2197 = vcvt.s32.f32 %v2165
    %v2198 = vcvt.s32.f32 %v2166
    %v2199 = vcvt.s32.f32 %v2167
    %v2200 = vcvt.s32.f32 %v2168
    %v2201 = vcvt.s32.f32 %v2169
    %v2202 = vmul.f32 %v2170, %v1944
    %v2203 = vmul.f32 %v2171, %v1945
    %v2204 = vmul.f32 %v2172, %v1946
    %v2205 = vmul.f32 %v2173, %v1947
    %v2206 = vmul.f32 %v2174, %v1948
    %v2207 = vmul.f32 %v2175, %v1949
    %v2208 = vmul.f32 %v2176, %v1950
    %v2209 = vmul.f32 %v2177, %v1951
    %v2210 = vmul.f32 %v2178, %v1952
    %v2211 = vmul.f32 %v2179, %v1953
    %v2212 = vmul.f32 %v2180, %v1954
    %v2213 = vmul.f32 %v2181, %v1955
    %v2214 = vmul.f32 %v2182, %v1956
    %v2215 = vmul.f32 %v2183, %v1957
    %v2216 = vmul.f32 %v2184, %v1958
    %v2217 = vmul.f32 %v2185, %v1959
    %v2218 = vmul.f32 %v2186, %v1960
    %v2219 = vmul.f32 %v2187, %v1961
    %v2220 = vmul.f32 %v2188, %v1962
    %v2221 = vmul.f32 %v2189, %v1963
    %v2222 = vmul.f32 %v2190, %v1964
    %v2223 = vmul.f32 %v2191, %v1965
    %v2224 = vmul.f32 %v2192, %v1966
    %v2225 = vmul.f32 %v2193, %v1967
    %v2226 = vmul.f32 %v2194, %v1968
    %v2227 = vmul.f32 %v2195, %v1969
    %v2228 = vmul.f32 %v2196, %v1970
    %v2229 = vmul.f32 %v2197, %v1971
    %v2230 = vmul.f32 %v2198, %v1972
    %v2231 = vmul.f32 %v2199, %v1973
    %v2232 = vmul.f32 %v2200, %v1974
    %v2233 = vmul.f32 %v2201, %v1975
    %v2234 = vsel %vm1527, %v2202, 0.0
    %2235 = vadd.xlane.f32.xlu0 %v2234
    %v2236 = vpop.xlane.xlu0 %2235
    %v2237 = vsel %vm1527, %v2203, 0.0
    %2238 = vadd.xlane.f32.xlu0 %v2237
    %v2239 = vpop.xlane.xlu0 %2238
    %v2240 = vsel %vm1527, %v2204, 0.0
    %2241 = vadd.xlane.f32.xlu0 %v2240
    %v2242 = vpop.xlane.xlu0 %2241
    %v2243 = vsel %vm1527, %v2205, 0.0
    %2244 = vadd.xlane.f32.xlu0 %v2243
    %v2245 = vpop.xlane.xlu0 %2244
    %v2246 = vsel %vm1527, %v2206, 0.0
    %2247 = vadd.xlane.f32.xlu0 %v2246
    %v2248 = vpop.xlane.xlu0 %2247
    %v2249 = vsel %vm1527, %v2207, 0.0
    %2250 = vadd.xlane.f32.xlu0 %v2249
    %v2251 = vpop.xlane.xlu0 %2250
    %v2252 = vsel %vm1527, %v2208, 0.0
    %2253 = vadd.xlane.f32.xlu0 %v2252
    %v2254 = vpop.xlane.xlu0 %2253
    %v2255 = vsel %vm1527, %v2209, 0.0
    %2256 = vadd.xlane.f32.xlu0 %v2255
    %v2257 = vpop.xlane.xlu0 %2256
    %v2258 = vsel %vm1527, %v2210, 0.0
    %2259 = vadd.xlane.f32.xlu0 %v2258
    %v2260 = vpop.xlane.xlu0 %2259
    %v2261 = vsel %vm1527, %v2211, 0.0
    %2262 = vadd.xlane.f32.xlu0 %v2261
    %v2263 = vpop.xlane.xlu0 %2262
    %v2264 = vsel %vm1527, %v2212, 0.0
    %2265 = vadd.xlane.f32.xlu0 %v2264
    %v2266 = vpop.xlane.xlu0 %2265
    %v2267 = vsel %vm1527, %v2213, 0.0
    %2268 = vadd.xlane.f32.xlu0 %v2267
    %v2269 = vpop.xlane.xlu0 %2268
    %v2270 = vsel %vm1527, %v2214, 0.0
    %2271 = vadd.xlane.f32.xlu0 %v2270
    %v2272 = vpop.xlane.xlu0 %2271
    %v2273 = vsel %vm1527, %v2215, 0.0
    %2274 = vadd.xlane.f32.xlu0 %v2273
    %v2275 = vpop.xlane.xlu0 %2274
    %v2276 = vsel %vm1527, %v2216, 0.0
    %2277 = vadd.xlane.f32.xlu0 %v2276
    %v2278 = vpop.xlane.xlu0 %2277
    %v2279 = vsel %vm1527, %v2217, 0.0
    %2280 = vadd.xlane.f32.xlu0 %v2279
    %v2281 = vpop.xlane.xlu0 %2280
    %v2282 = vsel %vm1527, %v2218, 0.0
    %2283 = vadd.xlane.f32.xlu0 %v2282
    %v2284 = vpop.xlane.xlu0 %2283
    %v2285 = vsel %vm1527, %v2219, 0.0
    %2286 = vadd.xlane.f32.xlu0 %v2285
    %v2287 = vpop.xlane.xlu0 %2286
    %v2288 = vsel %vm1527, %v2220, 0.0
    %2289 = vadd.xlane.f32.xlu0 %v2288
    %v2290 = vpop.xlane.xlu0 %2289
    %v2291 = vsel %vm1527, %v2221, 0.0
    %2292 = vadd.xlane.f32.xlu0 %v2291
    %v2293 = vpop.xlane.xlu0 %2292
    %v2294 = vsel %vm1527, %v2222, 0.0
    %2295 = vadd.xlane.f32.xlu0 %v2294
    %v2296 = vpop.xlane.xlu0 %2295
    %v2297 = vsel %vm1527, %v2223, 0.0
    %2298 = vadd.xlane.f32.xlu0 %v2297
    %v2299 = vpop.xlane.xlu0 %2298
    %v2300 = vsel %vm1527, %v2224, 0.0
    %2301 = vadd.xlane.f32.xlu0 %v2300
    %v2302 = vpop.xlane.xlu0 %2301
    %v2303 = vsel %vm1527, %v2225, 0.0
    %2304 = vadd.xlane.f32.xlu0 %v2303
    %v2305 = vpop.xlane.xlu0 %2304
    %v2306 = vsel %vm1527, %v2226, 0.0
    %2307 = vadd.xlane.f32.xlu0 %v2306
    %v2308 = vpop.xlane.xlu0 %2307
    %v2309 = vsel %vm1527, %v2227, 0.0
    %2310 = vadd.xlane.f32.xlu0 %v2309
    %v2311 = vpop.xlane.xlu0 %2310
    %v2312 = vsel %vm1527, %v2228, 0.0
    %2313 = vadd.xlane.f32.xlu0 %v2312
    %v2314 = vpop.xlane.xlu0 %2313
    %v2315 = vsel %vm1527, %v2229, 0.0
    %2316 = vadd.xlane.f32.xlu0 %v2315
    %v2317 = vpop.xlane.xlu0 %2316
    %v2318 = vsel %vm1527, %v2230, 0.0
    %2319 = vadd.xlane.f32.xlu0 %v2318
    %v2320 = vpop.xlane.xlu0 %2319
    %v2321 = vsel %vm1527, %v2231, 0.0
    %2322 = vadd.xlane.f32.xlu0 %v2321
    %v2323 = vpop.xlane.xlu0 %2322
    %v2324 = vsel %vm1527, %v2232, 0.0
    %2325 = vadd.xlane.f32.xlu0 %v2324
    %v2326 = vpop.xlane.xlu0 %2325
    %v2327 = vsel %vm1527, %v2233, 0.0
    %2328 = vadd.xlane.f32.xlu0 %v2327
    %v2329 = vpop.xlane.xlu0 %2328
    %v2330 = vmul.f32 %v1848, %v1944
    %v2331 = vmul.f32 %v1849, %v1945
    %v2332 = vmul.f32 %v1850, %v1946
    %v2333 = vmul.f32 %v1851, %v1947
    %v2334 = vmul.f32 %v1852, %v1948
    %v2335 = vmul.f32 %v1853, %v1949
    %v2336 = vmul.f32 %v1854, %v1950
    %v2337 = vmul.f32 %v1855, %v1951
    %v2338 = vmul.f32 %v1856, %v1952
    %v2339 = vmul.f32 %v1857, %v1953
    %v2340 = vmul.f32 %v1858, %v1954
    %v2341 = vmul.f32 %v1859, %v1955
    %v2342 = vmul.f32 %v1860, %v1956
    %v2343 = vmul.f32 %v1861, %v1957
    %v2344 = vmul.f32 %v1862, %v1958
    %v2345 = vmul.f32 %v1863, %v1959
    %v2346 = vmul.f32 %v1864, %v1960
    %v2347 = vmul.f32 %v1865, %v1961
    %v2348 = vmul.f32 %v1866, %v1962
    %v2349 = vmul.f32 %v1867, %v1963
    %v2350 = vmul.f32 %v1868, %v1964
    %v2351 = vmul.f32 %v1869, %v1965
    %v2352 = vmul.f32 %v1870, %v1966
    %v2353 = vmul.f32 %v1871, %v1967
    %v2354 = vmul.f32 %v1872, %v1968
    %v2355 = vmul.f32 %v1873, %v1969
    %v2356 = vmul.f32 %v1874, %v1970
    %v2357 = vmul.f32 %v1875, %v1971
    %v2358 = vmul.f32 %v1876, %v1972
    %v2359 = vmul.f32 %v1877, %v1973
    %v2360 = vmul.f32 %v1878, %v1974
    %v2361 = vmul.f32 %v1879, %v1975
    %v2362 = vsel %vm1527, %v2330, 0.0
    %2363 = vadd.xlane.f32.xlu0 %v2362
    %v2364 = vpop.xlane.xlu0 %2363
    %v2365 = vsel %vm1527, %v2331, 0.0
    %2366 = vadd.xlane.f32.xlu0 %v2365
    %v2367 = vpop.xlane.xlu0 %2366
    %v2368 = vsel %vm1527, %v2332, 0.0
    %2369 = vadd.xlane.f32.xlu0 %v2368
    %v2370 = vpop.xlane.xlu0 %2369
    %v2371 = vsel %vm1527, %v2333, 0.0
    %2372 = vadd.xlane.f32.xlu0 %v2371
    %v2373 = vpop.xlane.xlu0 %2372
    %v2374 = vsel %vm1527, %v2334, 0.0
    %2375 = vadd.xlane.f32.xlu0 %v2374
    %v2376 = vpop.xlane.xlu0 %2375
    %v2377 = vsel %vm1527, %v2335, 0.0
    %2378 = vadd.xlane.f32.xlu0 %v2377
    %v2379 = vpop.xlane.xlu0 %2378
    %v2380 = vsel %vm1527, %v2336, 0.0
    %2381 = vadd.xlane.f32.xlu0 %v2380
    %v2382 = vpop.xlane.xlu0 %2381
    %v2383 = vsel %vm1527, %v2337, 0.0
    %2384 = vadd.xlane.f32.xlu0 %v2383
    %v2385 = vpop.xlane.xlu0 %2384
    %v2386 = vsel %vm1527, %v2338, 0.0
    %2387 = vadd.xlane.f32.xlu0 %v2386
    %v2388 = vpop.xlane.xlu0 %2387
    %v2389 = vsel %vm1527, %v2339, 0.0
    %2390 = vadd.xlane.f32.xlu0 %v2389
    %v2391 = vpop.xlane.xlu0 %2390
    %v2392 = vsel %vm1527, %v2340, 0.0
    %2393 = vadd.xlane.f32.xlu0 %v2392
    %v2394 = vpop.xlane.xlu0 %2393
    %v2395 = vsel %vm1527, %v2341, 0.0
    %2396 = vadd.xlane.f32.xlu0 %v2395
    %v2397 = vpop.xlane.xlu0 %2396
    %v2398 = vsel %vm1527, %v2342, 0.0
    %2399 = vadd.xlane.f32.xlu0 %v2398
    %v2400 = vpop.xlane.xlu0 %2399
    %v2401 = vsel %vm1527, %v2343, 0.0
    %2402 = vadd.xlane.f32.xlu0 %v2401
    %v2403 = vpop.xlane.xlu0 %2402
    %v2404 = vsel %vm1527, %v2344, 0.0
    %2405 = vadd.xlane.f32.xlu0 %v2404
    %v2406 = vpop.xlane.xlu0 %2405
    %v2407 = vsel %vm1527, %v2345, 0.0
    %2408 = vadd.xlane.f32.xlu0 %v2407
    %v2409 = vpop.xlane.xlu0 %2408
    %v2410 = vsel %vm1527, %v2346, 0.0
    %2411 = vadd.xlane.f32.xlu0 %v2410
    %v2412 = vpop.xlane.xlu0 %2411
    %v2413 = vsel %vm1527, %v2347, 0.0
    %2414 = vadd.xlane.f32.xlu0 %v2413
    %v2415 = vpop.xlane.xlu0 %2414
    %v2416 = vsel %vm1527, %v2348, 0.0
    %2417 = vadd.xlane.f32.xlu0 %v2416
    %v2418 = vpop.xlane.xlu0 %2417
    %v2419 = vsel %vm1527, %v2349, 0.0
    %2420 = vadd.xlane.f32.xlu0 %v2419
    %v2421 = vpop.xlane.xlu0 %2420
    %v2422 = vsel %vm1527, %v2350, 0.0
    %2423 = vadd.xlane.f32.xlu0 %v2422
    %v2424 = vpop.xlane.xlu0 %2423
    %v2425 = vsel %vm1527, %v2351, 0.0
    %2426 = vadd.xlane.f32.xlu0 %v2425
    %v2427 = vpop.xlane.xlu0 %2426
    %v2428 = vsel %vm1527, %v2352, 0.0
    %2429 = vadd.xlane.f32.xlu0 %v2428
    %v2430 = vpop.xlane.xlu0 %2429
    %v2431 = vsel %vm1527, %v2353, 0.0
    %2432 = vadd.xlane.f32.xlu0 %v2431
    %v2433 = vpop.xlane.xlu0 %2432
    %v2434 = vsel %vm1527, %v2354, 0.0
    %2435 = vadd.xlane.f32.xlu0 %v2434
    %v2436 = vpop.xlane.xlu0 %2435
    %v2437 = vsel %vm1527, %v2355, 0.0
    %2438 = vadd.xlane.f32.xlu0 %v2437
    %v2439 = vpop.xlane.xlu0 %2438
    %v2440 = vsel %vm1527, %v2356, 0.0
    %2441 = vadd.xlane.f32.xlu0 %v2440
    %v2442 = vpop.xlane.xlu0 %2441
    %v2443 = vsel %vm1527, %v2357, 0.0
    %2444 = vadd.xlane.f32.xlu0 %v2443
    %v2445 = vpop.xlane.xlu0 %2444
    %v2446 = vsel %vm1527, %v2358, 0.0
    %2447 = vadd.xlane.f32.xlu0 %v2446
    %v2448 = vpop.xlane.xlu0 %2447
    %v2449 = vsel %vm1527, %v2359, 0.0
    %2450 = vadd.xlane.f32.xlu0 %v2449
    %v2451 = vpop.xlane.xlu0 %2450
    %v2452 = vsel %vm1527, %v2360, 0.0
    %2453 = vadd.xlane.f32.xlu0 %v2452
    %v2454 = vpop.xlane.xlu0 %2453
    %v2455 = vsel %vm1527, %v2361, 0.0
    %2456 = vadd.xlane.f32.xlu0 %v2455
    %v2457 = vpop.xlane.xlu0 %2456
    %v2458 = vsub.f32 0.0, %v2364
    %v2459 = vsub.f32 0.0, %v2367
    %v2460 = vsub.f32 0.0, %v2370
    %v2461 = vsub.f32 0.0, %v2373
    %v2462 = vsub.f32 0.0, %v2376
    %v2463 = vsub.f32 0.0, %v2379
    %v2464 = vsub.f32 0.0, %v2382
    %v2465 = vsub.f32 0.0, %v2385
    %v2466 = vsub.f32 0.0, %v2388
    %v2467 = vsub.f32 0.0, %v2391
    %v2468 = vsub.f32 0.0, %v2394
    %v2469 = vsub.f32 0.0, %v2397
    %v2470 = vsub.f32 0.0, %v2400
    %v2471 = vsub.f32 0.0, %v2403
    %v2472 = vsub.f32 0.0, %v2406
    %v2473 = vsub.f32 0.0, %v2409
    %v2474 = vsub.f32 0.0, %v2412
    %v2475 = vsub.f32 0.0, %v2415
    %v2476 = vsub.f32 0.0, %v2418
    %v2477 = vsub.f32 0.0, %v2421
    %v2478 = vsub.f32 0.0, %v2424
    %v2479 = vsub.f32 0.0, %v2427
    %v2480 = vsub.f32 0.0, %v2430
    %v2481 = vsub.f32 0.0, %v2433
    %v2482 = vsub.f32 0.0, %v2436
    %v2483 = vsub.f32 0.0, %v2439
    %v2484 = vsub.f32 0.0, %v2442
    %v2485 = vsub.f32 0.0, %v2445
    %v2486 = vsub.f32 0.0, %v2448
    %v2487 = vsub.f32 0.0, %v2451
    %v2488 = vsub.f32 0.0, %v2454
    %v2489 = vsub.f32 0.0, %v2457
    %v2490 = vld [vmem:[#allocation3] sm:$0xff]
    %v2491 = vld [vmem:[#allocation3 + $0x8] sm:$0xff]
    %v2492 = vld [vmem:[#allocation3 + $0x10] sm:$0xff]
    %v2493 = vld [vmem:[#allocation3 + $0x18] sm:$0xff]
    %v2494 = vld [vmem:[#allocation3 + $0x20] sm:$0xff]
    %v2495 = vld [vmem:[#allocation3 + $0x28] sm:$0xff]
    %v2496 = vld [vmem:[#allocation3 + $0x30] sm:$0xff]
    %v2497 = vld [vmem:[#allocation3 + $0x38] sm:$0xff]
    %v2498 = vld [vmem:[#allocation3 + $0x40] sm:$0xff]
    %v2499 = vld [vmem:[#allocation3 + $0x48] sm:$0xff]
    %v2500 = vld [vmem:[#allocation3 + $0x50] sm:$0xff]
    %v2501 = vld [vmem:[#allocation3 + $0x58] sm:$0xff]
    %v2502 = vld [vmem:[#allocation3 + $0x60] sm:$0xff]
    %v2503 = vld [vmem:[#allocation3 + $0x68] sm:$0xff]
    %v2504 = vld [vmem:[#allocation3 + $0x70] sm:$0xff]
    %v2505 = vld [vmem:[#allocation3 + $0x78] sm:$0xff]
    %v2506 = vld [vmem:[#allocation3 + $0x80] sm:$0xff]
    %v2507 = vld [vmem:[#allocation3 + $0x88] sm:$0xff]
    %v2508 = vld [vmem:[#allocation3 + $0x90] sm:$0xff]
    %v2509 = vld [vmem:[#allocation3 + $0x98] sm:$0xff]
    %v2510 = vld [vmem:[#allocation3 + $0xa0] sm:$0xff]
    %v2511 = vld [vmem:[#allocation3 + $0xa8] sm:$0xff]
    %v2512 = vld [vmem:[#allocation3 + $0xb0] sm:$0xff]
    %v2513 = vld [vmem:[#allocation3 + $0xb8] sm:$0xff]
    %v2514 = vld [vmem:[#allocation3 + $0xc0] sm:$0xff]
    %v2515 = vld [vmem:[#allocation3 + $0xc8] sm:$0xff]
    %v2516 = vld [vmem:[#allocation3 + $0xd0] sm:$0xff]
    %v2517 = vld [vmem:[#allocation3 + $0xd8] sm:$0xff]
    %v2518 = vld [vmem:[#allocation3 + $0xe0] sm:$0xff]
    %v2519 = vld [vmem:[#allocation3 + $0xe8] sm:$0xff]
    %v2520 = vld [vmem:[#allocation3 + $0xf0] sm:$0xff]
    %v2521 = vld [vmem:[#allocation3 + $0xf8] sm:$0xff]
    %v2522 = vld [vmem:[#allocation3 + $0x100] sm:$0xff]
    %v2523 = vld [vmem:[#allocation3 + $0x108] sm:$0xff]
    %v2524 = vld [vmem:[#allocation3 + $0x110] sm:$0xff]
    %v2525 = vld [vmem:[#allocation3 + $0x118] sm:$0xff]
    %v2526 = vld [vmem:[#allocation3 + $0x120] sm:$0xff]
    %v2527 = vld [vmem:[#allocation3 + $0x128] sm:$0xff]
    %v2528 = vld [vmem:[#allocation3 + $0x130] sm:$0xff]
    %v2529 = vld [vmem:[#allocation3 + $0x138] sm:$0xff]
    %v2530 = vld [vmem:[#allocation3 + $0x140] sm:$0xff]
    %v2531 = vld [vmem:[#allocation3 + $0x148] sm:$0xff]
    %v2532 = vld [vmem:[#allocation3 + $0x150] sm:$0xff]
    %v2533 = vld [vmem:[#allocation3 + $0x158] sm:$0xff]
    %v2534 = vld [vmem:[#allocation3 + $0x160] sm:$0xff]
    %v2535 = vld [vmem:[#allocation3 + $0x168] sm:$0xff]
    %v2536 = vld [vmem:[#allocation3 + $0x170] sm:$0xff]
    %v2537 = vld [vmem:[#allocation3 + $0x178] sm:$0xff]
    %v2538 = vld [vmem:[#allocation3 + $0x180] sm:$0xff]
    %v2539 = vld [vmem:[#allocation3 + $0x188] sm:$0xff]
    %v2540 = vld [vmem:[#allocation3 + $0x190] sm:$0xff]
    %v2541 = vld [vmem:[#allocation3 + $0x198] sm:$0xff]
    %v2542 = vld [vmem:[#allocation3 + $0x1a0] sm:$0xff]
    %v2543 = vld [vmem:[#allocation3 + $0x1a8] sm:$0xff]
    %v2544 = vld [vmem:[#allocation3 + $0x1b0] sm:$0xff]
    %v2545 = vld [vmem:[#allocation3 + $0x1b8] sm:$0xff]
    %v2546 = vld [vmem:[#allocation3 + $0x1c0] sm:$0xff]
    %v2547 = vld [vmem:[#allocation3 + $0x1c8] sm:$0xff]
    %v2548 = vld [vmem:[#allocation3 + $0x1d0] sm:$0xff]
    %v2549 = vld [vmem:[#allocation3 + $0x1d8] sm:$0xff]
    %v2550 = vld [vmem:[#allocation3 + $0x1e0] sm:$0xff]
    %v2551 = vld [vmem:[#allocation3 + $0x1e8] sm:$0xff]
    %v2552 = vld [vmem:[#allocation3 + $0x1f0] sm:$0xff]
    %v2553 = vld [vmem:[#allocation3 + $0x1f8] sm:$0xff]
    %v2554 = vld [vmem:[%s9] sm:$0x3]
    %v2556 = vlaneseq
    %v2557 = vshrl.u32 %v2556, 7
    %v2558 = vsub.s32 0, %v2557
    %v2559 = vrot.slane %v2554, %v2558
    %v2560 = vlaneseq
    %v2561 = vshrl.u32 %v2560, 7
    %v2562 = vsub.s32 1, %v2561
    %v2563 = vrot.slane %v2554, %v2562
    %2566 = vmatprep.subr.mxu0 %v2491
    %2567 = vmatpush1.msra.mxu0 %v2490
    %2568 = vmatprep.subr.mxu0 %v2493
    %2569 = vmatpush1.msra.mxu0 %v2492
    %2570 = vmatprep.subr.mxu0 %v2495
    %2571 = vmatpush1.msra.mxu0 %v2494
    %2572 = vmatprep.subr.mxu0 %v2497
    %2573 = vmatpush1.msra.mxu0 %v2496
    %2574 = vmatprep.subr.mxu0 %v2499
    %2575 = vmatpush1.msra.mxu0 %v2498
    %2576 = vmatprep.subr.mxu0 %v2501
    %2577 = vmatpush1.msra.mxu0 %v2500
    %2578 = vmatprep.subr.mxu0 %v2503
    %2579 = vmatpush1.msra.mxu0 %v2502
    %2580 = vmatprep.subr.mxu0 %v2505
    %2581 = vmatpush1.msra.mxu0 %v2504
    %2582 = vmatprep.subr.mxu0 %v2507
    %2583 = vmatpush1.msra.mxu0 %v2506
    %2584 = vmatprep.subr.mxu0 %v2509
    %2585 = vmatpush1.msra.mxu0 %v2508
    %2586 = vmatprep.subr.mxu0 %v2511
    %2587 = vmatpush1.msra.mxu0 %v2510
    %2588 = vmatprep.subr.mxu0 %v2513
    %2589 = vmatpush1.msra.mxu0 %v2512
    %2590 = vmatprep.subr.mxu0 %v2515
    %2591 = vmatpush1.msra.mxu0 %v2514
    %2592 = vmatprep.subr.mxu0 %v2517
    %2593 = vmatpush1.msra.mxu0 %v2516
    %2594 = vmatprep.subr.mxu0 %v2519
    %2595 = vmatpush1.msra.mxu0 %v2518
    %2596 = vmatprep.subr.mxu0 %v2521
    %2597 = vmatpush1.msra.mxu0 %v2520
    %2598 = vmatprep.subr.mxu0 %v2523
    %2599 = vmatpush1.msra.mxu0 %v2522
    %2600 = vmatprep.subr.mxu0 %v2525
    %2601 = vmatpush1.msra.mxu0 %v2524
    %2602 = vmatprep.subr.mxu0 %v2527
    %2603 = vmatpush1.msra.mxu0 %v2526
    %2604 = vmatprep.subr.mxu0 %v2529
    %2605 = vmatpush1.msra.mxu0 %v2528
    %2606 = vmatprep.subr.mxu0 %v2531
    %2607 = vmatpush1.msra.mxu0 %v2530
    %2608 = vmatprep.subr.mxu0 %v2533
    %2609 = vmatpush1.msra.mxu0 %v2532
    %2610 = vmatprep.subr.mxu0 %v2535
    %2611 = vmatpush1.msra.mxu0 %v2534
    %2612 = vmatprep.subr.mxu0 %v2537
    %2613 = vmatpush1.msra.mxu0 %v2536
    %2614 = vmatprep.subr.mxu0 %v2539
    %2615 = vmatpush1.msra.mxu0 %v2538
    %2616 = vmatprep.subr.mxu0 %v2541
    %2617 = vmatpush1.msra.mxu0 %v2540
    %2618 = vmatprep.subr.mxu0 %v2543
    %2619 = vmatpush1.msra.mxu0 %v2542
    %2620 = vmatprep.subr.mxu0 %v2545
    %2621 = vmatpush1.msra.mxu0 %v2544
    %2622 = vmatprep.subr.mxu0 %v2547
    %2623 = vmatpush1.msra.mxu0 %v2546
    %2624 = vmatprep.subr.mxu0 %v2549
    %2625 = vmatpush1.msra.mxu0 %v2548
    %2626 = vmatprep.subr.mxu0 %v2551
    %2627 = vmatpush1.msra.mxu0 %v2550
    %2628 = vmatprep.subr.mxu0 %v2553
    %2629 = vmatpush1.msra.mxu0 %v2552
    %2630 = vmatprep.mubr.f32.mxu0 %v741
    %2631 = vmatmul.mubr.f32.gmra.mrb[0].mxu0 %v740
    %v2632 = vpop.f32.mrb[0].mxu0
    %v2633 = vadd.f32 %v2559, %v2632
    %v2634 = vpop.f32.mrb[0].mxu0
    %v2635 = vadd.f32 %v2563, %v2634
    %2636 = vmatprep.mubr.f32.mxu0 %v745
    %2637 = vmatmul.mubr.f32.gmra.mrb[0].mxu0 %v744
    %v2638 = vpop.f32.mrb[0].mxu0
    %v2639 = vadd.f32 %v2559, %v2638
    %v2640 = vpop.f32.mrb[0].mxu0
    %v2641 = vadd.f32 %v2563, %v2640
    %2642 = vmatprep.mubr.f32.mxu0 %v749
    %2643 = vmatmul.mubr.f32.gmra.mrb[0].mxu0 %v748
    %v2644 = vpop.f32.mrb[0].mxu0
    %v2645 = vadd.f32 %v2559, %v2644
    %v2646 = vpop.f32.mrb[0].mxu0
    %v2647 = vadd.f32 %v2563, %v2646
    %2648 = vmatprep.mubr.f32.mxu0 %v753
    %2649 = vmatmul.mubr.f32.gmra.mrb[0].mxu0 %v752
    %v2650 = vpop.f32.mrb[0].mxu0
    %v2651 = vadd.f32 %v2559, %v2650
    %v2652 = vpop.f32.mrb[0].mxu0
    %v2653 = vadd.f32 %v2563, %v2652
    %2654 = vmatprep.mubr.f32.mxu0 %v757
    %2655 = vmatmul.mubr.f32.gmra.mrb[0].mxu0 %v756
    %v2656 = vpop.f32.mrb[0].mxu0
    %v2657 = vadd.f32 %v2559, %v2656
    %v2658 = vpop.f32.mrb[0].mxu0
    %v2659 = vadd.f32 %v2563, %v2658
    %2660 = vmatprep.mubr.f32.mxu0 %v761
    %2661 = vmatmul.mubr.f32.gmra.mrb[0].mxu0 %v760
    %v2662 = vpop.f32.mrb[0].mxu0
    %v2663 = vadd.f32 %v2559, %v2662
    %v2664 = vpop.f32.mrb[0].mxu0
    %v2665 = vadd.f32 %v2563, %v2664
    %2666 = vmatprep.mubr.f32.mxu0 %v765
    %2667 = vmatmul.mubr.f32.gmra.mrb[0].mxu0 %v764
    %v2668 = vpop.f32.mrb[0].mxu0
    %v2669 = vadd.f32 %v2559, %v2668
    %v2670 = vpop.f32.mrb[0].mxu0
    %v2671 = vadd.f32 %v2563, %v2670
    %2672 = vmatprep.mubr.f32.mxu0 %v769
    %2673 = vmatmul.mubr.f32.gmra.mrb[0].mxu0 %v768
    %v2674 = vpop.f32.mrb[0].mxu0
    %v2675 = vadd.f32 %v2559, %v2674
    %v2676 = vpop.f32.mrb[0].mxu0
    %v2677 = vadd.f32 %v2563, %v2676
    %2678 = vmatprep.mubr.f32.mxu0 %v773
    %2679 = vmatmul.mubr.f32.gmra.mrb[0].mxu0 %v772
    %v2680 = vpop.f32.mrb[0].mxu0
    %v2681 = vadd.f32 %v2559, %v2680
    %v2682 = vpop.f32.mrb[0].mxu0
    %v2683 = vadd.f32 %v2563, %v2682
    %2684 = vmatprep.mubr.f32.mxu0 %v777
    %2685 = vmatmul.mubr.f32.gmra.mrb[0].mxu0 %v776
    %v2686 = vpop.f32.mrb[0].mxu0
    %v2687 = vadd.f32 %v2559, %v2686
    %v2688 = vpop.f32.mrb[0].mxu0
    %v2689 = vadd.f32 %v2563, %v2688
    %2690 = vmatprep.mubr.f32.mxu0 %v781
    %2691 = vmatmul.mubr.f32.gmra.mrb[0].mxu0 %v780
    %v2692 = vpop.f32.mrb[0].mxu0
    %v2693 = vadd.f32 %v2559, %v2692
    %v2694 = vpop.f32.mrb[0].mxu0
    %v2695 = vadd.f32 %v2563, %v2694
    %2696 = vmatprep.mubr.f32.mxu0 %v785
    %2697 = vmatmul.mubr.f32.gmra.mrb[0].mxu0 %v784
    %v2698 = vpop.f32.mrb[0].mxu0
    %v2699 = vadd.f32 %v2559, %v2698
    %v2700 = vpop.f32.mrb[0].mxu0
    %v2701 = vadd.f32 %v2563, %v2700
    %2702 = vmatprep.mubr.f32.mxu0 %v789
    %2703 = vmatmul.mubr.f32.gmra.mrb[0].mxu0 %v788
    %v2704 = vpop.f32.mrb[0].mxu0
    %v2705 = vadd.f32 %v2559, %v2704
    %v2706 = vpop.f32.mrb[0].mxu0
    %v2707 = vadd.f32 %v2563, %v2706
    %2708 = vmatprep.mubr.f32.mxu0 %v793
    %2709 = vmatmul.mubr.f32.gmra.mrb[0].mxu0 %v792
    %v2710 = vpop.f32.mrb[0].mxu0
    %v2711 = vadd.f32 %v2559, %v2710
    %v2712 = vpop.f32.mrb[0].mxu0
    %v2713 = vadd.f32 %v2563, %v2712
    %2714 = vmatprep.mubr.f32.mxu0 %v797
    %2715 = vmatmul.mubr.f32.gmra.mrb[0].mxu0 %v796
    %v2716 = vpop.f32.mrb[0].mxu0
    %v2717 = vadd.f32 %v2559, %v2716
    %v2718 = vpop.f32.mrb[0].mxu0
    %v2719 = vadd.f32 %v2563, %v2718
    %2720 = vmatprep.mubr.f32.mxu0 %v801
    %2721 = vmatmul.mubr.f32.gmra.mrb[0].mxu0 %v800
    %v2722 = vpop.f32.mrb[0].mxu0
    %v2723 = vadd.f32 %v2559, %v2722
    %v2724 = vpop.f32.mrb[0].mxu0
    %v2725 = vadd.f32 %v2563, %v2724
    %2726 = vmatprep.mubr.f32.mxu0 %v805
    %2727 = vmatmul.mubr.f32.gmra.mrb[0].mxu0 %v804
    %v2728 = vpop.f32.mrb[0].mxu0
    %v2729 = vadd.f32 %v2559, %v2728
    %v2730 = vpop.f32.mrb[0].mxu0
    %v2731 = vadd.f32 %v2563, %v2730
    %2732 = vmatprep.mubr.f32.mxu0 %v809
    %2733 = vmatmul.mubr.f32.gmra.mrb[0].mxu0 %v808
    %v2734 = vpop.f32.mrb[0].mxu0
    %v2735 = vadd.f32 %v2559, %v2734
    %v2736 = vpop.f32.mrb[0].mxu0
    %v2737 = vadd.f32 %v2563, %v2736
    %2738 = vmatprep.mubr.f32.mxu0 %v813
    %2739 = vmatmul.mubr.f32.gmra.mrb[0].mxu0 %v812
    %v2740 = vpop.f32.mrb[0].mxu0
    %v2741 = vadd.f32 %v2559, %v2740
    %v2742 = vpop.f32.mrb[0].mxu0
    %v2743 = vadd.f32 %v2563, %v2742
    %2744 = vmatprep.mubr.f32.mxu0 %v817
    %2745 = vmatmul.mubr.f32.gmra.mrb[0].mxu0 %v816
    %v2746 = vpop.f32.mrb[0].mxu0
    %v2747 = vadd.f32 %v2559, %v2746
    %v2748 = vpop.f32.mrb[0].mxu0
    %v2749 = vadd.f32 %v2563, %v2748
    %2750 = vmatprep.mubr.f32.mxu0 %v821
    %2751 = vmatmul.mubr.f32.gmra.mrb[0].mxu0 %v820
    %v2752 = vpop.f32.mrb[0].mxu0
    %v2753 = vadd.f32 %v2559, %v2752
    %v2754 = vpop.f32.mrb[0].mxu0
    %v2755 = vadd.f32 %v2563, %v2754
    %2756 = vmatprep.mubr.f32.mxu0 %v825
    %2757 = vmatmul.mubr.f32.gmra.mrb[0].mxu0 %v824
    %v2758 = vpop.f32.mrb[0].mxu0
    %v2759 = vadd.f32 %v2559, %v2758
    %v2760 = vpop.f32.mrb[0].mxu0
    %v2761 = vadd.f32 %v2563, %v2760
    %2762 = vmatprep.mubr.f32.mxu0 %v829
    %2763 = vmatmul.mubr.f32.gmra.mrb[0].mxu0 %v828
    %v2764 = vpop.f32.mrb[0].mxu0
    %v2765 = vadd.f32 %v2559, %v2764
    %v2766 = vpop.f32.mrb[0].mxu0
    %v2767 = vadd.f32 %v2563, %v2766
    %2768 = vmatprep.mubr.f32.mxu0 %v833
    %2769 = vmatmul.mubr.f32.gmra.mrb[0].mxu0 %v832
    %v2770 = vpop.f32.mrb[0].mxu0
    %v2771 = vadd.f32 %v2559, %v2770
    %v2772 = vpop.f32.mrb[0].mxu0
    %v2773 = vadd.f32 %v2563, %v2772
    %2774 = vmatprep.mubr.f32.mxu0 %v837
    %2775 = vmatmul.mubr.f32.gmra.mrb[0].mxu0 %v836
    %v2776 = vpop.f32.mrb[0].mxu0
    %v2777 = vadd.f32 %v2559, %v2776
    %v2778 = vpop.f32.mrb[0].mxu0
    %v2779 = vadd.f32 %v2563, %v2778
    %2780 = vmatprep.mubr.f32.mxu0 %v841
    %2781 = vmatmul.mubr.f32.gmra.mrb[0].mxu0 %v840
    %v2782 = vpop.f32.mrb[0].mxu0
    %v2783 = vadd.f32 %v2559, %v2782
    %v2784 = vpop.f32.mrb[0].mxu0
    %v2785 = vadd.f32 %v2563, %v2784
    %2786 = vmatprep.mubr.f32.mxu0 %v845
    %2787 = vmatmul.mubr.f32.gmra.mrb[0].mxu0 %v844
    %v2788 = vpop.f32.mrb[0].mxu0
    %v2789 = vadd.f32 %v2559, %v2788
    %v2790 = vpop.f32.mrb[0].mxu0
    %v2791 = vadd.f32 %v2563, %v2790
    %2792 = vmatprep.mubr.f32.mxu0 %v849
    %2793 = vmatmul.mubr.f32.gmra.mrb[0].mxu0 %v848
    %v2794 = vpop.f32.mrb[0].mxu0
    %v2795 = vadd.f32 %v2559, %v2794
    %v2796 = vpop.f32.mrb[0].mxu0
    %v2797 = vadd.f32 %v2563, %v2796
    %2798 = vmatprep.mubr.f32.mxu0 %v853
    %2799 = vmatmul.mubr.f32.gmra.mrb[0].mxu0 %v852
    %v2800 = vpop.f32.mrb[0].mxu0
    %v2801 = vadd.f32 %v2559, %v2800
    %v2802 = vpop.f32.mrb[0].mxu0
    %v2803 = vadd.f32 %v2563, %v2802
    %2804 = vmatprep.mubr.f32.mxu0 %v857
    %2805 = vmatmul.mubr.f32.gmra.mrb[0].mxu0 %v856
    %v2806 = vpop.f32.mrb[0].mxu0
    %v2807 = vadd.f32 %v2559, %v2806
    %v2808 = vpop.f32.mrb[0].mxu0
    %v2809 = vadd.f32 %v2563, %v2808
    %2810 = vmatprep.mubr.f32.mxu0 %v861
    %2811 = vmatmul.mubr.f32.gmra.mrb[0].mxu0 %v860
    %v2812 = vpop.f32.mrb[0].mxu0
    %v2813 = vadd.f32 %v2559, %v2812
    %v2814 = vpop.f32.mrb[0].mxu0
    %v2815 = vadd.f32 %v2563, %v2814
    %2816 = vmatprep.mubr.f32.mxu0 %v865
    %2817 = vmatmul.mubr.f32.gmra.mrb[0].mxu0 %v864
    %v2818 = vpop.f32.mrb[0].mxu0
    %v2819 = vadd.f32 %v2559, %v2818
    %v2820 = vpop.f32.mrb[0].mxu0
    %v2821 = vadd.f32 %v2563, %v2820
    %2822 = vdwg.mxu0
    %v2823 = vtanh.pop %v2633
    %v2824 = vtanh.pop %v2635
    %v2825 = vtanh.pop %v2639
    %v2826 = vtanh.pop %v2641
    %v2827 = vtanh.pop %v2645
    %v2828 = vtanh.pop %v2647
    %v2829 = vtanh.pop %v2651
    %v2830 = vtanh.pop %v2653
    %v2831 = vtanh.pop %v2657
    %v2832 = vtanh.pop %v2659
    %v2833 = vtanh.pop %v2663
    %v2834 = vtanh.pop %v2665
    %v2835 = vtanh.pop %v2669
    %v2836 = vtanh.pop %v2671
    %v2837 = vtanh.pop %v2675
    %v2838 = vtanh.pop %v2677
    %v2839 = vtanh.pop %v2681
    %v2840 = vtanh.pop %v2683
    %v2841 = vtanh.pop %v2687
    %v2842 = vtanh.pop %v2689
    %v2843 = vtanh.pop %v2693
    %v2844 = vtanh.pop %v2695
    %v2845 = vtanh.pop %v2699
    %v2846 = vtanh.pop %v2701
    %v2847 = vtanh.pop %v2705
    %v2848 = vtanh.pop %v2707
    %v2849 = vtanh.pop %v2711
    %v2850 = vtanh.pop %v2713
    %v2851 = vtanh.pop %v2717
    %v2852 = vtanh.pop %v2719
    %v2853 = vtanh.pop %v2723
    %v2854 = vtanh.pop %v2725
    %v2855 = vtanh.pop %v2729
    %v2856 = vtanh.pop %v2731
    %v2857 = vtanh.pop %v2735
    %v2858 = vtanh.pop %v2737
    %v2859 = vtanh.pop %v2741
    %v2860 = vtanh.pop %v2743
    %v2861 = vtanh.pop %v2747
    %v2862 = vtanh.pop %v2749
    %v2863 = vtanh.pop %v2753
    %v2864 = vtanh.pop %v2755
    %v2865 = vtanh.pop %v2759
    %v2866 = vtanh.pop %v2761
    %v2867 = vtanh.pop %v2765
    %v2868 = vtanh.pop %v2767
    %v2869 = vtanh.pop %v2771
    %v2870 = vtanh.pop %v2773
    %v2871 = vtanh.pop %v2777
    %v2872 = vtanh.pop %v2779
    %v2873 = vtanh.pop %v2783
    %v2874 = vtanh.pop %v2785
    %v2875 = vtanh.pop %v2789
    %v2876 = vtanh.pop %v2791
    %v2877 = vtanh.pop %v2795
    %v2878 = vtanh.pop %v2797
    %v2879 = vtanh.pop %v2801
    %v2880 = vtanh.pop %v2803
    %v2881 = vtanh.pop %v2807
    %v2882 = vtanh.pop %v2809
    %v2883 = vtanh.pop %v2813
    %v2884 = vtanh.pop %v2815
    %v2885 = vtanh.pop %v2819
    %v2886 = vtanh.pop %v2821
    %v2887 = vld [vmem:[%s10] sm:$0x3]
    %v2889 = vlaneseq
    %v2890 = vshrl.u32 %v2889, 7
    %v2891 = vsub.s32 0, %v2890
    %v2892 = vrot.slane %v2887, %v2891
    %v2893 = vlaneseq
    %v2894 = vshrl.u32 %v2893, 7
    %v2895 = vsub.s32 1, %v2894
    %v2896 = vrot.slane %v2887, %v2895
    %v2899 = vmul.f32 %v2823, %v2892
    %v2900 = vmul.f32 %v2824, %v2896
    %v2901 = vmul.f32 %v2825, %v2892
    %v2902 = vmul.f32 %v2826, %v2896
    %v2903 = vmul.f32 %v2827, %v2892
    %v2904 = vmul.f32 %v2828, %v2896
    %v2905 = vmul.f32 %v2829, %v2892
    %v2906 = vmul.f32 %v2830, %v2896
    %v2907 = vmul.f32 %v2831, %v2892
    %v2908 = vmul.f32 %v2832, %v2896
    %v2909 = vmul.f32 %v2833, %v2892
    %v2910 = vmul.f32 %v2834, %v2896
    %v2911 = vmul.f32 %v2835, %v2892
    %v2912 = vmul.f32 %v2836, %v2896
    %v2913 = vmul.f32 %v2837, %v2892
    %v2914 = vmul.f32 %v2838, %v2896
    %v2915 = vmul.f32 %v2839, %v2892
    %v2916 = vmul.f32 %v2840, %v2896
    %v2917 = vmul.f32 %v2841, %v2892
    %v2918 = vmul.f32 %v2842, %v2896
    %v2919 = vmul.f32 %v2843, %v2892
    %v2920 = vmul.f32 %v2844, %v2896
    %v2921 = vmul.f32 %v2845, %v2892
    %v2922 = vmul.f32 %v2846, %v2896
    %v2923 = vmul.f32 %v2847, %v2892
    %v2924 = vmul.f32 %v2848, %v2896
    %v2925 = vmul.f32 %v2849, %v2892
    %v2926 = vmul.f32 %v2850, %v2896
    %v2927 = vmul.f32 %v2851, %v2892
    %v2928 = vmul.f32 %v2852, %v2896
    %v2929 = vmul.f32 %v2853, %v2892
    %v2930 = vmul.f32 %v2854, %v2896
    %v2931 = vmul.f32 %v2855, %v2892
    %v2932 = vmul.f32 %v2856, %v2896
    %v2933 = vmul.f32 %v2857, %v2892
    %v2934 = vmul.f32 %v2858, %v2896
    %v2935 = vmul.f32 %v2859, %v2892
    %v2936 = vmul.f32 %v2860, %v2896
    %v2937 = vmul.f32 %v2861, %v2892
    %v2938 = vmul.f32 %v2862, %v2896
    %v2939 = vmul.f32 %v2863, %v2892
    %v2940 = vmul.f32 %v2864, %v2896
    %v2941 = vmul.f32 %v2865, %v2892
    %v2942 = vmul.f32 %v2866, %v2896
    %v2943 = vmul.f32 %v2867, %v2892
    %v2944 = vmul.f32 %v2868, %v2896
    %v2945 = vmul.f32 %v2869, %v2892
    %v2946 = vmul.f32 %v2870, %v2896
    %v2947 = vmul.f32 %v2871, %v2892
    %v2948 = vmul.f32 %v2872, %v2896
    %v2949 = vmul.f32 %v2873, %v2892
    %v2950 = vmul.f32 %v2874, %v2896
    %v2951 = vmul.f32 %v2875, %v2892
    %v2952 = vmul.f32 %v2876, %v2896
    %v2953 = vmul.f32 %v2877, %v2892
    %v2954 = vmul.f32 %v2878, %v2896
    %v2955 = vmul.f32 %v2879, %v2892
    %v2956 = vmul.f32 %v2880, %v2896
    %v2957 = vmul.f32 %v2881, %v2892
    %v2958 = vmul.f32 %v2882, %v2896
    %v2959 = vmul.f32 %v2883, %v2892
    %v2960 = vmul.f32 %v2884, %v2896
    %v2961 = vmul.f32 %v2885, %v2892
    %v2962 = vmul.f32 %v2886, %v2896
    %v2963 = vadd.f32 %v2899, %v2900
    %2964 = vadd.xlane.f32.xlu0 %v2963
    %v2965 = vpop.xlane.xlu0 %2964
    %v2966 = vadd.f32 %v2901, %v2902
    %2967 = vadd.xlane.f32.xlu0 %v2966
    %v2968 = vpop.xlane.xlu0 %2967
    %v2969 = vadd.f32 %v2903, %v2904
    %2970 = vadd.xlane.f32.xlu0 %v2969
    %v2971 = vpop.xlane.xlu0 %2970
    %v2972 = vadd.f32 %v2905, %v2906
    %2973 = vadd.xlane.f32.xlu0 %v2972
    %v2974 = vpop.xlane.xlu0 %2973
    %v2975 = vadd.f32 %v2907, %v2908
    %2976 = vadd.xlane.f32.xlu0 %v2975
    %v2977 = vpop.xlane.xlu0 %2976
    %v2978 = vadd.f32 %v2909, %v2910
    %2979 = vadd.xlane.f32.xlu0 %v2978
    %v2980 = vpop.xlane.xlu0 %2979
    %v2981 = vadd.f32 %v2911, %v2912
    %2982 = vadd.xlane.f32.xlu0 %v2981
    %v2983 = vpop.xlane.xlu0 %2982
    %v2984 = vadd.f32 %v2913, %v2914
    %2985 = vadd.xlane.f32.xlu0 %v2984
    %v2986 = vpop.xlane.xlu0 %2985
    %v2987 = vadd.f32 %v2915, %v2916
    %2988 = vadd.xlane.f32.xlu0 %v2987
    %v2989 = vpop.xlane.xlu0 %2988
    %v2990 = vadd.f32 %v2917, %v2918
    %2991 = vadd.xlane.f32.xlu0 %v2990
    %v2992 = vpop.xlane.xlu0 %2991
    %v2993 = vadd.f32 %v2919, %v2920
    %2994 = vadd.xlane.f32.xlu0 %v2993
    %v2995 = vpop.xlane.xlu0 %2994
    %v2996 = vadd.f32 %v2921, %v2922
    %2997 = vadd.xlane.f32.xlu0 %v2996
    %v2998 = vpop.xlane.xlu0 %2997
    %v2999 = vadd.f32 %v2923, %v2924
    %3000 = vadd.xlane.f32.xlu0 %v2999
    %v3001 = vpop.xlane.xlu0 %3000
    %v3002 = vadd.f32 %v2925, %v2926
    %3003 = vadd.xlane.f32.xlu0 %v3002
    %v3004 = vpop.xlane.xlu0 %3003
    %v3005 = vadd.f32 %v2927, %v2928
    %3006 = vadd.xlane.f32.xlu0 %v3005
    %v3007 = vpop.xlane.xlu0 %3006
    %v3008 = vadd.f32 %v2929, %v2930
    %3009 = vadd.xlane.f32.xlu0 %v3008
    %v3010 = vpop.xlane.xlu0 %3009
    %v3011 = vadd.f32 %v2931, %v2932
    %3012 = vadd.xlane.f32.xlu0 %v3011
    %v3013 = vpop.xlane.xlu0 %3012
    %v3014 = vadd.f32 %v2933, %v2934
    %3015 = vadd.xlane.f32.xlu0 %v3014
    %v3016 = vpop.xlane.xlu0 %3015
    %v3017 = vadd.f32 %v2935, %v2936
    %3018 = vadd.xlane.f32.xlu0 %v3017
    %v3019 = vpop.xlane.xlu0 %3018
    %v3020 = vadd.f32 %v2937, %v2938
    %3021 = vadd.xlane.f32.xlu0 %v3020
    %v3022 = vpop.xlane.xlu0 %3021
    %v3023 = vadd.f32 %v2939, %v2940
    %3024 = vadd.xlane.f32.xlu0 %v3023
    %v3025 = vpop.xlane.xlu0 %3024
    %v3026 = vadd.f32 %v2941, %v2942
    %3027 = vadd.xlane.f32.xlu0 %v3026
    %v3028 = vpop.xlane.xlu0 %3027
    %v3029 = vadd.f32 %v2943, %v2944
    %3030 = vadd.xlane.f32.xlu0 %v3029
    %v3031 = vpop.xlane.xlu0 %3030
    %v3032 = vadd.f32 %v2945, %v2946
    %3033 = vadd.xlane.f32.xlu0 %v3032
    %v3034 = vpop.xlane.xlu0 %3033
    %v3035 = vadd.f32 %v2947, %v2948
    %3036 = vadd.xlane.f32.xlu0 %v3035
    %v3037 = vpop.xlane.xlu0 %3036
    %v3038 = vadd.f32 %v2949, %v2950
    %3039 = vadd.xlane.f32.xlu0 %v3038
    %v3040 = vpop.xlane.xlu0 %3039
    %v3041 = vadd.f32 %v2951, %v2952
    %3042 = vadd.xlane.f32.xlu0 %v3041
    %v3043 = vpop.xlane.xlu0 %3042
    %v3044 = vadd.f32 %v2953, %v2954
    %3045 = vadd.xlane.f32.xlu0 %v3044
    %v3046 = vpop.xlane.xlu0 %3045
    %v3047 = vadd.f32 %v2955, %v2956
    %3048 = vadd.xlane.f32.xlu0 %v3047
    %v3049 = vpop.xlane.xlu0 %3048
    %v3050 = vadd.f32 %v2957, %v2958
    %3051 = vadd.xlane.f32.xlu0 %v3050
    %v3052 = vpop.xlane.xlu0 %3051
    %v3053 = vadd.f32 %v2959, %v2960
    %3054 = vadd.xlane.f32.xlu0 %v3053
    %v3055 = vpop.xlane.xlu0 %3054
    %v3056 = vadd.f32 %v2961, %v2962
    %3057 = vadd.xlane.f32.xlu0 %v3056
    %v3058 = vpop.xlane.xlu0 %3057
    %v3059 = vld [vmem:[#allocation2] sm:$0x1]
    %v3061 = vlaneseq
    %v3062 = vshrl.u32 %v3061, 7
    %v3063 = vsub.s32 0, %v3062
    %v3064 = vrot.slane %v3059, %v3063
    %v3066 = vadd.f32 %v2965, %v3064
    %v3067 = vadd.f32 %v2968, %v3064
    %v3068 = vadd.f32 %v2971, %v3064
    %v3069 = vadd.f32 %v2974, %v3064
    %v3070 = vadd.f32 %v2977, %v3064
    %v3071 = vadd.f32 %v2980, %v3064
    %v3072 = vadd.f32 %v2983, %v3064
    %v3073 = vadd.f32 %v2986, %v3064
    %v3074 = vadd.f32 %v2989, %v3064
    %v3075 = vadd.f32 %v2992, %v3064
    %v3076 = vadd.f32 %v2995, %v3064
    %v3077 = vadd.f32 %v2998, %v3064
    %v3078 = vadd.f32 %v3001, %v3064
    %v3079 = vadd.f32 %v3004, %v3064
    %v3080 = vadd.f32 %v3007, %v3064
    %v3081 = vadd.f32 %v3010, %v3064
    %v3082 = vadd.f32 %v3013, %v3064
    %v3083 = vadd.f32 %v3016, %v3064
    %v3084 = vadd.f32 %v3019, %v3064
    %v3085 = vadd.f32 %v3022, %v3064
    %v3086 = vadd.f32 %v3025, %v3064
    %v3087 = vadd.f32 %v3028, %v3064
    %v3088 = vadd.f32 %v3031, %v3064
    %v3089 = vadd.f32 %v3034, %v3064
    %v3090 = vadd.f32 %v3037, %v3064
    %v3091 = vadd.f32 %v3040, %v3064
    %v3092 = vadd.f32 %v3043, %v3064
    %v3093 = vadd.f32 %v3046, %v3064
    %v3094 = vadd.f32 %v3049, %v3064
    %v3095 = vadd.f32 %v3052, %v3064
    %v3096 = vadd.f32 %v3055, %v3064
    %v3097 = vadd.f32 %v3058, %v3064
    %vm3098 = vcmp.eq.s32.totalorder %v1977, 0
    %v3099 = vsel %vm3098, %v2236, 0.0
    %v3100 = vsel %vm3098, %v2239, 0.0
    %v3101 = vsel %vm3098, %v2242, 0.0
    %v3102 = vsel %vm3098, %v2245, 0.0
    %v3103 = vsel %vm3098, %v2248, 0.0
    %v3104 = vsel %vm3098, %v2251, 0.0
    %v3105 = vsel %vm3098, %v2254, 0.0
    %v3106 = vsel %vm3098, %v2257, 0.0
    %v3107 = vsel %vm3098, %v2260, 0.0
    %v3108 = vsel %vm3098, %v2263, 0.0
    %v3109 = vsel %vm3098, %v2266, 0.0
    %v3110 = vsel %vm3098, %v2269, 0.0
    %v3111 = vsel %vm3098, %v2272, 0.0
    %v3112 = vsel %vm3098, %v2275, 0.0
    %v3113 = vsel %vm3098, %v2278, 0.0
    %v3114 = vsel %vm3098, %v2281, 0.0
    %v3115 = vsel %vm3098, %v2284, 0.0
    %v3116 = vsel %vm3098, %v2287, 0.0
    %v3117 = vsel %vm3098, %v2290, 0.0
    %v3118 = vsel %vm3098, %v2293, 0.0
    %v3119 = vsel %vm3098, %v2296, 0.0
    %v3120 = vsel %vm3098, %v2299, 0.0
    %v3121 = vsel %vm3098, %v2302, 0.0
    %v3122 = vsel %vm3098, %v2305, 0.0
    %v3123 = vsel %vm3098, %v2308, 0.0
    %v3124 = vsel %vm3098, %v2311, 0.0
    %v3125 = vsel %vm3098, %v2314, 0.0
    %v3126 = vsel %vm3098, %v2317, 0.0
    %v3127 = vsel %vm3098, %v2320, 0.0
    %v3128 = vsel %vm3098, %v2323, 0.0
    %v3129 = vsel %vm3098, %v2326, 0.0
    %v3130 = vsel %vm3098, %v2329, 0.0
    %vm3131 = vcmp.eq.s32.totalorder %v1977, 1
    %v3132 = vsel %vm3131, %v2458, 0.0
    %v3133 = vsel %vm3131, %v2459, 0.0
    %v3134 = vsel %vm3131, %v2460, 0.0
    %v3135 = vsel %vm3131, %v2461, 0.0
    %v3136 = vsel %vm3131, %v2462, 0.0
    %v3137 = vsel %vm3131, %v2463, 0.0
    %v3138 = vsel %vm3131, %v2464, 0.0
    %v3139 = vsel %vm3131, %v2465, 0.0
    %v3140 = vsel %vm3131, %v2466, 0.0
    %v3141 = vsel %vm3131, %v2467, 0.0
    %v3142 = vsel %vm3131, %v2468, 0.0
    %v3143 = vsel %vm3131, %v2469, 0.0
    %v3144 = vsel %vm3131, %v2470, 0.0
    %v3145 = vsel %vm3131, %v2471, 0.0
    %v3146 = vsel %vm3131, %v2472, 0.0
    %v3147 = vsel %vm3131, %v2473, 0.0
    %v3148 = vsel %vm3131, %v2474, 0.0
    %v3149 = vsel %vm3131, %v2475, 0.0
    %v3150 = vsel %vm3131, %v2476, 0.0
    %v3151 = vsel %vm3131, %v2477, 0.0
    %v3152 = vsel %vm3131, %v2478, 0.0
    %v3153 = vsel %vm3131, %v2479, 0.0
    %v3154 = vsel %vm3131, %v2480, 0.0
    %v3155 = vsel %vm3131, %v2481, 0.0
    %v3156 = vsel %vm3131, %v2482, 0.0
    %v3157 = vsel %vm3131, %v2483, 0.0
    %v3158 = vsel %vm3131, %v2484, 0.0
    %v3159 = vsel %vm3131, %v2485, 0.0
    %v3160 = vsel %vm3131, %v2486, 0.0
    %v3161 = vsel %vm3131, %v2487, 0.0
    %v3162 = vsel %vm3131, %v2488, 0.0
    %v3163 = vsel %vm3131, %v2489, 0.0
    %v3164 = vadd.f32 %v3099, %v3132
    %v3165 = vadd.f32 %v3100, %v3133
    %v3166 = vadd.f32 %v3101, %v3134
    %v3167 = vadd.f32 %v3102, %v3135
    %v3168 = vadd.f32 %v3103, %v3136
    %v3169 = vadd.f32 %v3104, %v3137
    %v3170 = vadd.f32 %v3105, %v3138
    %v3171 = vadd.f32 %v3106, %v3139
    %v3172 = vadd.f32 %v3107, %v3140
    %v3173 = vadd.f32 %v3108, %v3141
    %v3174 = vadd.f32 %v3109, %v3142
    %v3175 = vadd.f32 %v3110, %v3143
    %v3176 = vadd.f32 %v3111, %v3144
    %v3177 = vadd.f32 %v3112, %v3145
    %v3178 = vadd.f32 %v3113, %v3146
    %v3179 = vadd.f32 %v3114, %v3147
    %v3180 = vadd.f32 %v3115, %v3148
    %v3181 = vadd.f32 %v3116, %v3149
    %v3182 = vadd.f32 %v3117, %v3150
    %v3183 = vadd.f32 %v3118, %v3151
    %v3184 = vadd.f32 %v3119, %v3152
    %v3185 = vadd.f32 %v3120, %v3153
    %v3186 = vadd.f32 %v3121, %v3154
    %v3187 = vadd.f32 %v3122, %v3155
    %v3188 = vadd.f32 %v3123, %v3156
    %v3189 = vadd.f32 %v3124, %v3157
    %v3190 = vadd.f32 %v3125, %v3158
    %v3191 = vadd.f32 %v3126, %v3159
    %v3192 = vadd.f32 %v3127, %v3160
    %v3193 = vadd.f32 %v3128, %v3161
    %v3194 = vadd.f32 %v3129, %v3162
    %v3195 = vadd.f32 %v3130, %v3163
    %vm3196 = vcmp.eq.s32.totalorder %v1977, 2
    %3198 = vset.pattern.permute.xlu0 0
    %3199 = vperm.xlu0 %3198, %v3066
    %v3200 = vpop.permute.xlu0 %3199
    %3203 = vset.pattern.permute.xlu0 0
    %3204 = vperm.xlu0 %3203, %v3067
    %v3205 = vpop.permute.xlu0 %3204
    %3208 = vset.pattern.permute.xlu0 0
    %3209 = vperm.xlu0 %3208, %v3068
    %v3210 = vpop.permute.xlu0 %3209
    %3213 = vset.pattern.permute.xlu0 0
    %3214 = vperm.xlu0 %3213, %v3069
    %v3215 = vpop.permute.xlu0 %3214
    %3218 = vset.pattern.permute.xlu0 0
    %3219 = vperm.xlu0 %3218, %v3070
    %v3220 = vpop.permute.xlu0 %3219
    %3223 = vset.pattern.permute.xlu0 0
    %3224 = vperm.xlu0 %3223, %v3071
    %v3225 = vpop.permute.xlu0 %3224
    %3228 = vset.pattern.permute.xlu0 0
    %3229 = vperm.xlu0 %3228, %v3072
    %v3230 = vpop.permute.xlu0 %3229
    %3233 = vset.pattern.permute.xlu0 0
    %3234 = vperm.xlu0 %3233, %v3073
    %v3235 = vpop.permute.xlu0 %3234
    %3238 = vset.pattern.permute.xlu0 0
    %3239 = vperm.xlu0 %3238, %v3074
    %v3240 = vpop.permute.xlu0 %3239
    %3243 = vset.pattern.permute.xlu0 0
    %3244 = vperm.xlu0 %3243, %v3075
    %v3245 = vpop.permute.xlu0 %3244
    %3248 = vset.pattern.permute.xlu0 0
    %3249 = vperm.xlu0 %3248, %v3076
    %v3250 = vpop.permute.xlu0 %3249
    %3253 = vset.pattern.permute.xlu0 0
    %3254 = vperm.xlu0 %3253, %v3077
    %v3255 = vpop.permute.xlu0 %3254
    %3258 = vset.pattern.permute.xlu0 0
    %3259 = vperm.xlu0 %3258, %v3078
    %v3260 = vpop.permute.xlu0 %3259
    %3263 = vset.pattern.permute.xlu0 0
    %3264 = vperm.xlu0 %3263, %v3079
    %v3265 = vpop.permute.xlu0 %3264
    %3268 = vset.pattern.permute.xlu0 0
    %3269 = vperm.xlu0 %3268, %v3080
    %v3270 = vpop.permute.xlu0 %3269
    %3273 = vset.pattern.permute.xlu0 0
    %3274 = vperm.xlu0 %3273, %v3081
    %v3275 = vpop.permute.xlu0 %3274
    %3278 = vset.pattern.permute.xlu0 0
    %3279 = vperm.xlu0 %3278, %v3082
    %v3280 = vpop.permute.xlu0 %3279
    %3283 = vset.pattern.permute.xlu0 0
    %3284 = vperm.xlu0 %3283, %v3083
    %v3285 = vpop.permute.xlu0 %3284
    %3288 = vset.pattern.permute.xlu0 0
    %3289 = vperm.xlu0 %3288, %v3084
    %v3290 = vpop.permute.xlu0 %3289
    %3293 = vset.pattern.permute.xlu0 0
    %3294 = vperm.xlu0 %3293, %v3085
    %v3295 = vpop.permute.xlu0 %3294
    %3298 = vset.pattern.permute.xlu0 0
    %3299 = vperm.xlu0 %3298, %v3086
    %v3300 = vpop.permute.xlu0 %3299
    %3303 = vset.pattern.permute.xlu0 0
    %3304 = vperm.xlu0 %3303, %v3087
    %v3305 = vpop.permute.xlu0 %3304
    %3308 = vset.pattern.permute.xlu0 0
    %3309 = vperm.xlu0 %3308, %v3088
    %v3310 = vpop.permute.xlu0 %3309
    %3313 = vset.pattern.permute.xlu0 0
    %3314 = vperm.xlu0 %3313, %v3089
    %v3315 = vpop.permute.xlu0 %3314
    %3318 = vset.pattern.permute.xlu0 0
    %3319 = vperm.xlu0 %3318, %v3090
    %v3320 = vpop.permute.xlu0 %3319
    %3323 = vset.pattern.permute.xlu0 0
    %3324 = vperm.xlu0 %3323, %v3091
    %v3325 = vpop.permute.xlu0 %3324
    %3328 = vset.pattern.permute.xlu0 0
    %3329 = vperm.xlu0 %3328, %v3092
    %v3330 = vpop.permute.xlu0 %3329
    %3333 = vset.pattern.permute.xlu0 0
    %3334 = vperm.xlu0 %3333, %v3093
    %v3335 = vpop.permute.xlu0 %3334
    %3338 = vset.pattern.permute.xlu0 0
    %3339 = vperm.xlu0 %3338, %v3094
    %v3340 = vpop.permute.xlu0 %3339
    %3343 = vset.pattern.permute.xlu0 0
    %3344 = vperm.xlu0 %3343, %v3095
    %v3345 = vpop.permute.xlu0 %3344
    %3348 = vset.pattern.permute.xlu0 0
    %3349 = vperm.xlu0 %3348, %v3096
    %v3350 = vpop.permute.xlu0 %3349
    %3353 = vset.pattern.permute.xlu0 0
    %3354 = vperm.xlu0 %3353, %v3097
    %v3355 = vpop.permute.xlu0 %3354
    %v3357 = vsel %vm3196, %v3200, 0.0
    %v3358 = vsel %vm3196, %v3205, 0.0
    %v3359 = vsel %vm3196, %v3210, 0.0
    %v3360 = vsel %vm3196, %v3215, 0.0
    %v3361 = vsel %vm3196, %v3220, 0.0
    %v3362 = vsel %vm3196, %v3225, 0.0
    %v3363 = vsel %vm3196, %v3230, 0.0
    %v3364 = vsel %vm3196, %v3235, 0.0
    %v3365 = vsel %vm3196, %v3240, 0.0
    %v3366 = vsel %vm3196, %v3245, 0.0
    %v3367 = vsel %vm3196, %v3250, 0.0
    %v3368 = vsel %vm3196, %v3255, 0.0
    %v3369 = vsel %vm3196, %v3260, 0.0
    %v3370 = vsel %vm3196, %v3265, 0.0
    %v3371 = vsel %vm3196, %v3270, 0.0
    %v3372 = vsel %vm3196, %v3275, 0.0
    %v3373 = vsel %vm3196, %v3280, 0.0
    %v3374 = vsel %vm3196, %v3285, 0.0
    %v3375 = vsel %vm3196, %v3290, 0.0
    %v3376 = vsel %vm3196, %v3295, 0.0
    %v3377 = vsel %vm3196, %v3300, 0.0
    %v3378 = vsel %vm3196, %v3305, 0.0
    %v3379 = vsel %vm3196, %v3310, 0.0
    %v3380 = vsel %vm3196, %v3315, 0.0
    %v3381 = vsel %vm3196, %v3320, 0.0
    %v3382 = vsel %vm3196, %v3325, 0.0
    %v3383 = vsel %vm3196, %v3330, 0.0
    %v3384 = vsel %vm3196, %v3335, 0.0
    %v3385 = vsel %vm3196, %v3340, 0.0
    %v3386 = vsel %vm3196, %v3345, 0.0
    %v3387 = vsel %vm3196, %v3350, 0.0
    %v3388 = vsel %vm3196, %v3355, 0.0
    %v3389 = vadd.f32 %v3164, %v3357
    %v3390 = vadd.f32 %v3165, %v3358
    %v3391 = vadd.f32 %v3166, %v3359
    %v3392 = vadd.f32 %v3167, %v3360
    %v3393 = vadd.f32 %v3168, %v3361
    %v3394 = vadd.f32 %v3169, %v3362
    %v3395 = vadd.f32 %v3170, %v3363
    %v3396 = vadd.f32 %v3171, %v3364
    %v3397 = vadd.f32 %v3172, %v3365
    %v3398 = vadd.f32 %v3173, %v3366
    %v3399 = vadd.f32 %v3174, %v3367
    %v3400 = vadd.f32 %v3175, %v3368
    %v3401 = vadd.f32 %v3176, %v3369
    %v3402 = vadd.f32 %v3177, %v3370
    %v3403 = vadd.f32 %v3178, %v3371
    %v3404 = vadd.f32 %v3179, %v3372
    %v3405 = vadd.f32 %v3180, %v3373
    %v3406 = vadd.f32 %v3181, %v3374
    %v3407 = vadd.f32 %v3182, %v3375
    %v3408 = vadd.f32 %v3183, %v3376
    %v3409 = vadd.f32 %v3184, %v3377
    %v3410 = vadd.f32 %v3185, %v3378
    %v3411 = vadd.f32 %v3186, %v3379
    %v3412 = vadd.f32 %v3187, %v3380
    %v3413 = vadd.f32 %v3188, %v3381
    %v3414 = vadd.f32 %v3189, %v3382
    %v3415 = vadd.f32 %v3190, %v3383
    %v3416 = vadd.f32 %v3191, %v3384
    %v3417 = vadd.f32 %v3192, %v3385
    %v3418 = vadd.f32 %v3193, %v3386
    %v3419 = vadd.f32 %v3194, %v3387
    %v3420 = vadd.f32 %v3195, %v3388
    %3421 = vst.msk [vmem:[%s12] sm:$0xff] %vm1527, %v3389
    %3422 = vst.msk [vmem:[%s12 + $0x8] sm:$0xff] %vm1527, %v3390
    %3423 = vst.msk [vmem:[%s12 + $0x10] sm:$0xff] %vm1527, %v3391
    %3424 = vst.msk [vmem:[%s12 + $0x18] sm:$0xff] %vm1527, %v3392
    %3425 = vst.msk [vmem:[%s12 + $0x20] sm:$0xff] %vm1527, %v3393
    %3426 = vst.msk [vmem:[%s12 + $0x28] sm:$0xff] %vm1527, %v3394
    %3427 = vst.msk [vmem:[%s12 + $0x30] sm:$0xff] %vm1527, %v3395
    %3428 = vst.msk [vmem:[%s12 + $0x38] sm:$0xff] %vm1527, %v3396
    %3429 = vst.msk [vmem:[%s12 + $0x40] sm:$0xff] %vm1527, %v3397
    %3430 = vst.msk [vmem:[%s12 + $0x48] sm:$0xff] %vm1527, %v3398
    %3431 = vst.msk [vmem:[%s12 + $0x50] sm:$0xff] %vm1527, %v3399
    %3432 = vst.msk [vmem:[%s12 + $0x58] sm:$0xff] %vm1527, %v3400
    %3433 = vst.msk [vmem:[%s12 + $0x60] sm:$0xff] %vm1527, %v3401
    %3434 = vst.msk [vmem:[%s12 + $0x68] sm:$0xff] %vm1527, %v3402
    %3435 = vst.msk [vmem:[%s12 + $0x70] sm:$0xff] %vm1527, %v3403
    %3436 = vst.msk [vmem:[%s12 + $0x78] sm:$0xff] %vm1527, %v3404
    %3437 = vst.msk [vmem:[%s12 + $0x80] sm:$0xff] %vm1527, %v3405
    %3438 = vst.msk [vmem:[%s12 + $0x88] sm:$0xff] %vm1527, %v3406
    %3439 = vst.msk [vmem:[%s12 + $0x90] sm:$0xff] %vm1527, %v3407
    %3440 = vst.msk [vmem:[%s12 + $0x98] sm:$0xff] %vm1527, %v3408
    %3441 = vst.msk [vmem:[%s12 + $0xa0] sm:$0xff] %vm1527, %v3409
    %3442 = vst.msk [vmem:[%s12 + $0xa8] sm:$0xff] %vm1527, %v3410
    %3443 = vst.msk [vmem:[%s12 + $0xb0] sm:$0xff] %vm1527, %v3411
    %3444 = vst.msk [vmem:[%s12 + $0xb8] sm:$0xff] %vm1527, %v3412
    %3445 = vst.msk [vmem:[%s12 + $0xc0] sm:$0xff] %vm1527, %v3413
    %3446 = vst.msk [vmem:[%s12 + $0xc8] sm:$0xff] %vm1527, %v3414
    %3447 = vst.msk [vmem:[%s12 + $0xd0] sm:$0xff] %vm1527, %v3415
    %3448 = vst.msk [vmem:[%s12 + $0xd8] sm:$0xff] %vm1527, %v3416
    %3449 = vst.msk [vmem:[%s12 + $0xe0] sm:$0xff] %vm1527, %v3417
    %3450 = vst.msk [vmem:[%s12 + $0xe8] sm:$0xff] %vm1527, %v3418
    %3451 = vst.msk [vmem:[%s12 + $0xf0] sm:$0xff] %vm1527, %v3419
    %3452 = vst.msk [vmem:[%s12 + $0xf8] sm:$0xff] %vm1527, %v3420
    // Predicated region
    $region54: #{tpu_custom_call.1} parent=1 // pred_check
      _
    $region55: #{tpu_custom_call.1} parent=1 // pred_check_branch
      %3454 = sbr.rel (0) target = $region57
    $region56: #{tpu_custom_call.1} parent=1 // pred_region
      _
    $region57: #{tpu_custom_call.1} parent=1 // pred_fallthru
      _
    // Predicated region
    $region58: #{tpu_custom_call.1} parent=1 // pred_check
      _
    $region59: #{tpu_custom_call.1} parent=1 // pred_check_branch
      %3456 = sbr.rel (0) target = $region61
    $region60: #{tpu_custom_call.1} parent=1 // pred_region
      _
    $region61: #{tpu_custom_call.1} parent=1 // pred_fallthru
      _
    %3457 = vsyncpa [#allocation4], 1

</llo_original>
